<compile_context>
chip_gen: v7x
topology: tpu7x:2x2x1
jax: 0.10.0
libtpu: 0.0.40
codegen_flags: <defaults>
</compile_context>

<pallas_src>
from functools import lru_cache

import numpy as np
import jax
import jax.numpy as jnp
from jax.experimental import pallas as pl
from jax.experimental.pallas import tpu as pltpu


# ----------------------------------------------------------------------------
# Host-side: bilinear x4 (align_corners=False) interpolation matrices and the
# fused Kronecker upsample matrix K^T = kron(U_h, U_w)^T : (H*W, 16*H*W).
# ----------------------------------------------------------------------------
@lru_cache(maxsize=None)
def _upsample_matrix_np(n, scale=4):
    # Exact PyTorch nn.Upsample(scale_factor=scale, mode='bilinear',
    # align_corners=False) interpolation matrix along one axis: (scale*n, n).
    out_n = n * scale
    o = np.arange(out_n, dtype=np.float64)
    src = np.clip((o + 0.5) / scale - 0.5, 0.0, n - 1)
    i0 = np.floor(src).astype(np.int64)
    i1 = np.minimum(i0 + 1, n - 1)
    frac = src - i0
    u = np.zeros((out_n, n), np.float64)
    rows = np.arange(out_n)
    u[rows, i0] += 1.0 - frac
    u[rows, i1] += frac
    return u


@lru_cache(maxsize=None)
def _kron_upsampleT(h, w, scale=4):
    # K[p*sW+q, y*W+x] = U_h[p, y] * U_w[q, x]  (row-major vec on both sides).
    uh = _upsample_matrix_np(h, scale)                 # (4h, h)
    uw = _upsample_matrix_np(w, scale)                 # (4w, w)
    k = np.kron(uh, uw)                                # (16hw, hw)
    kt = np.ascontiguousarray(k.T).astype(np.float32)  # (hw, 16hw)
    # NOTE: K^T is hw * 16hw * 4 bytes; fine at small resolutions.  For very
    # large H*W (v7x has only 64 MiB VMEM) switch to the separable two-matmul
    # (U_h, U_w) form instead of the Kron-fused path.
    return jnp.asarray(kt)


# ----------------------------------------------------------------------------
# Fused kernel: per image (one grid step)
#   1) invariant projection  base = W_ctx @ ctx + W_x @ x + bias   (MXU, once)
#   2) tree_depth cheap rank-1 softmax iterations (VPU/EUP + 4 XLU reductions)
#   3) fused x4 bilinear upsample of all 3*T maps with one MXU matmul,
#      written as a single lane-dense (3*T, 16*H*W) block.
# ----------------------------------------------------------------------------
def _make_decoder_kernel(tree_depth, depth_num, min_depth, bin_step):
    idx_bits = max(1, (depth_num - 1).bit_length())
    low_mask = (1 << idx_bits) - 1           # bin index lives in these bits

    def kernel(ctx_ref, x_ref, wc_ref, wx_ref, params_ref, kt_ref, out_ref):
        # ---- image-invariant projection: computed once per grid step -------
        base = (jnp.dot(wc_ref[...], ctx_ref[...],
                        preferred_element_type=jnp.float32) +
                jnp.dot(wx_ref[...], x_ref[...],
                        preferred_element_type=jnp.float32))
        bias = params_ref[:, 0:1]            # (D, 1)
        w_depth = params_ref[:, 1:2]         # (D, 1)
        centers = params_ref[:, 2:3]         # (D, 1)
        base = base + bias                   # (D, HW) f32

        hw = base.shape[1]
        depth = jnp.zeros((1, hw), jnp.float32)

        # Sign-aware tie codes packed into the low mantissa bits so that a
        # single FLOAT max reduction yields both max(logits) (to <2^idx_bits
        # ulp, which softmax is invariant to) and the FIRST argmax bin index.
        iota_i = jax.lax.broadcasted_iota(jnp.int32, base.shape, 0)
        tie_pos = jnp.int32(depth_num - 1) - iota_i   # positive floats
        tie_neg = iota_i                              # negative floats

        r_rows, c_rows, u_rows = [], [], []
        for _ in range(tree_depth):          # small static trip count
            # Rank-1 autoregressive update (VPU broadcast-mul-add).
            logits = base + w_depth * depth                       # (D, HW)

            # ---- fused max + first-argmax: ONE XLU reduction --------------
            lbits = pltpu.bitcast(logits, jnp.int32)
            tie = jnp.where(lbits < 0, tie_neg, tie_pos)
            packed = pltpu.bitcast(
                (lbits & jnp.int32(~low_mask)) | tie, jnp.float32)
            m = jnp.max(packed, axis=0, keepdims=True)            # (1, HW)
            mbits = pltpu.bitcast(m, jnp.int32)
            tie_win = mbits & jnp.int32(low_mask)
            idx = jnp.where(mbits < 0, tie_win,
                            jnp.int32(depth_num - 1) - tie_win
                            ).astype(jnp.float32)                 # (1, HW)

            # ---- softmax statistics (m-shift cancels exactly) -------------
            sh = logits - m
            e = jnp.exp(sh)                                       # EUP
            denom = jnp.sum(e, axis=0, keepdims=True)             # XLU
            sum_ec = jnp.sum(e * centers, axis=0, keepdims=True)  # XLU
            sum_el = jnp.sum(e * sh, axis=0, keepdims=True)       # XLU
            inv = 1.0 / denom            # exact: feeds the autoregression

            pred_r = sum_ec * inv                       # softmax expectation
            pred_c = (jnp.float32(min_depth) +
                      idx * jnp.float32(bin_step))      # first-argmax center
            unc = jnp.log(denom) - sum_el * inv         # H = logZ - E[l - m]

            r_rows.append(pred_r)
            c_rows.append(pred_c)
            u_rows.append(unc)
            depth = pred_r                               # autoregressive feed

        rows = jnp.concatenate(r_rows + c_rows + u_rows, axis=0)  # (3T, HW)
        # Fused bilinear x4 upsample of all 3T maps: one MXU matmul, explicit
        # HIGHEST precision so the f32 interpolation is not bf16-truncated.
        out_ref[...] = jnp.dot(rows, kt_ref[...],
                               preferred_element_type=jnp.float32,
                               precision=jax.lax.Precision.HIGHEST)

    return kernel


# ----------------------------------------------------------------------------
# AutoRegDecoder forward
# ----------------------------------------------------------------------------
class AutoRegDecoderPallas:
    def __init__(self, min_depth=0.1, max_depth=10.0, context_dim=16,
                 channels_in=32, patch_hws_list=((4, 4), (2, 2)),
                 depth_num=16, key=None):
        self.min_depth = float(min_depth)
        self.max_depth = float(max_depth)
        self.context_dim = int(context_dim)
        self.channels_in = int(channels_in)
        self.patch_hws_list = list(patch_hws_list)
        self.depth_num = int(depth_num)
        self.bin_step = (self.max_depth - self.min_depth) / (depth_num - 1)
        c_fix = self.context_dim + self.channels_in

        # TODO(synk): BasicUpdateBlockDepth parameters are not specified in the
        # provided module; a deterministic synthetic 1x1 projection stands in.
        k1, k2 = jax.random.split(key, 2)
        w_full = jax.random.normal(k1, (c_fix + 1, depth_num),
                                   jnp.float32) * 0.1
        b = jax.random.normal(k2, (depth_num,), jnp.float32) * 0.1
        self.wT_ctx = jnp.asarray(w_full[:self.context_dim].T)      # (D, Cctx)
        self.wT_x = jnp.asarray(w_full[self.context_dim:c_fix].T)   # (D, Cin)
        w_depth = w_full[c_fix]                                     # (D,)
        centers = jnp.linspace(self.min_depth, self.max_depth, depth_num,
                               dtype=jnp.float32)
        # Packed per-bin scalar params (D, 4): [bias, w_depth, centers, pad].
        self.params = jnp.stack(
            [b, w_depth, centers, jnp.zeros((depth_num,), jnp.float32)],
            axis=1)

    def __call__(self, conv_feats, context, cond_feats=None):
        # TODO(synk): the cond_feats branch depends on BasicUpdateBlockDepth
        # internals and is not modeled; the argument is accepted and ignored.
        x = conv_feats[0]                                  # (B, Cin, H, W)
        b, _, h, w = context.shape
        tree_depth = len(self.patch_hws_list)
        hw = h * w
        up_hw = 16 * hw
        d = self.depth_num

        # Free reshapes only — no transpose / concat HBM passes in XLA.
        ctx = context.reshape(b, self.context_dim, hw)
        xf = x.reshape(b, self.channels_in, hw)
        kt = _kron_upsampleT(h, w)                         # (hw, 16hw) f32

        kernel = _make_decoder_kernel(tree_depth, d, self.min_depth,
                                      self.bin_step)
        out = pl.pallas_call(
            kernel,
            out_shape=jax.ShapeDtypeStruct((b, 3 * tree_depth, up_hw),
                                           jnp.float32),
            grid=(b,),   # >=2 "parallel" steps at B>=2 -> both v7x TCs busy
            in_specs=[
                pl.BlockSpec((None, self.context_dim, hw),
                             lambda i: (i, 0, 0)),
                pl.BlockSpec((None, self.channels_in, hw),
                             lambda i: (i, 0, 0)),
                pl.BlockSpec((d, self.context_dim), lambda i: (0, 0)),
                pl.BlockSpec((d, self.channels_in), lambda i: (0, 0)),
                pl.BlockSpec((d, 4), lambda i: (0, 0)),
                pl.BlockSpec((hw, up_hw), lambda i: (0, 0)),
            ],
            out_specs=pl.BlockSpec((None, 3 * tree_depth, up_hw),
                                   lambda i: (i, 0, 0)),
            compiler_params=pltpu.CompilerParams(
                dimension_semantics=("parallel",)),
        )(ctx, xf, self.wT_ctx, self.wT_x, self.params, kt)

        # (B, 3T, 16hw) -> (B, 3, T, 4H, 4W); rows are grouped [r.., c.., u..].
        maps = out.reshape(b, 3, tree_depth, 4 * h, 4 * w)
        pred_depths_r_list = [maps[:, 0, t][:, None]
                              for t in range(tree_depth)]
        pred_depths_c_list = [maps[:, 1, t][:, None]
                              for t in range(tree_depth)]
        uncertainty_maps_list = [maps[:, 2, t][:, None]
                                 for t in range(tree_depth)]
        return pred_depths_r_list, pred_depths_c_list, uncertainty_maps_list


if __name__ == "__main__":
    key = jax.random.PRNGKey(0)
    k_ctx, k_x, k_params = jax.random.split(key, 3)

    B, H, W = 2, 8, 8
    CONTEXT_DIM, CHANNELS_IN = 16, 32
    patch_hws_list = [(4, 4), (2, 2)]

    context = jax.random.normal(k_ctx, (B, CONTEXT_DIM, H, W), jnp.float32)
    x = jax.random.normal(k_x, (B, CHANNELS_IN, H, W), jnp.float32)
    conv_feats = [x]

    decoder = AutoRegDecoderPallas(
        min_depth=0.1,
        max_depth=10.0,
        context_dim=CONTEXT_DIM,
        channels_in=CHANNELS_IN,
        patch_hws_list=patch_hws_list,
        depth_num=16,
        key=k_params,
    )

    pred_r, pred_c, unc = decoder(conv_feats, context)
    for lst in (pred_r, pred_c, unc):
        for t in lst:
            jax.block_until_ready(t)
            assert t.shape == (B, 1, 4 * H, 4 * W), t.shape

    print("KERNEL_OK")
</pallas_src>

<mosaic_0001>
module attributes {stable_mosaic.version = 11 : i64} {
  func.func @kernel(%arg0: i32, %arg1: memref<1x16x64xf32, #tpu.memory_space<vmem>>, %arg2: memref<1x32x64xf32, #tpu.memory_space<vmem>>, %arg3: memref<16x16xf32, #tpu.memory_space<vmem>>, %arg4: memref<16x32xf32, #tpu.memory_space<vmem>>, %arg5: memref<16x4xf32, #tpu.memory_space<vmem>>, %arg6: memref<64x1024xf32, #tpu.memory_space<vmem>>, %arg7: memref<1x6x1024xf32, #tpu.memory_space<vmem>>) attributes {dimension_semantics = [#tpu.dimension_semantics<parallel>], iteration_bounds = array<i64: 2>, scalar_prefetch = 0 : i64, scratch_operands = 0 : i64, tpu.core_type = #tpu.core_type<tc>, window_params = [{transform_indices = @transform_0, window_bounds = array<i64: 1, 16, 64>}, {transform_indices = @transform_1, window_bounds = array<i64: 1, 32, 64>}, {pipeline_mode = #tpu.pipeline_mode<synchronous>, transform_indices = @transform_2, window_bounds = array<i64: 16, 16>}, {pipeline_mode = #tpu.pipeline_mode<synchronous>, transform_indices = @transform_3, window_bounds = array<i64: 16, 32>}, {pipeline_mode = #tpu.pipeline_mode<synchronous>, transform_indices = @transform_4, window_bounds = array<i64: 16, 4>}, {pipeline_mode = #tpu.pipeline_mode<synchronous>, transform_indices = @transform_5, window_bounds = array<i64: 64, 1024>}, {transform_indices = @transform_6, window_bounds = array<i64: 1, 6, 1024>}]} {
    %c0 = arith.constant 0 : index
    %c0_0 = arith.constant 0 : index
    %0 = vector.load %arg3[%c0, %c0_0] : memref<16x16xf32, #tpu.memory_space<vmem>>, vector<16x16xf32>
    %c0_1 = arith.constant 0 : index
    %c0_2 = arith.constant 0 : index
    %c0_3 = arith.constant 0 : index
    %1 = vector.load %arg1[%c0_1, %c0_2, %c0_3] : memref<1x16x64xf32, #tpu.memory_space<vmem>>, vector<1x16x64xf32>
    %2 = vector.shape_cast %1 : vector<1x16x64xf32> to vector<16x64xf32>
    %cst = arith.constant dense<0.000000e+00> : vector<16x64xf32>
    %3 = tpu.matmul %0, %2, %cst {dimension_numbers = #tpu.dot_dimension_numbers<[1], [0], [0], [1], [0, 0, 1, 1], [], []>} : vector<16x16xf32>, vector<16x64xf32>, vector<16x64xf32> -> vector<16x64xf32>
    %c0_4 = arith.constant 0 : index
    %c0_5 = arith.constant 0 : index
    %4 = vector.load %arg4[%c0_4, %c0_5] : memref<16x32xf32, #tpu.memory_space<vmem>>, vector<16x32xf32>
    %c0_6 = arith.constant 0 : index
    %c0_7 = arith.constant 0 : index
    %c0_8 = arith.constant 0 : index
    %5 = vector.load %arg2[%c0_6, %c0_7, %c0_8] : memref<1x32x64xf32, #tpu.memory_space<vmem>>, vector<1x32x64xf32>
    %6 = vector.shape_cast %5 : vector<1x32x64xf32> to vector<32x64xf32>
    %cst_9 = arith.constant dense<0.000000e+00> : vector<16x64xf32>
    %7 = tpu.matmul %4, %6, %cst_9 {dimension_numbers = #tpu.dot_dimension_numbers<[1], [0], [0], [1], [0, 0, 1, 1], [], []>} : vector<16x32xf32>, vector<32x64xf32>, vector<16x64xf32> -> vector<16x64xf32>
    %8 = arith.addf %3, %7 : vector<16x64xf32>
    %c0_10 = arith.constant 0 : index
    %c0_11 = arith.constant 0 : index
    %9 = vector.load %arg5[%c0_10, %c0_11] : memref<16x4xf32, #tpu.memory_space<vmem>>, vector<16x1xf32>
    %c0_12 = arith.constant 0 : index
    %c1 = arith.constant 1 : index
    %10 = vector.load %arg5[%c0_12, %c1] : memref<16x4xf32, #tpu.memory_space<vmem>>, vector<16x1xf32>
    %c0_13 = arith.constant 0 : index
    %c2 = arith.constant 2 : index
    %11 = vector.load %arg5[%c0_13, %c2] : memref<16x4xf32, #tpu.memory_space<vmem>>, vector<16x1xf32>
    %12 = vector.broadcast %9 : vector<16x1xf32> to vector<16x64xf32>
    %13 = arith.addf %8, %12 : vector<16x64xf32>
    %cst_14 = arith.constant 0.000000e+00 : f32
    %14 = vector.broadcast %cst_14 : f32 to vector<1x64xf32>
    %15 = tpu.iota {dimensions = array<i32: 0>} : vector<16x64xi32>
    %c15_i32 = arith.constant 15 : i32
    %16 = vector.broadcast %c15_i32 : i32 to vector<16x64xi32>
    %17 = arith.subi %16, %15 : vector<16x64xi32>
    %18 = vector.broadcast %10 : vector<16x1xf32> to vector<16x64xf32>
    %19 = vector.broadcast %14 : vector<1x64xf32> to vector<16x64xf32>
    %20 = arith.mulf %18, %19 : vector<16x64xf32>
    %21 = arith.addf %13, %20 : vector<16x64xf32>
    %22 = tpu.bitcast %21 : vector<16x64xf32> -> vector<16x64xi32>
    %c0_i32 = arith.constant 0 : i32
    %23 = vector.broadcast %c0_i32 : i32 to vector<16x64xi32>
    %24 = arith.cmpi slt, %22, %23 : vector<16x64xi32>
    %25 = arith.select %24, %15, %17 : vector<16x64xi1>, vector<16x64xi32>
    %c-16_i32 = arith.constant -16 : i32
    %26 = vector.broadcast %c-16_i32 : i32 to vector<16x64xi32>
    %27 = arith.andi %22, %26 : vector<16x64xi32>
    %28 = arith.ori %27, %25 : vector<16x64xi32>
    %29 = tpu.bitcast %28 : vector<16x64xi32> -> vector<16x64xf32>
    %cst_15 = arith.constant dense<0xFF800000> : vector<64xf32>
    %30 = vector.multi_reduction <maximumf>, %29, %cst_15 [0] : vector<16x64xf32> to vector<64xf32>
    %31 = vector.shape_cast %30 : vector<64xf32> to vector<1x64xf32>
    %32 = tpu.bitcast %31 : vector<1x64xf32> -> vector<1x64xi32>
    %c15_i32_16 = arith.constant 15 : i32
    %33 = vector.broadcast %c15_i32_16 : i32 to vector<1x64xi32>
    %34 = arith.andi %32, %33 : vector<1x64xi32>
    %c0_i32_17 = arith.constant 0 : i32
    %35 = vector.broadcast %c0_i32_17 : i32 to vector<1x64xi32>
    %36 = arith.cmpi slt, %32, %35 : vector<1x64xi32>
    %c15_i32_18 = arith.constant 15 : i32
    %37 = vector.broadcast %c15_i32_18 : i32 to vector<1x64xi32>
    %38 = arith.subi %37, %34 : vector<1x64xi32>
    %39 = arith.select %36, %34, %38 : vector<1x64xi1>, vector<1x64xi32>
    %40 = arith.sitofp %39 : vector<1x64xi32> to vector<1x64xf32>
    %41 = vector.broadcast %31 : vector<1x64xf32> to vector<16x64xf32>
    %42 = arith.subf %21, %41 : vector<16x64xf32>
    %43 = math.exp %42 : vector<16x64xf32>
    %cst_19 = arith.constant dense<0.000000e+00> : vector<64xf32>
    %44 = vector.multi_reduction <add>, %43, %cst_19 [0] : vector<16x64xf32> to vector<64xf32>
    %45 = vector.shape_cast %44 : vector<64xf32> to vector<1x64xf32>
    %46 = vector.broadcast %11 : vector<16x1xf32> to vector<16x64xf32>
    %47 = arith.mulf %43, %46 : vector<16x64xf32>
    %cst_20 = arith.constant dense<0.000000e+00> : vector<64xf32>
    %48 = vector.multi_reduction <add>, %47, %cst_20 [0] : vector<16x64xf32> to vector<64xf32>
    %49 = vector.shape_cast %48 : vector<64xf32> to vector<1x64xf32>
    %50 = arith.mulf %43, %42 : vector<16x64xf32>
    %cst_21 = arith.constant dense<0.000000e+00> : vector<64xf32>
    %51 = vector.multi_reduction <add>, %50, %cst_21 [0] : vector<16x64xf32> to vector<64xf32>
    %52 = vector.shape_cast %51 : vector<64xf32> to vector<1x64xf32>
    %cst_22 = arith.constant 1.000000e+00 : f32
    %53 = vector.broadcast %cst_22 : f32 to vector<1x64xf32>
    %54 = arith.divf %53, %45 : vector<1x64xf32>
    %55 = arith.mulf %49, %54 : vector<1x64xf32>
    %cst_23 = arith.constant 6.600000e-01 : f32
    %56 = vector.broadcast %cst_23 : f32 to vector<1x64xf32>
    %57 = arith.mulf %40, %56 : vector<1x64xf32>
    %cst_24 = arith.constant 1.000000e-01 : f32
    %58 = vector.broadcast %cst_24 : f32 to vector<1x64xf32>
    %59 = arith.addf %58, %57 : vector<1x64xf32>
    %60 = math.log %45 : vector<1x64xf32>
    %61 = arith.mulf %52, %54 : vector<1x64xf32>
    %62 = arith.subf %60, %61 : vector<1x64xf32>
    %63 = vector.broadcast %10 : vector<16x1xf32> to vector<16x64xf32>
    %64 = vector.broadcast %55 : vector<1x64xf32> to vector<16x64xf32>
    %65 = arith.mulf %63, %64 : vector<16x64xf32>
    %66 = arith.addf %13, %65 : vector<16x64xf32>
    %67 = tpu.bitcast %66 : vector<16x64xf32> -> vector<16x64xi32>
    %c0_i32_25 = arith.constant 0 : i32
    %68 = vector.broadcast %c0_i32_25 : i32 to vector<16x64xi32>
    %69 = arith.cmpi slt, %67, %68 : vector<16x64xi32>
    %70 = arith.select %69, %15, %17 : vector<16x64xi1>, vector<16x64xi32>
    %c-16_i32_26 = arith.constant -16 : i32
    %71 = vector.broadcast %c-16_i32_26 : i32 to vector<16x64xi32>
    %72 = arith.andi %67, %71 : vector<16x64xi32>
    %73 = arith.ori %72, %70 : vector<16x64xi32>
    %74 = tpu.bitcast %73 : vector<16x64xi32> -> vector<16x64xf32>
    %cst_27 = arith.constant dense<0xFF800000> : vector<64xf32>
    %75 = vector.multi_reduction <maximumf>, %74, %cst_27 [0] : vector<16x64xf32> to vector<64xf32>
    %76 = vector.shape_cast %75 : vector<64xf32> to vector<1x64xf32>
    %77 = tpu.bitcast %76 : vector<1x64xf32> -> vector<1x64xi32>
    %c15_i32_28 = arith.constant 15 : i32
    %78 = vector.broadcast %c15_i32_28 : i32 to vector<1x64xi32>
    %79 = arith.andi %77, %78 : vector<1x64xi32>
    %c0_i32_29 = arith.constant 0 : i32
    %80 = vector.broadcast %c0_i32_29 : i32 to vector<1x64xi32>
    %81 = arith.cmpi slt, %77, %80 : vector<1x64xi32>
    %c15_i32_30 = arith.constant 15 : i32
    %82 = vector.broadcast %c15_i32_30 : i32 to vector<1x64xi32>
    %83 = arith.subi %82, %79 : vector<1x64xi32>
    %84 = arith.select %81, %79, %83 : vector<1x64xi1>, vector<1x64xi32>
    %85 = arith.sitofp %84 : vector<1x64xi32> to vector<1x64xf32>
    %86 = vector.broadcast %76 : vector<1x64xf32> to vector<16x64xf32>
    %87 = arith.subf %66, %86 : vector<16x64xf32>
    %88 = math.exp %87 : vector<16x64xf32>
    %cst_31 = arith.constant dense<0.000000e+00> : vector<64xf32>
    %89 = vector.multi_reduction <add>, %88, %cst_31 [0] : vector<16x64xf32> to vector<64xf32>
    %90 = vector.shape_cast %89 : vector<64xf32> to vector<1x64xf32>
    %91 = vector.broadcast %11 : vector<16x1xf32> to vector<16x64xf32>
    %92 = arith.mulf %88, %91 : vector<16x64xf32>
    %cst_32 = arith.constant dense<0.000000e+00> : vector<64xf32>
    %93 = vector.multi_reduction <add>, %92, %cst_32 [0] : vector<16x64xf32> to vector<64xf32>
    %94 = vector.shape_cast %93 : vector<64xf32> to vector<1x64xf32>
    %95 = arith.mulf %88, %87 : vector<16x64xf32>
    %cst_33 = arith.constant dense<0.000000e+00> : vector<64xf32>
    %96 = vector.multi_reduction <add>, %95, %cst_33 [0] : vector<16x64xf32> to vector<64xf32>
    %97 = vector.shape_cast %96 : vector<64xf32> to vector<1x64xf32>
    %cst_34 = arith.constant 1.000000e+00 : f32
    %98 = vector.broadcast %cst_34 : f32 to vector<1x64xf32>
    %99 = arith.divf %98, %90 : vector<1x64xf32>
    %100 = arith.mulf %94, %99 : vector<1x64xf32>
    %cst_35 = arith.constant 6.600000e-01 : f32
    %101 = vector.broadcast %cst_35 : f32 to vector<1x64xf32>
    %102 = arith.mulf %85, %101 : vector<1x64xf32>
    %cst_36 = arith.constant 1.000000e-01 : f32
    %103 = vector.broadcast %cst_36 : f32 to vector<1x64xf32>
    %104 = arith.addf %103, %102 : vector<1x64xf32>
    %105 = math.log %90 : vector<1x64xf32>
    %106 = arith.mulf %97, %99 : vector<1x64xf32>
    %107 = arith.subf %105, %106 : vector<1x64xf32>
    %108 = tpu.concatenate %55, %100, %59, %104, %62, %107 in 0 : vector<1x64xf32>, vector<1x64xf32>, vector<1x64xf32>, vector<1x64xf32>, vector<1x64xf32>, vector<1x64xf32> -> vector<6x64xf32>
    %c0_37 = arith.constant 0 : index
    %c0_38 = arith.constant 0 : index
    %109 = vector.load %arg6[%c0_37, %c0_38] : memref<64x1024xf32, #tpu.memory_space<vmem>>, vector<64x1024xf32>
    %cst_39 = arith.constant dense<0.000000e+00> : vector<6x1024xf32>
    %110 = tpu.matmul %108, %109, %cst_39 {dimension_numbers = #tpu.dot_dimension_numbers<[1], [0], [0], [1], [0, 0, 1, 1], [], []>, precision = #tpu.contract_precision<fp32>} : vector<6x64xf32>, vector<64x1024xf32>, vector<6x1024xf32> -> vector<6x1024xf32>
    %c0_40 = arith.constant 0 : index
    %c0_41 = arith.constant 0 : index
    %c0_42 = arith.constant 0 : index
    %111 = vector.load %arg7[%c0_40, %c0_41, %c0_42] : memref<1x6x1024xf32, #tpu.memory_space<vmem>>, vector<1x6x1024xf32>
    %112 = vector.shape_cast %111 : vector<1x6x1024xf32> to vector<6x1024xf32>
    %113 = vector.shape_cast %110 : vector<6x1024xf32> to vector<1x6x1024xf32>
    tpu.vector_store %arg7[%c0_40, %c0_41, %c0_42], %113 {strides = array<i32>} : memref<1x6x1024xf32, #tpu.memory_space<vmem>>, vector<1x6x1024xf32>,
    return
  }
  func.func @transform_0(%arg0: i32) -> (i32, i32, i32) {
    %c0_i32 = arith.constant 0 : i32
    %c0_i32_0 = arith.constant 0 : i32
    %c0_i32_1 = arith.constant 0 : i32
    return %arg0, %c0_i32, %c0_i32_0 : i32, i32, i32
  }
  func.func @transform_1(%arg0: i32) -> (i32, i32, i32) {
    %c0_i32 = arith.constant 0 : i32
    %c0_i32_0 = arith.constant 0 : i32
    %c0_i32_1 = arith.constant 0 : i32
    return %arg0, %c0_i32, %c0_i32_0 : i32, i32, i32
  }
  func.func @transform_2(%arg0: i32) -> (i32, i32) {
    %c0_i32 = arith.constant 0 : i32
    %c0_i32_0 = arith.constant 0 : i32
    %c0_i32_1 = arith.constant 0 : i32
    return %c0_i32, %c0_i32_0 : i32, i32
  }
  func.func @transform_3(%arg0: i32) -> (i32, i32) {
    %c0_i32 = arith.constant 0 : i32
    %c0_i32_0 = arith.constant 0 : i32
    %c0_i32_1 = arith.constant 0 : i32
    return %c0_i32, %c0_i32_0 : i32, i32
  }
  func.func @transform_4(%arg0: i32) -> (i32, i32) {
    %c0_i32 = arith.constant 0 : i32
    %c0_i32_0 = arith.constant 0 : i32
    %c0_i32_1 = arith.constant 0 : i32
    return %c0_i32, %c0_i32_0 : i32, i32
  }
  func.func @transform_5(%arg0: i32) -> (i32, i32) {
    %c0_i32 = arith.constant 0 : i32
    %c0_i32_0 = arith.constant 0 : i32
    %c0_i32_1 = arith.constant 0 : i32
    return %c0_i32, %c0_i32_0 : i32, i32
  }
  func.func @transform_6(%arg0: i32) -> (i32, i32, i32) {
    %c0_i32 = arith.constant 0 : i32
    %c0_i32_0 = arith.constant 0 : i32
    %c0_i32_1 = arith.constant 0 : i32
    return %arg0, %c0_i32, %c0_i32_0 : i32, i32, i32
  }
}

</mosaic_0001>

<llo_original>
// kernel: tpu_custom_call.1
$region0: #{tpu_custom_call.1}
  #allocation0 [shape = 'u32[]', space=smem, size = 0x4, offset = 0x4, fixed_abs, tag = 'smem constant byte address 0x4 - core index']
  #allocation1 [shape = 'u32[144,128]{1,0:T(1,128)}', space=vmem, size = 0x12000, scoped, tag = 'internal scratch']
  %s0 = inlined_call_operand.hbm [shape: f32[2,16,64], index: 0, kind: input, shape index: {}]
  %s1 = inlined_call_operand.hbm [shape: f32[2,32,64], index: 1, kind: input, shape index: {}]
  %s2 = inlined_call_operand.vmem [shape: f32[16,16], index: 2, kind: input, shape index: {}]
  %s3 = inlined_call_operand.hbm [shape: f32[16,32], index: 3, kind: input, shape index: {}]
  %s4 = inlined_call_operand.vmem [shape: f32[16,4], index: 4, kind: input, shape index: {}]
  %s5 = inlined_call_operand.hbm [shape: f32[64,1024], index: 5, kind: input, shape index: {}]
  %s6 = inlined_call_operand.vmem [shape: f32[2,6,1024], index: 6, kind: output, shape index: {}]
  %s7 = sld [smem:[#allocation0]]
  $region73: #{tpu_custom_call.1} parent=0
    _
  %s9 = ssub.s32 1, %s7
  %s10 = scalar_select 0, %s9, %s7
  $region1: #{tpu_custom_call.1} parent=0
    #allocation2 [shape = 'u8[16384]{0}', space=vmem, size = 0x4000, scoped, tag = 'input window, operand 0']
    #allocation3 [shape = 's32[2]{0}', space=sflag, size = 0x8, scoped, tag = 'scoped memory for tpu_custom_call.1']
    #allocation4 [shape = 'u8[32768]{0}', space=vmem, size = 0x8000, scoped, tag = 'input window, operand 1']
    #allocation5 [shape = 's32[2]{0}', space=sflag, size = 0x8, scoped, tag = 'scoped memory for tpu_custom_call.1']
    #allocation6 [shape = 'u8[8192]{0}', space=vmem, size = 0x2000, scoped, tag = 'input window, operand 3, single buffered']
    #allocation7 [shape = 'u8[262144]{0}', space=vmem, size = 0x40000, scoped, tag = 'input window, operand 5, single buffered']
    #allocation8 [shape = 's32[1]{0}', space=sflag, size = 0x4, scoped, tag = 'scoped memory for tpu_custom_call.1']
    %11 = vsyncpa [#allocation3], 0
    %s12 = scalar_lea.sflag [#allocation3], 1
    %13 = vsyncpa %s12, 0
    %14 = vsyncpa [#allocation5], 0
    %s15 = scalar_lea.sflag [#allocation5], 1
    %16 = vsyncpa %s15, 0
    %17 = vsyncpa [#allocation8], 0
    loop: start=0, step=1, limit=4
    $region2: #{tpu_custom_call.1} parent=1 // loop_pre_header
      _
    $region3: #{tpu_custom_call.1} parent=1 // loop_header
      %s19 = sphi 0, %s23
      %p20 = scmp.ge.s32.totalorder %s19, 4
      %s29 = sphi 0, %s31
      %s32 = sphi 0, %s29
      %s33 = sphi 0, %s32
      %s49 = sphi 0, %s33
      %s55 = sphi 0, %s57
      %s58 = sphi 0, %s55
      %s59 = sphi 0, %s58
      %s75 = sphi 0, %s59
      %s79 = sphi 0, %s79
      %s81 = sphi 0, %s79
      %s82 = sphi 0, %s81
      %s96 = sphi 0, %s82
      %s100 = sphi 0, %s100
      %s102 = sphi 0, %s100
      %s103 = sphi 0, %s102
      %s117 = sphi 0, %s103
      %s121 = sphi 0, %s121
      %s123 = sphi 0, %s121
      %s124 = sphi 0, %s123
      %s138 = sphi 0, %s124
      %s142 = sphi 0, %s142
      %s144 = sphi 0, %s142
      %s145 = sphi 0, %s144
      %s159 = sphi 0, %s145
      %s165 = sphi 0, %s167
      %s168 = sphi 0, %s165
      %s169 = sphi 0, %s168
      %s185 = sphi 0, %s169
    $region4: #{tpu_custom_call.1} parent=1 // loop_header_branch
      %22 = sbr.rel (%p20) target = $region8
    $region5: #{tpu_custom_call.1} parent=1 // loop_body
      %s24 = ssub.s32 %s19, 1
      %s25 = ssub.s32 %s19, 2
      %s26 = sadd.s32 %s19, 1
      %s27 = ssub.s32 %s19, %s26
      %p28 = scmp.eq.s32.totalorder %s27, 0
      %s30 = sadd.s32 %s29, 1
      %s31 = scalar_select %p28, %s29, %s30
      %p34 = pneg %p28
      %p35 = scmp.eq.s32.totalorder %s19, 1
      %p36 = por %p34, %p35
      %p37 = scmp.ne.s32.totalorder %s29, %s32
      %p38 = scmp.eq.s32.totalorder %s19, 0
      %p39 = por %p37, %p38
      %p40 = scmp.ne.s32.totalorder %s29, %s32
      %p41 = scmp.eq.s32.totalorder %s24, 1
      %p42 = por %p40, %p41
      %p43 = scmp.ne.s32.totalorder %s32, %s33
      %p44 = scmp.eq.s32.totalorder %s24, 0
      %p45 = por %p43, %p44
      %p46 = scmp.ne.s32.totalorder %s32, %s33
      %p47 = scmp.eq.s32.totalorder %s25, 1
      %p48 = por %p46, %p47
      %p50 = scmp.ne.s32.totalorder %s33, %s49
      %p51 = scmp.eq.s32.totalorder %s25, 0
      %p52 = por %p50, %p51
      %s53 = ssub.s32 %s19, %s26
      %p54 = scmp.eq.s32.totalorder %s53, 0
      %s56 = sadd.s32 %s55, 1
      %s57 = scalar_select %p54, %s55, %s56
      %p60 = pneg %p54
      %p61 = scmp.eq.s32.totalorder %s19, 1
      %p62 = por %p60, %p61
      %p63 = scmp.ne.s32.totalorder %s55, %s58
      %p64 = scmp.eq.s32.totalorder %s19, 0
      %p65 = por %p63, %p64
      %p66 = scmp.ne.s32.totalorder %s55, %s58
      %p67 = scmp.eq.s32.totalorder %s24, 1
      %p68 = por %p66, %p67
      %p69 = scmp.ne.s32.totalorder %s58, %s59
      %p70 = scmp.eq.s32.totalorder %s24, 0
      %p71 = por %p69, %p70
      %p72 = scmp.ne.s32.totalorder %s58, %s59
      %p73 = scmp.eq.s32.totalorder %s25, 1
      %p74 = por %p72, %p73
      %p76 = scmp.ne.s32.totalorder %s59, %s75
      %p77 = scmp.eq.s32.totalorder %s25, 0
      %p78 = por %p76, %p77
      %s80 = sadd.s32 %s79, 1
      %p83 = scmp.eq.s32.totalorder %s19, 1
      %p84 = scmp.ne.s32.totalorder %s79, %s81
      %p85 = scmp.eq.s32.totalorder %s19, 0
      %p86 = por %p84, %p85
      %p87 = scmp.ne.s32.totalorder %s79, %s81
      %p88 = scmp.eq.s32.totalorder %s24, 1
      %p89 = por %p87, %p88
      %p90 = scmp.ne.s32.totalorder %s81, %s82
      %p91 = scmp.eq.s32.totalorder %s24, 0
      %p92 = por %p90, %p91
      %p93 = scmp.ne.s32.totalorder %s81, %s82
      %p94 = scmp.eq.s32.totalorder %s25, 1
      %p95 = por %p93, %p94
      %p97 = scmp.ne.s32.totalorder %s82, %s96
      %p98 = scmp.eq.s32.totalorder %s25, 0
      %p99 = por %p97, %p98
      %s101 = sadd.s32 %s100, 1
      %p104 = scmp.eq.s32.totalorder %s19, 1
      %p105 = scmp.ne.s32.totalorder %s100, %s102
      %p106 = scmp.eq.s32.totalorder %s19, 0
      %p107 = por %p105, %p106
      %p108 = scmp.ne.s32.totalorder %s100, %s102
      %p109 = scmp.eq.s32.totalorder %s24, 1
      %p110 = por %p108, %p109
      %p111 = scmp.ne.s32.totalorder %s102, %s103
      %p112 = scmp.eq.s32.totalorder %s24, 0
      %p113 = por %p111, %p112
      %p114 = scmp.ne.s32.totalorder %s102, %s103
      %p115 = scmp.eq.s32.totalorder %s25, 1
      %p116 = por %p114, %p115
      %p118 = scmp.ne.s32.totalorder %s103, %s117
      %p119 = scmp.eq.s32.totalorder %s25, 0
      %p120 = por %p118, %p119
      %s122 = sadd.s32 %s121, 1
      %p125 = scmp.eq.s32.totalorder %s19, 1
      %p126 = scmp.ne.s32.totalorder %s121, %s123
      %p127 = scmp.eq.s32.totalorder %s19, 0
      %p128 = por %p126, %p127
      %p129 = scmp.ne.s32.totalorder %s121, %s123
      %p130 = scmp.eq.s32.totalorder %s24, 1
      %p131 = por %p129, %p130
      %p132 = scmp.ne.s32.totalorder %s123, %s124
      %p133 = scmp.eq.s32.totalorder %s24, 0
      %p134 = por %p132, %p133
      %p135 = scmp.ne.s32.totalorder %s123, %s124
      %p136 = scmp.eq.s32.totalorder %s25, 1
      %p137 = por %p135, %p136
      %p139 = scmp.ne.s32.totalorder %s124, %s138
      %p140 = scmp.eq.s32.totalorder %s25, 0
      %p141 = por %p139, %p140
      %s143 = sadd.s32 %s142, 1
      %p146 = scmp.eq.s32.totalorder %s19, 1
      %p147 = scmp.ne.s32.totalorder %s142, %s144
      %p148 = scmp.eq.s32.totalorder %s19, 0
      %p149 = por %p147, %p148
      %p150 = scmp.ne.s32.totalorder %s142, %s144
      %p151 = scmp.eq.s32.totalorder %s24, 1
      %p152 = por %p150, %p151
      %p153 = scmp.ne.s32.totalorder %s144, %s145
      %p154 = scmp.eq.s32.totalorder %s24, 0
      %p155 = por %p153, %p154
      %p156 = scmp.ne.s32.totalorder %s144, %s145
      %p157 = scmp.eq.s32.totalorder %s25, 1
      %p158 = por %p156, %p157
      %p160 = scmp.ne.s32.totalorder %s145, %s159
      %p161 = scmp.eq.s32.totalorder %s25, 0
      %p162 = por %p160, %p161
      %s163 = ssub.s32 %s19, %s26
      %p164 = scmp.eq.s32.totalorder %s163, 0
      %s166 = sadd.s32 %s165, 1
      %s167 = scalar_select %p164, %s165, %s166
      %p170 = pneg %p164
      %p171 = scmp.eq.s32.totalorder %s19, 1
      %p172 = por %p170, %p171
      %p173 = scmp.ne.s32.totalorder %s165, %s168
      %p174 = scmp.eq.s32.totalorder %s19, 0
      %p175 = por %p173, %p174
      %p176 = scmp.ne.s32.totalorder %s165, %s168
      %p177 = scmp.eq.s32.totalorder %s24, 1
      %p178 = por %p176, %p177
      %p179 = scmp.ne.s32.totalorder %s168, %s169
      %p180 = scmp.eq.s32.totalorder %s24, 0
      %p181 = por %p179, %p180
      %p182 = scmp.ne.s32.totalorder %s168, %s169
      %p183 = scmp.eq.s32.totalorder %s25, 1
      %p184 = por %p182, %p183
      %p186 = scmp.ne.s32.totalorder %s169, %s185
      %p187 = scmp.eq.s32.totalorder %s25, 0
      %p188 = por %p186, %p187
      %p189 = scmp.le.s32.totalorder 1, %s19
      %p190 = scmp.lt.s32.totalorder %s19, 3
      %p191 = pnand %p189, %p190
      %p192 = pneg %p191
      // Predicated region
      $region9: #{tpu_custom_call.1} parent=5 // pred_check
        _
      $region10: #{tpu_custom_call.1} parent=5 // pred_check_branch
        %194 = sbr.rel (%p191) target = $region12
      $region11: #{tpu_custom_call.1} parent=5 // pred_region
        %s195 = ssub.s32 %s19, 1
        // Predicated region
        $region13: #{tpu_custom_call.1} parent=11 // pred_check
          %p196 = pneg %p92
        $region14: #{tpu_custom_call.1} parent=11 // pred_check_branch
          %198 = sbr.rel (%p196) target = $region16
        $region15: #{tpu_custom_call.1} parent=11 // pred_region
          _
        $region16: #{tpu_custom_call.1} parent=11 // pred_fallthru
          _
        // Predicated region
        $region17: #{tpu_custom_call.1} parent=11 // pred_check
          %p199 = pneg %p113
        $region18: #{tpu_custom_call.1} parent=11 // pred_check_branch
          %201 = sbr.rel (%p199) target = $region20
        $region19: #{tpu_custom_call.1} parent=11 // pred_region
          %s203 = ssub.s32 256, 256
          %204 = vsyncadd [#allocation5], %s203
          %s205 = sshll.u32 [#allocation6], 4
          %s206 = int_to_ptr.vmem [resolvable:$true] %s205
          %211 = dma.hbm_to_vmem [thread:$0]  %s3, 256, %s206, [#allocation5], 128, 128, 8
        $region20: #{tpu_custom_call.1} parent=11 // pred_fallthru
          _
        // Predicated region
        $region21: #{tpu_custom_call.1} parent=11 // pred_check
          %p212 = pneg %p134
        $region22: #{tpu_custom_call.1} parent=11 // pred_check_branch
          %214 = sbr.rel (%p212) target = $region24
        $region23: #{tpu_custom_call.1} parent=11 // pred_region
          _
        $region24: #{tpu_custom_call.1} parent=11 // pred_fallthru
          _
        // Predicated region
        $region25: #{tpu_custom_call.1} parent=11 // pred_check
          %p215 = pneg %p155
        $region26: #{tpu_custom_call.1} parent=11 // pred_check_branch
          %217 = sbr.rel (%p215) target = $region28
        $region27: #{tpu_custom_call.1} parent=11 // pred_region
          %s219 = ssub.s32 8192, 8192
          %220 = vsyncadd [#allocation8], %s219
          %s221 = sshll.u32 [#allocation7], 4
          %s222 = int_to_ptr.vmem [resolvable:$true] %s221
          %227 = dma.hbm_to_vmem [thread:$0]  %s5, 8192, %s222, [#allocation8], 1024, 1024, 64
        $region28: #{tpu_custom_call.1} parent=11 // pred_fallthru
          _
      $region12: #{tpu_custom_call.1} parent=5 // pred_fallthru
        _
      %p228 = scmp.lt.s32.totalorder %s19, 2
      // Predicated region
      $region29: #{tpu_custom_call.1} parent=5 // pred_check
        %p229 = pneg %p228
      $region30: #{tpu_custom_call.1} parent=5 // pred_check_branch
        %231 = sbr.rel (%p229) target = $region32
      $region31: #{tpu_custom_call.1} parent=5 // pred_region
        // Predicated region
        $region33: #{tpu_custom_call.1} parent=31 // pred_check
          %p232 = pneg %p39
        $region34: #{tpu_custom_call.1} parent=31 // pred_check_branch
          %234 = sbr.rel (%p232) target = $region36
        $region35: #{tpu_custom_call.1} parent=31 // pred_region
          %s235 = sand.u32 %s29, 1
          %s236 = scalar_lea.sflag [#allocation3], %s235
          %s237 = sand.u32 %s29, 1
          %s238 = smul.addr %s237, 16
          %s239 = scalar_lea.vmem [#allocation2], %s238
          %s241 = ssub.s32 256, 256
          %242 = vsyncadd %s236, %s241
          %s243 = smul.addr %s19, 2
          %s244 = smul.addr %s243, 128
          %s245 = scalar_lea.hbm %s0, %s244
          %s246 = sshll.u32 %s239, 4
          %s247 = int_to_ptr.vmem [resolvable:$true] %s246
          %252 = dma.hbm_to_vmem [thread:$0]  %s245, 256, %s247, %s236, 128, 128, 8
        $region36: #{tpu_custom_call.1} parent=31 // pred_fallthru
          _
        // Predicated region
        $region37: #{tpu_custom_call.1} parent=31 // pred_check
          %p253 = pneg %p65
        $region38: #{tpu_custom_call.1} parent=31 // pred_check_branch
          %255 = sbr.rel (%p253) target = $region40
        $region39: #{tpu_custom_call.1} parent=31 // pred_region
          %s256 = sand.u32 %s19, 1
          %s257 = scalar_lea.sflag [#allocation5], %s256
          %s258 = sand.u32 %s55, 1
          %s259 = smul.addr %s258, 32
          %s260 = scalar_lea.vmem [#allocation4], %s259
          %s262 = ssub.s32 512, 512
          %263 = vsyncadd %s257, %s262
          %s264 = smul.addr %s19, 4
          %s265 = smul.addr %s264, 128
          %s266 = scalar_lea.hbm %s1, %s265
          %s267 = sshll.u32 %s260, 4
          %s268 = int_to_ptr.vmem [resolvable:$true] %s267
          %273 = dma.hbm_to_vmem [thread:$0]  %s266, 512, %s268, %s257, 128, 128, 8
        $region40: #{tpu_custom_call.1} parent=31 // pred_fallthru
          _
      $region32: #{tpu_custom_call.1} parent=5 // pred_fallthru
        _
      %p274 = scmp.le.s32.totalorder 1, %s19
      %p275 = scmp.lt.s32.totalorder %s19, 3
      %p276 = pnand %p274, %p275
      %p277 = pneg %p276
      // Predicated region
      $region41: #{tpu_custom_call.1} parent=5 // pred_check
        _
      $region42: #{tpu_custom_call.1} parent=5 // pred_check_branch
        %279 = sbr.rel (%p276) target = $region44
      $region43: #{tpu_custom_call.1} parent=5 // pred_region
        %s280 = ssub.s32 %s19, 1
        %s281 = sand.u32 %s32, 1
        %s282 = scalar_lea.sflag [#allocation3], %s281
        %s283 = sand.u32 %s32, 1
        %s284 = smul.addr %s283, 16
        %s285 = scalar_lea.vmem [#allocation2], %s284
        // Predicated region
        $region45: #{tpu_custom_call.1} parent=43 // pred_check
          %p286 = pneg %p45
        $region46: #{tpu_custom_call.1} parent=43 // pred_check_branch
          %288 = sbr.rel (%p286) target = $region48
        $region47: #{tpu_custom_call.1} parent=43 // pred_region
          %289 = dma.done %s282, 256
        $region48: #{tpu_custom_call.1} parent=43 // pred_fallthru
          _
        %s290 = sand.u32 %s24, 1
        %s291 = scalar_lea.sflag [#allocation5], %s290
        %s292 = sand.u32 %s58, 1
        %s293 = smul.addr %s292, 32
        %s294 = scalar_lea.vmem [#allocation4], %s293
        // Predicated region
        $region49: #{tpu_custom_call.1} parent=43 // pred_check
          %p295 = pneg %p71
        $region50: #{tpu_custom_call.1} parent=43 // pred_check_branch
          %297 = sbr.rel (%p295) target = $region52
        $region51: #{tpu_custom_call.1} parent=43 // pred_region
          %298 = dma.done %s291, 512
        $region52: #{tpu_custom_call.1} parent=43 // pred_fallthru
          _
        // Predicated region
        $region53: #{tpu_custom_call.1} parent=43 // pred_check
          %p299 = pneg %p113
        $region54: #{tpu_custom_call.1} parent=43 // pred_check_branch
          %301 = sbr.rel (%p299) target = $region56
        $region55: #{tpu_custom_call.1} parent=43 // pred_region
          %302 = dma.done [#allocation5], 256
        $region56: #{tpu_custom_call.1} parent=43 // pred_fallthru
          _
        // Predicated region
        $region57: #{tpu_custom_call.1} parent=43 // pred_check
          %p303 = pneg %p155
        $region58: #{tpu_custom_call.1} parent=43 // pred_check_branch
          %305 = sbr.rel (%p303) target = $region60
        $region59: #{tpu_custom_call.1} parent=43 // pred_region
          %306 = dma.done [#allocation8], 8192
        $region60: #{tpu_custom_call.1} parent=43 // pred_fallthru
          _
        %s307 = sand.u32 %s32, 1
        %s308 = scalar_lea.sflag [#allocation3], %s307
        %s309 = sand.u32 %s32, 1
        %s310 = smul.addr %s309, 16
        %s311 = scalar_lea.vmem [#allocation2], %s310
        %p312 = pneg %p45
        %p313 = pneg %p42
        %s314 = sand.u32 %s24, 1
        %s315 = scalar_lea.sflag [#allocation5], %s314
        %s316 = sand.u32 %s58, 1
        %s317 = smul.addr %s316, 32
        %s318 = scalar_lea.vmem [#allocation4], %s317
        %p319 = pneg %p71
        %p320 = pneg %p68
        %p321 = pneg %p92
        %p322 = pneg %p89
        %p323 = pneg %p113
        %p324 = pneg %p110
        %p325 = pneg %p134
        %p326 = pneg %p131
        %p327 = pneg %p155
        %p328 = pneg %p152
        %p329 = pneg %p181
        %p330 = pneg %p178
        %p331 = scmp.lt.s32.totalorder %s24, 1
        %s332 = scalar_select %p331, %s24, 1
        %s333 = smul.addr %s332, 8
        %s334 = smul.addr %s333, 8
        %s335 = scalar_lea.vmem %s6, %s334
        %p336 = scmp.lt.s32.totalorder %s24, 1
        %s337 = scalar_select %p336, %s24, 1
        %s338 = smul.addr %s337, 8
        %s339 = smul.addr %s338, 8
        %s340 = scalar_lea.vmem %s6, %s339
        %v341 = vld [vmem:[%s2] sm:$0xff]
        %v342 = vld [vmem:[%s2 + $0x8] sm:$0xff]
        %v343 = vld [vmem:[%s285] sm:$0xff]
        %v344 = vld [vmem:[%s285 + $0x8] sm:$0xff]
        %v345 = vld [vmem:[#allocation6] sm:$0xff]
        %v346 = vld [vmem:[#allocation6 + $0x8] sm:$0xff]
        %v347 = vld [vmem:[%s294] sm:$0xff]
        %v348 = vld [vmem:[%s294 + $0x8] sm:$0xff]
        %v349 = vld [vmem:[%s294 + $0x10] sm:$0xff]
        %v350 = vld [vmem:[%s294 + $0x18] sm:$0xff]
        %vm351 = vcmask 261120
        %v353 = vsel %vm351, %v345, 0
        %v356 = vsel %vm351, %v346, 0
        %358 = vmatprep.subr.mxu0 0.0
        %359 = vmatpush1.msra.mxu0 %v347
        %360 = vmatprep.subr.mxu0 0.0
        %361 = vmatpush1.msra.mxu0 %v348
        %362 = vmatprep.subr.mxu0 0.0
        %363 = vmatpush1.msra.mxu0 %v349
        %364 = vmatprep.subr.mxu0 0.0
        %365 = vmatpush1.msra.mxu0 %v350
        %366 = vmatprep.subr.mxu0 0.0
        %367 = vmatpush1.msra.mxu0 0.0
        %368 = vmatprep.subr.mxu0 0.0
        %369 = vmatpush1.msra.mxu0 0.0
        %370 = vmatprep.subr.mxu0 0.0
        %371 = vmatpush1.msra.mxu0 0.0
        %372 = vmatprep.subr.mxu0 0.0
        %373 = vmatpush1.msra.mxu0 0.0
        %374 = vmatprep.subr.mxu0 0.0
        %375 = vmatpush1.msra.mxu0 0.0
        %376 = vmatprep.subr.mxu0 0.0
        %377 = vmatpush1.msra.mxu0 0.0
        %378 = vmatprep.subr.mxu0 0.0
        %379 = vmatpush1.msra.mxu0 0.0
        %380 = vmatprep.subr.mxu0 0.0
        %381 = vmatpush1.msra.mxu0 0.0
        %382 = vmatprep.subr.mxu0 0.0
        %383 = vmatpush1.msra.mxu0 0.0
        %384 = vmatprep.subr.mxu0 0.0
        %385 = vmatpush1.msra.mxu0 0.0
        %386 = vmatprep.subr.mxu0 0.0
        %387 = vmatpush1.msra.mxu0 0.0
        %388 = vmatprep.subr.mxu0 0.0
        %389 = vmatpush1.msra.mxu0 0.0
        %390 = vmatprep.subr.mxu0 0.0
        %391 = vmatpush1.msra.mxu0 0.0
        %392 = vmatprep.subr.mxu0 0.0
        %393 = vmatpush1.msra.mxu0 0.0
        %394 = vmatprep.subr.mxu0 0.0
        %395 = vmatpush1.msra.mxu0 0.0
        %396 = vmatprep.subr.mxu0 0.0
        %397 = vmatpush1.msra.mxu0 0.0
        %398 = vmatprep.subr.mxu0 0.0
        %399 = vmatpush1.msra.mxu0 0.0
        %400 = vmatprep.subr.mxu0 0.0
        %401 = vmatpush1.msra.mxu0 0.0
        %402 = vmatprep.subr.mxu0 0.0
        %403 = vmatpush1.msra.mxu0 0.0
        %404 = vmatprep.subr.mxu0 0.0
        %405 = vmatpush1.msra.mxu0 0.0
        %406 = vmatprep.subr.mxu0 0.0
        %407 = vmatpush1.msra.mxu0 0.0
        %408 = vmatprep.subr.mxu0 0.0
        %409 = vmatpush1.msra.mxu0 0.0
        %410 = vmatprep.subr.mxu0 0.0
        %411 = vmatpush1.msra.mxu0 0.0
        %412 = vmatprep.subr.mxu0 0.0
        %413 = vmatpush1.msra.mxu0 0.0
        %414 = vmatprep.subr.mxu0 0.0
        %415 = vmatpush1.msra.mxu0 0.0
        %416 = vmatprep.subr.mxu0 0.0
        %417 = vmatpush1.msra.mxu0 0.0
        %418 = vmatprep.subr.mxu0 0.0
        %419 = vmatpush1.msra.mxu0 0.0
        %420 = vmatprep.subr.mxu0 0.0
        %421 = vmatpush1.msra.mxu0 0.0
        %422 = vmatprep.mubr.f32.mxu0 0.0
        %423 = vmatmul.mubr.f32.gmra.mrb[0].mxu0 %v353
        %v424 = vpop.f32.mrb[0].mxu0
        %v425 = vadd.f32 0.0, %v424
        %v426 = vpop.f32.mrb[0].mxu0
        %427 = vmatprep.mubr.f32.mxu0 0.0
        %428 = vmatmul.mubr.f32.gmra.mrb[0].mxu0 %v356
        %v429 = vpop.f32.mrb[0].mxu0
        %v430 = vadd.f32 0.0, %v429
        %v431 = vpop.f32.mrb[0].mxu0
        %432 = vdwg.mxu0
        %vm433 = vcmask 130048
        %v435 = vsel %vm433, %v341, 0
        %v438 = vsel %vm433, %v342, 0
        %440 = vmatprep.subr.mxu0 0.0
        %441 = vmatpush1.msra.mxu0 %v343
        %442 = vmatprep.subr.mxu0 0.0
        %443 = vmatpush1.msra.mxu0 %v344
        %444 = vmatprep.subr.mxu0 0.0
        %445 = vmatpush1.msra.mxu0 0.0
        %446 = vmatprep.subr.mxu0 0.0
        %447 = vmatpush1.msra.mxu0 0.0
        %448 = vmatprep.subr.mxu0 0.0
        %449 = vmatpush1.msra.mxu0 0.0
        %450 = vmatprep.subr.mxu0 0.0
        %451 = vmatpush1.msra.mxu0 0.0
        %452 = vmatprep.subr.mxu0 0.0
        %453 = vmatpush1.msra.mxu0 0.0
        %454 = vmatprep.subr.mxu0 0.0
        %455 = vmatpush1.msra.mxu0 0.0
        %456 = vmatprep.subr.mxu0 0.0
        %457 = vmatpush1.msra.mxu0 0.0
        %458 = vmatprep.subr.mxu0 0.0
        %459 = vmatpush1.msra.mxu0 0.0
        %460 = vmatprep.subr.mxu0 0.0
        %461 = vmatpush1.msra.mxu0 0.0
        %462 = vmatprep.subr.mxu0 0.0
        %463 = vmatpush1.msra.mxu0 0.0
        %464 = vmatprep.subr.mxu0 0.0
        %465 = vmatpush1.msra.mxu0 0.0
        %466 = vmatprep.subr.mxu0 0.0
        %467 = vmatpush1.msra.mxu0 0.0
        %468 = vmatprep.subr.mxu0 0.0
        %469 = vmatpush1.msra.mxu0 0.0
        %470 = vmatprep.subr.mxu0 0.0
        %471 = vmatpush1.msra.mxu0 0.0
        %472 = vmatprep.subr.mxu0 0.0
        %473 = vmatpush1.msra.mxu0 0.0
        %474 = vmatprep.subr.mxu0 0.0
        %475 = vmatpush1.msra.mxu0 0.0
        %476 = vmatprep.subr.mxu0 0.0
        %477 = vmatpush1.msra.mxu0 0.0
        %478 = vmatprep.subr.mxu0 0.0
        %479 = vmatpush1.msra.mxu0 0.0
        %480 = vmatprep.subr.mxu0 0.0
        %481 = vmatpush1.msra.mxu0 0.0
        %482 = vmatprep.subr.mxu0 0.0
        %483 = vmatpush1.msra.mxu0 0.0
        %484 = vmatprep.subr.mxu0 0.0
        %485 = vmatpush1.msra.mxu0 0.0
        %486 = vmatprep.subr.mxu0 0.0
        %487 = vmatpush1.msra.mxu0 0.0
        %488 = vmatprep.subr.mxu0 0.0
        %489 = vmatpush1.msra.mxu0 0.0
        %490 = vmatprep.subr.mxu0 0.0
        %491 = vmatpush1.msra.mxu0 0.0
        %492 = vmatprep.subr.mxu0 0.0
        %493 = vmatpush1.msra.mxu0 0.0
        %494 = vmatprep.subr.mxu0 0.0
        %495 = vmatpush1.msra.mxu0 0.0
        %496 = vmatprep.subr.mxu0 0.0
        %497 = vmatpush1.msra.mxu0 0.0
        %498 = vmatprep.subr.mxu0 0.0
        %499 = vmatpush1.msra.mxu0 0.0
        %500 = vmatprep.subr.mxu0 0.0
        %501 = vmatpush1.msra.mxu0 0.0
        %502 = vmatprep.subr.mxu0 0.0
        %503 = vmatpush1.msra.mxu0 0.0
        %504 = vmatprep.mubr.f32.mxu0 0.0
        %505 = vmatmul.mubr.f32.gmra.mrb[0].mxu0 %v435
        %v506 = vpop.f32.mrb[0].mxu0
        %v507 = vadd.f32 %v425, %v506
        %v508 = vpop.f32.mrb[0].mxu0
        %509 = vmatprep.mubr.f32.mxu0 0.0
        %510 = vmatmul.mubr.f32.gmra.mrb[0].mxu0 %v438
        %v511 = vpop.f32.mrb[0].mxu0
        %v512 = vadd.f32 %v430, %v511
        %v513 = vpop.f32.mrb[0].mxu0
        %514 = vdwg.mxu0
        %v515 = vld [vmem:[%s4] sm:$0xff]
        %v516 = vld [vmem:[%s4 + $0x8] sm:$0xff]
        %518 = vset.pattern.permute.xlu0 0
        %519 = vperm.xlu0 %518, %v515
        %v520 = vpop.permute.xlu0 %519
        %523 = vset.pattern.permute.xlu0 0
        %524 = vperm.xlu0 %523, %v516
        %v525 = vpop.permute.xlu0 %524
        %v527 = vadd.f32 %v507, %v520
        %v528 = vadd.f32 %v512, %v525
        %v529 = vlaneseq
        %v530 = vshrl.u32 %v529, 7
        %v531 = vadd.s32 %v530, 8
        %v532 = vsub.s32 15, %v530
        %v533 = vsub.s32 15, %v531
        %534 = vset.pattern.permute.xlu0 1
        %535 = vperm.xlu0 %534, %v515
        %v536 = vpop.permute.xlu0 %535
        %538 = vset.pattern.permute.xlu0 1
        %539 = vperm.xlu0 %538, %v516
        %v540 = vpop.permute.xlu0 %539
        %v542 = vmul.f32 %v536, 0.0
        %v543 = vmul.f32 %v540, 0.0
        %v544 = vadd.f32 %v527, %v542
        %v545 = vadd.f32 %v528, %v543
        %vm548 = vcmp.lt.s32.totalorder %v544, 0
        %vm549 = vcmp.lt.s32.totalorder %v545, 0
        %v550 = vsel %vm548, %v530, %v532
        %v551 = vsel %vm549, %v531, %v533
        %v552 = vand.u32 %v544, 4294967280
        %v553 = vand.u32 %v545, 4294967280
        %v554 = vor.u32 %v552, %v550
        %v555 = vor.u32 %v553, %v551
        %vm558 = vcmask 523264
        %v559 = vsel %vm558, %v554, -inf
        %v560 = vsel %vm558, %v555, -inf
        %v561 = vmax.f32 %v559, %v560
        %v562 = vrot.slane %v561, 4
        %v563 = vmax.f32 %v561, %v562
        %v564 = vrot.slane %v563, 2
        %v565 = vmax.f32 %v563, %v564
        %v566 = vrot.slane %v565, 1
        %v567 = vmax.f32 %v565, %v566
        %v569 = vand.u32 %v567, 15
        %vm570 = vcmp.lt.s32.totalorder %v567, 0
        %v571 = vsub.s32 15, %v569
        %v572 = vsel %vm570, %v569, %v571
        %v573 = vcvt.s32.f32 %v572
        %v574 = vsub.f32 %v544, %v567
        %v575 = vsub.f32 %v545, %v567
        %v576 = vmul.f32 %v574, 1.442695
        %v577 = vpow.pop %v576
        %v578 = vmul.f32 %v575, 1.442695
        %v579 = vpow.pop %v578
        %v580 = vsel %vm558, %v577, 0.0
        %v581 = vsel %vm558, %v579, 0.0
        %v582 = vadd.f32 %v580, %v581
        %v583 = vrot.slane %v582, 4
        %v584 = vadd.f32 %v582, %v583
        %v585 = vrot.slane %v584, 2
        %v586 = vadd.f32 %v584, %v585
        %v587 = vrot.slane %v586, 1
        %v588 = vadd.f32 %v586, %v587
        %589 = vset.pattern.permute.xlu0 2
        %590 = vperm.xlu0 %589, %v515
        %v591 = vpop.permute.xlu0 %590
        %593 = vset.pattern.permute.xlu0 2
        %594 = vperm.xlu0 %593, %v516
        %v595 = vpop.permute.xlu0 %594
        %v597 = vmul.f32 %v577, %v591
        %v598 = vmul.f32 %v579, %v595
        %v599 = vsel %vm558, %v597, 0.0
        %v600 = vsel %vm558, %v598, 0.0
        %v601 = vadd.f32 %v599, %v600
        %v602 = vrot.slane %v601, 4
        %v603 = vadd.f32 %v601, %v602
        %v604 = vrot.slane %v603, 2
        %v605 = vadd.f32 %v603, %v604
        %v606 = vrot.slane %v605, 1
        %v607 = vadd.f32 %v605, %v606
        %v608 = vmul.f32 %v577, %v574
        %v609 = vmul.f32 %v579, %v575
        %v610 = vsel %vm558, %v608, 0.0
        %v611 = vsel %vm558, %v609, 0.0
        %v612 = vadd.f32 %v610, %v611
        %v613 = vrot.slane %v612, 4
        %v614 = vadd.f32 %v612, %v613
        %v615 = vrot.slane %v614, 2
        %v616 = vadd.f32 %v614, %v615
        %v617 = vrot.slane %v616, 1
        %v618 = vadd.f32 %v616, %v617
        %v619 = vrcp.pop %v588
        %v620 = vmul.f32 1.0, %v619
        %v621 = vmul.f32 %v607, %v620
        %v622 = vmul.f32 %v573, 0.66
        %v623 = vadd.f32 %v622, 0.1
        %v624 = vlog2.pop %v588
        %v625 = vmul.f32 %v624, 0.6931472
        %v626 = vmul.f32 %v618, %v620
        %v627 = vsub.f32 %v625, %v626
        %v628 = vmul.f32 %v536, %v621
        %v629 = vmul.f32 %v540, %v621
        %v630 = vadd.f32 %v527, %v628
        %v631 = vadd.f32 %v528, %v629
        %vm634 = vcmp.lt.s32.totalorder %v630, 0
        %vm635 = vcmp.lt.s32.totalorder %v631, 0
        %v636 = vsel %vm634, %v530, %v532
        %v637 = vsel %vm635, %v531, %v533
        %v638 = vand.u32 %v630, 4294967280
        %v639 = vand.u32 %v631, 4294967280
        %v640 = vor.u32 %v638, %v636
        %v641 = vor.u32 %v639, %v637
        %v644 = vsel %vm558, %v640, -inf
        %v645 = vsel %vm558, %v641, -inf
        %v646 = vmax.f32 %v644, %v645
        %v647 = vrot.slane %v646, 4
        %v648 = vmax.f32 %v646, %v647
        %v649 = vrot.slane %v648, 2
        %v650 = vmax.f32 %v648, %v649
        %v651 = vrot.slane %v650, 1
        %v652 = vmax.f32 %v650, %v651
        %v654 = vand.u32 %v652, 15
        %vm655 = vcmp.lt.s32.totalorder %v652, 0
        %v656 = vsub.s32 15, %v654
        %v657 = vsel %vm655, %v654, %v656
        %v658 = vcvt.s32.f32 %v657
        %v659 = vsub.f32 %v630, %v652
        %v660 = vsub.f32 %v631, %v652
        %v661 = vmul.f32 %v659, 1.442695
        %v662 = vpow.pop %v661
        %v663 = vmul.f32 %v660, 1.442695
        %v664 = vpow.pop %v663
        %v665 = vsel %vm558, %v662, 0.0
        %v666 = vsel %vm558, %v664, 0.0
        %v667 = vadd.f32 %v665, %v666
        %v668 = vrot.slane %v667, 4
        %v669 = vadd.f32 %v667, %v668
        %v670 = vrot.slane %v669, 2
        %v671 = vadd.f32 %v669, %v670
        %v672 = vrot.slane %v671, 1
        %v673 = vadd.f32 %v671, %v672
        %v674 = vmul.f32 %v662, %v591
        %v675 = vmul.f32 %v664, %v595
        %v676 = vsel %vm558, %v674, 0.0
        %v677 = vsel %vm558, %v675, 0.0
        %v678 = vadd.f32 %v676, %v677
        %v679 = vrot.slane %v678, 4
        %v680 = vadd.f32 %v678, %v679
        %v681 = vrot.slane %v680, 2
        %v682 = vadd.f32 %v680, %v681
        %v683 = vrot.slane %v682, 1
        %v684 = vadd.f32 %v682, %v683
        %v685 = vmul.f32 %v662, %v659
        %v686 = vmul.f32 %v664, %v660
        %v687 = vsel %vm558, %v685, 0.0
        %v688 = vsel %vm558, %v686, 0.0
        %v689 = vadd.f32 %v687, %v688
        %v690 = vrot.slane %v689, 4
        %v691 = vadd.f32 %v689, %v690
        %v692 = vrot.slane %v691, 2
        %v693 = vadd.f32 %v691, %v692
        %v694 = vrot.slane %v693, 1
        %v695 = vadd.f32 %v693, %v694
        %v696 = vrcp.pop %v673
        %v697 = vmul.f32 1.0, %v696
        %v698 = vmul.f32 %v684, %v697
        %v699 = vmul.f32 %v658, 0.66
        %v700 = vadd.f32 %v699, 0.1
        %v701 = vlog2.pop %v673
        %v702 = vmul.f32 %v701, 0.6931472
        %v703 = vmul.f32 %v695, %v697
        %v704 = vsub.f32 %v702, %v703
        %vm705 = vcmask 1040384
        %v706 = vsel %vm705, %v621, %v698
        %vm707 = vcmask 1041408
        %v708 = vsel %vm707, %v706, %v623
        %vm709 = vcmask 1042432
        %v710 = vsel %vm709, %v708, %v700
        %vm711 = vcmask 1043456
        %v712 = vsel %vm711, %v710, %v627
        %vm713 = vcmask 1044480
        %v714 = vsel %vm713, %v712, %v704
        %v715 = vld [vmem:[#allocation7] sm:$0xff]
        %v716 = vld [vmem:[#allocation7 + $0x8] sm:$0xff]
        %v717 = vld [vmem:[#allocation7 + $0x10] sm:$0xff]
        %v718 = vld [vmem:[#allocation7 + $0x18] sm:$0xff]
        %v719 = vld [vmem:[#allocation7 + $0x20] sm:$0xff]
        %v720 = vld [vmem:[#allocation7 + $0x28] sm:$0xff]
        %v721 = vld [vmem:[#allocation7 + $0x30] sm:$0xff]
        %v722 = vld [vmem:[#allocation7 + $0x38] sm:$0xff]
        %v723 = vld [vmem:[#allocation7 + $0x40] sm:$0xff]
        %v724 = vld [vmem:[#allocation7 + $0x48] sm:$0xff]
        %v725 = vld [vmem:[#allocation7 + $0x50] sm:$0xff]
        %v726 = vld [vmem:[#allocation7 + $0x58] sm:$0xff]
        %v727 = vld [vmem:[#allocation7 + $0x60] sm:$0xff]
        %v728 = vld [vmem:[#allocation7 + $0x68] sm:$0xff]
        %v729 = vld [vmem:[#allocation7 + $0x70] sm:$0xff]
        %v730 = vld [vmem:[#allocation7 + $0x78] sm:$0xff]
        %v731 = vld [vmem:[#allocation7 + $0x80] sm:$0xff]
        %v732 = vld [vmem:[#allocation7 + $0x88] sm:$0xff]
        %v733 = vld [vmem:[#allocation7 + $0x90] sm:$0xff]
        %v734 = vld [vmem:[#allocation7 + $0x98] sm:$0xff]
        %v735 = vld [vmem:[#allocation7 + $0xa0] sm:$0xff]
        %v736 = vld [vmem:[#allocation7 + $0xa8] sm:$0xff]
        %v737 = vld [vmem:[#allocation7 + $0xb0] sm:$0xff]
        %v738 = vld [vmem:[#allocation7 + $0xb8] sm:$0xff]
        %v739 = vld [vmem:[#allocation7 + $0xc0] sm:$0xff]
        %v740 = vld [vmem:[#allocation7 + $0xc8] sm:$0xff]
        %v741 = vld [vmem:[#allocation7 + $0xd0] sm:$0xff]
        %v742 = vld [vmem:[#allocation7 + $0xd8] sm:$0xff]
        %v743 = vld [vmem:[#allocation7 + $0xe0] sm:$0xff]
        %v744 = vld [vmem:[#allocation7 + $0xe8] sm:$0xff]
        %v745 = vld [vmem:[#allocation7 + $0xf0] sm:$0xff]
        %v746 = vld [vmem:[#allocation7 + $0xf8] sm:$0xff]
        %v747 = vld [vmem:[#allocation7 + $0x100] sm:$0xff]
        %v748 = vld [vmem:[#allocation7 + $0x108] sm:$0xff]
        %v749 = vld [vmem:[#allocation7 + $0x110] sm:$0xff]
        %v750 = vld [vmem:[#allocation7 + $0x118] sm:$0xff]
        %v751 = vld [vmem:[#allocation7 + $0x120] sm:$0xff]
        %v752 = vld [vmem:[#allocation7 + $0x128] sm:$0xff]
        %v753 = vld [vmem:[#allocation7 + $0x130] sm:$0xff]
        %v754 = vld [vmem:[#allocation7 + $0x138] sm:$0xff]
        %v755 = vld [vmem:[#allocation7 + $0x140] sm:$0xff]
        %v756 = vld [vmem:[#allocation7 + $0x148] sm:$0xff]
        %v757 = vld [vmem:[#allocation7 + $0x150] sm:$0xff]
        %v758 = vld [vmem:[#allocation7 + $0x158] sm:$0xff]
        %v759 = vld [vmem:[#allocation7 + $0x160] sm:$0xff]
        %v760 = vld [vmem:[#allocation7 + $0x168] sm:$0xff]
        %v761 = vld [vmem:[#allocation7 + $0x170] sm:$0xff]
        %v762 = vld [vmem:[#allocation7 + $0x178] sm:$0xff]
        %v763 = vld [vmem:[#allocation7 + $0x180] sm:$0xff]
        %v764 = vld [vmem:[#allocation7 + $0x188] sm:$0xff]
        %v765 = vld [vmem:[#allocation7 + $0x190] sm:$0xff]
        %v766 = vld [vmem:[#allocation7 + $0x198] sm:$0xff]
        %v767 = vld [vmem:[#allocation7 + $0x1a0] sm:$0xff]
        %v768 = vld [vmem:[#allocation7 + $0x1a8] sm:$0xff]
        %v769 = vld [vmem:[#allocation7 + $0x1b0] sm:$0xff]
        %v770 = vld [vmem:[#allocation7 + $0x1b8] sm:$0xff]
        %v771 = vld [vmem:[#allocation7 + $0x1c0] sm:$0xff]
        %v772 = vld [vmem:[#allocation7 + $0x1c8] sm:$0xff]
        %v773 = vld [vmem:[#allocation7 + $0x1d0] sm:$0xff]
        %v774 = vld [vmem:[#allocation7 + $0x1d8] sm:$0xff]
        %v775 = vld [vmem:[#allocation7 + $0x1e0] sm:$0xff]
        %v776 = vld [vmem:[#allocation7 + $0x1e8] sm:$0xff]
        %v777 = vld [vmem:[#allocation7 + $0x1f0] sm:$0xff]
        %v778 = vld [vmem:[#allocation7 + $0x1f8] sm:$0xff]
        %v780 = vsel %vm558, %v714, 0
        %v782 = vand.u32 %v716, 4294901760
        %783 = vmatprep.subr.mxu0 %v782
        %v784 = vand.u32 %v715, 4294901760
        %785 = vmatpush1.msra.mxu0 %v784
        %v786 = vand.u32 %v724, 4294901760
        %787 = vmatprep.subr.mxu0 %v786
        %v788 = vand.u32 %v723, 4294901760
        %789 = vmatpush1.msra.mxu0 %v788
        %v790 = vand.u32 %v732, 4294901760
        %791 = vmatprep.subr.mxu0 %v790
        %v792 = vand.u32 %v731, 4294901760
        %793 = vmatpush1.msra.mxu0 %v792
        %v794 = vand.u32 %v740, 4294901760
        %795 = vmatprep.subr.mxu0 %v794
        %v796 = vand.u32 %v739, 4294901760
        %797 = vmatpush1.msra.mxu0 %v796
        %v798 = vand.u32 %v748, 4294901760
        %799 = vmatprep.subr.mxu0 %v798
        %v800 = vand.u32 %v747, 4294901760
        %801 = vmatpush1.msra.mxu0 %v800
        %v802 = vand.u32 %v756, 4294901760
        %803 = vmatprep.subr.mxu0 %v802
        %v804 = vand.u32 %v755, 4294901760
        %805 = vmatpush1.msra.mxu0 %v804
        %v806 = vand.u32 %v764, 4294901760
        %807 = vmatprep.subr.mxu0 %v806
        %v808 = vand.u32 %v763, 4294901760
        %809 = vmatpush1.msra.mxu0 %v808
        %v810 = vand.u32 %v772, 4294901760
        %811 = vmatprep.subr.mxu0 %v810
        %v812 = vand.u32 %v771, 4294901760
        %813 = vmatpush1.msra.mxu0 %v812
        %814 = vmatprep.subr.mxu0 0.0
        %815 = vmatpush1.msra.mxu0 0.0
        %816 = vmatprep.subr.mxu0 0.0
        %817 = vmatpush1.msra.mxu0 0.0
        %818 = vmatprep.subr.mxu0 0.0
        %819 = vmatpush1.msra.mxu0 0.0
        %820 = vmatprep.subr.mxu0 0.0
        %821 = vmatpush1.msra.mxu0 0.0
        %822 = vmatprep.subr.mxu0 0.0
        %823 = vmatpush1.msra.mxu0 0.0
        %824 = vmatprep.subr.mxu0 0.0
        %825 = vmatpush1.msra.mxu0 0.0
        %826 = vmatprep.subr.mxu0 0.0
        %827 = vmatpush1.msra.mxu0 0.0
        %828 = vmatprep.subr.mxu0 0.0
        %829 = vmatpush1.msra.mxu0 0.0
        %830 = vmatprep.subr.mxu0 0.0
        %831 = vmatpush1.msra.mxu0 0.0
        %832 = vmatprep.subr.mxu0 0.0
        %833 = vmatpush1.msra.mxu0 0.0
        %834 = vmatprep.subr.mxu0 0.0
        %835 = vmatpush1.msra.mxu0 0.0
        %836 = vmatprep.subr.mxu0 0.0
        %837 = vmatpush1.msra.mxu0 0.0
        %838 = vmatprep.subr.mxu0 0.0
        %839 = vmatpush1.msra.mxu0 0.0
        %840 = vmatprep.subr.mxu0 0.0
        %841 = vmatpush1.msra.mxu0 0.0
        %842 = vmatprep.subr.mxu0 0.0
        %843 = vmatpush1.msra.mxu0 0.0
        %844 = vmatprep.subr.mxu0 0.0
        %845 = vmatpush1.msra.mxu0 0.0
        %846 = vmatprep.subr.mxu0 0.0
        %847 = vmatpush1.msra.mxu0 0.0
        %848 = vmatprep.subr.mxu0 0.0
        %849 = vmatpush1.msra.mxu0 0.0
        %850 = vmatprep.subr.mxu0 0.0
        %851 = vmatpush1.msra.mxu0 0.0
        %852 = vmatprep.subr.mxu0 0.0
        %853 = vmatpush1.msra.mxu0 0.0
        %854 = vmatprep.subr.mxu0 0.0
        %855 = vmatpush1.msra.mxu0 0.0
        %856 = vmatprep.subr.mxu0 0.0
        %857 = vmatpush1.msra.mxu0 0.0
        %858 = vmatprep.subr.mxu0 0.0
        %859 = vmatpush1.msra.mxu0 0.0
        %860 = vmatprep.subr.mxu0 0.0
        %861 = vmatpush1.msra.mxu0 0.0
        %862 = vmatprep.mubr.f32.mxu0 0.0
        %v863 = vand.u32 %v780, 4294901760
        %v864 = vsub.f32 %v780, %v863
        %v865 = vand.u32 %v864, 4294901760
        %v866 = vsub.f32 %v864, %v865
        %v867 = vand.u32 %v866, 4294901760
        %868 = vmatmul.mubr.f32.gmra.mrb[0].mxu0 %v867
        %v869 = vpop.f32.mrb[0].mxu0
        %v870 = vadd.f32 0.0, %v869
        %v871 = vpop.f32.mrb[0].mxu0
        %v872 = vadd.f32 0.0, %v871
        %873 = vdwg.mxu0
        %v874 = vand.u32 %v716, 4294901760
        %v875 = vsub.f32 %v716, %v874
        %v876 = vand.u32 %v875, 4294901760
        %v877 = vsub.f32 %v875, %v876
        %v878 = vand.u32 %v877, 4294901760
        %879 = vmatprep.subr.mxu0 %v878
        %v880 = vand.u32 %v715, 4294901760
        %v881 = vsub.f32 %v715, %v880
        %v882 = vand.u32 %v881, 4294901760
        %v883 = vsub.f32 %v881, %v882
        %v884 = vand.u32 %v883, 4294901760
        %885 = vmatpush1.msra.mxu0 %v884
        %v886 = vand.u32 %v724, 4294901760
        %v887 = vsub.f32 %v724, %v886
        %v888 = vand.u32 %v887, 4294901760
        %v889 = vsub.f32 %v887, %v888
        %v890 = vand.u32 %v889, 4294901760
        %891 = vmatprep.subr.mxu0 %v890
        %v892 = vand.u32 %v723, 4294901760
        %v893 = vsub.f32 %v723, %v892
        %v894 = vand.u32 %v893, 4294901760
        %v895 = vsub.f32 %v893, %v894
        %v896 = vand.u32 %v895, 4294901760
        %897 = vmatpush1.msra.mxu0 %v896
        %v898 = vand.u32 %v732, 4294901760
        %v899 = vsub.f32 %v732, %v898
        %v900 = vand.u32 %v899, 4294901760
        %v901 = vsub.f32 %v899, %v900
        %v902 = vand.u32 %v901, 4294901760
        %903 = vmatprep.subr.mxu0 %v902
        %v904 = vand.u32 %v731, 4294901760
        %v905 = vsub.f32 %v731, %v904
        %v906 = vand.u32 %v905, 4294901760
        %v907 = vsub.f32 %v905, %v906
        %v908 = vand.u32 %v907, 4294901760
        %909 = vmatpush1.msra.mxu0 %v908
        %v910 = vand.u32 %v740, 4294901760
        %v911 = vsub.f32 %v740, %v910
        %v912 = vand.u32 %v911, 4294901760
        %v913 = vsub.f32 %v911, %v912
        %v914 = vand.u32 %v913, 4294901760
        %915 = vmatprep.subr.mxu0 %v914
        %v916 = vand.u32 %v739, 4294901760
        %v917 = vsub.f32 %v739, %v916
        %v918 = vand.u32 %v917, 4294901760
        %v919 = vsub.f32 %v917, %v918
        %v920 = vand.u32 %v919, 4294901760
        %921 = vmatpush1.msra.mxu0 %v920
        %v922 = vand.u32 %v748, 4294901760
        %v923 = vsub.f32 %v748, %v922
        %v924 = vand.u32 %v923, 4294901760
        %v925 = vsub.f32 %v923, %v924
        %v926 = vand.u32 %v925, 4294901760
        %927 = vmatprep.subr.mxu0 %v926
        %v928 = vand.u32 %v747, 4294901760
        %v929 = vsub.f32 %v747, %v928
        %v930 = vand.u32 %v929, 4294901760
        %v931 = vsub.f32 %v929, %v930
        %v932 = vand.u32 %v931, 4294901760
        %933 = vmatpush1.msra.mxu0 %v932
        %v934 = vand.u32 %v756, 4294901760
        %v935 = vsub.f32 %v756, %v934
        %v936 = vand.u32 %v935, 4294901760
        %v937 = vsub.f32 %v935, %v936
        %v938 = vand.u32 %v937, 4294901760
        %939 = vmatprep.subr.mxu0 %v938
        %v940 = vand.u32 %v755, 4294901760
        %v941 = vsub.f32 %v755, %v940
        %v942 = vand.u32 %v941, 4294901760
        %v943 = vsub.f32 %v941, %v942
        %v944 = vand.u32 %v943, 4294901760
        %945 = vmatpush1.msra.mxu0 %v944
        %v946 = vand.u32 %v764, 4294901760
        %v947 = vsub.f32 %v764, %v946
        %v948 = vand.u32 %v947, 4294901760
        %v949 = vsub.f32 %v947, %v948
        %v950 = vand.u32 %v949, 4294901760
        %951 = vmatprep.subr.mxu0 %v950
        %v952 = vand.u32 %v763, 4294901760
        %v953 = vsub.f32 %v763, %v952
        %v954 = vand.u32 %v953, 4294901760
        %v955 = vsub.f32 %v953, %v954
        %v956 = vand.u32 %v955, 4294901760
        %957 = vmatpush1.msra.mxu0 %v956
        %v958 = vand.u32 %v772, 4294901760
        %v959 = vsub.f32 %v772, %v958
        %v960 = vand.u32 %v959, 4294901760
        %v961 = vsub.f32 %v959, %v960
        %v962 = vand.u32 %v961, 4294901760
        %963 = vmatprep.subr.mxu0 %v962
        %v964 = vand.u32 %v771, 4294901760
        %v965 = vsub.f32 %v771, %v964
        %v966 = vand.u32 %v965, 4294901760
        %v967 = vsub.f32 %v965, %v966
        %v968 = vand.u32 %v967, 4294901760
        %969 = vmatpush1.msra.mxu0 %v968
        %970 = vmatprep.subr.mxu0 0.0
        %971 = vmatpush1.msra.mxu0 0.0
        %972 = vmatprep.subr.mxu0 0.0
        %973 = vmatpush1.msra.mxu0 0.0
        %974 = vmatprep.subr.mxu0 0.0
        %975 = vmatpush1.msra.mxu0 0.0
        %976 = vmatprep.subr.mxu0 0.0
        %977 = vmatpush1.msra.mxu0 0.0
        %978 = vmatprep.subr.mxu0 0.0
        %979 = vmatpush1.msra.mxu0 0.0
        %980 = vmatprep.subr.mxu0 0.0
        %981 = vmatpush1.msra.mxu0 0.0
        %982 = vmatprep.subr.mxu0 0.0
        %983 = vmatpush1.msra.mxu0 0.0
        %984 = vmatprep.subr.mxu0 0.0
        %985 = vmatpush1.msra.mxu0 0.0
        %986 = vmatprep.subr.mxu0 0.0
        %987 = vmatpush1.msra.mxu0 0.0
        %988 = vmatprep.subr.mxu0 0.0
        %989 = vmatpush1.msra.mxu0 0.0
        %990 = vmatprep.subr.mxu0 0.0
        %991 = vmatpush1.msra.mxu0 0.0
        %992 = vmatprep.subr.mxu0 0.0
        %993 = vmatpush1.msra.mxu0 0.0
        %994 = vmatprep.subr.mxu0 0.0
        %995 = vmatpush1.msra.mxu0 0.0
        %996 = vmatprep.subr.mxu0 0.0
        %997 = vmatpush1.msra.mxu0 0.0
        %998 = vmatprep.subr.mxu0 0.0
        %999 = vmatpush1.msra.mxu0 0.0
        %1000 = vmatprep.subr.mxu0 0.0
        %1001 = vmatpush1.msra.mxu0 0.0
        %1002 = vmatprep.subr.mxu0 0.0
        %1003 = vmatpush1.msra.mxu0 0.0
        %1004 = vmatprep.subr.mxu0 0.0
        %1005 = vmatpush1.msra.mxu0 0.0
        %1006 = vmatprep.subr.mxu0 0.0
        %1007 = vmatpush1.msra.mxu0 0.0
        %1008 = vmatprep.subr.mxu0 0.0
        %1009 = vmatpush1.msra.mxu0 0.0
        %1010 = vmatprep.subr.mxu0 0.0
        %1011 = vmatpush1.msra.mxu0 0.0
        %1012 = vmatprep.subr.mxu0 0.0
        %1013 = vmatpush1.msra.mxu0 0.0
        %1014 = vmatprep.subr.mxu0 0.0
        %1015 = vmatpush1.msra.mxu0 0.0
        %1016 = vmatprep.subr.mxu0 0.0
        %1017 = vmatpush1.msra.mxu0 0.0
        %1018 = vmatprep.mubr.f32.mxu0 0.0
        %v1019 = vand.u32 %v780, 4294901760
        %1020 = vmatmul.mubr.f32.gmra.mrb[0].mxu0 %v1019
        %v1021 = vpop.f32.mrb[0].mxu0
        %v1022 = vadd.f32 %v870, %v1021
        %v1023 = vpop.f32.mrb[0].mxu0
        %v1024 = vadd.f32 %v872, %v1023
        %1025 = vdwg.mxu0
        %v1026 = vand.u32 %v716, 4294901760
        %v1027 = vsub.f32 %v716, %v1026
        %1028 = vmatprep.subr.mxu0 %v1027
        %v1029 = vand.u32 %v715, 4294901760
        %v1030 = vsub.f32 %v715, %v1029
        %1031 = vmatpush1.msra.mxu0 %v1030
        %v1032 = vand.u32 %v724, 4294901760
        %v1033 = vsub.f32 %v724, %v1032
        %1034 = vmatprep.subr.mxu0 %v1033
        %v1035 = vand.u32 %v723, 4294901760
        %v1036 = vsub.f32 %v723, %v1035
        %1037 = vmatpush1.msra.mxu0 %v1036
        %v1038 = vand.u32 %v732, 4294901760
        %v1039 = vsub.f32 %v732, %v1038
        %1040 = vmatprep.subr.mxu0 %v1039
        %v1041 = vand.u32 %v731, 4294901760
        %v1042 = vsub.f32 %v731, %v1041
        %1043 = vmatpush1.msra.mxu0 %v1042
        %v1044 = vand.u32 %v740, 4294901760
        %v1045 = vsub.f32 %v740, %v1044
        %1046 = vmatprep.subr.mxu0 %v1045
        %v1047 = vand.u32 %v739, 4294901760
        %v1048 = vsub.f32 %v739, %v1047
        %1049 = vmatpush1.msra.mxu0 %v1048
        %v1050 = vand.u32 %v748, 4294901760
        %v1051 = vsub.f32 %v748, %v1050
        %1052 = vmatprep.subr.mxu0 %v1051
        %v1053 = vand.u32 %v747, 4294901760
        %v1054 = vsub.f32 %v747, %v1053
        %1055 = vmatpush1.msra.mxu0 %v1054
        %v1056 = vand.u32 %v756, 4294901760
        %v1057 = vsub.f32 %v756, %v1056
        %1058 = vmatprep.subr.mxu0 %v1057
        %v1059 = vand.u32 %v755, 4294901760
        %v1060 = vsub.f32 %v755, %v1059
        %1061 = vmatpush1.msra.mxu0 %v1060
        %v1062 = vand.u32 %v764, 4294901760
        %v1063 = vsub.f32 %v764, %v1062
        %1064 = vmatprep.subr.mxu0 %v1063
        %v1065 = vand.u32 %v763, 4294901760
        %v1066 = vsub.f32 %v763, %v1065
        %1067 = vmatpush1.msra.mxu0 %v1066
        %v1068 = vand.u32 %v772, 4294901760
        %v1069 = vsub.f32 %v772, %v1068
        %1070 = vmatprep.subr.mxu0 %v1069
        %v1071 = vand.u32 %v771, 4294901760
        %v1072 = vsub.f32 %v771, %v1071
        %1073 = vmatpush1.msra.mxu0 %v1072
        %1074 = vmatprep.subr.mxu0 0.0
        %1075 = vmatpush1.msra.mxu0 0.0
        %1076 = vmatprep.subr.mxu0 0.0
        %1077 = vmatpush1.msra.mxu0 0.0
        %1078 = vmatprep.subr.mxu0 0.0
        %1079 = vmatpush1.msra.mxu0 0.0
        %1080 = vmatprep.subr.mxu0 0.0
        %1081 = vmatpush1.msra.mxu0 0.0
        %1082 = vmatprep.subr.mxu0 0.0
        %1083 = vmatpush1.msra.mxu0 0.0
        %1084 = vmatprep.subr.mxu0 0.0
        %1085 = vmatpush1.msra.mxu0 0.0
        %1086 = vmatprep.subr.mxu0 0.0
        %1087 = vmatpush1.msra.mxu0 0.0
        %1088 = vmatprep.subr.mxu0 0.0
        %1089 = vmatpush1.msra.mxu0 0.0
        %1090 = vmatprep.subr.mxu0 0.0
        %1091 = vmatpush1.msra.mxu0 0.0
        %1092 = vmatprep.subr.mxu0 0.0
        %1093 = vmatpush1.msra.mxu0 0.0
        %1094 = vmatprep.subr.mxu0 0.0
        %1095 = vmatpush1.msra.mxu0 0.0
        %1096 = vmatprep.subr.mxu0 0.0
        %1097 = vmatpush1.msra.mxu0 0.0
        %1098 = vmatprep.subr.mxu0 0.0
        %1099 = vmatpush1.msra.mxu0 0.0
        %1100 = vmatprep.subr.mxu0 0.0
        %1101 = vmatpush1.msra.mxu0 0.0
        %1102 = vmatprep.subr.mxu0 0.0
        %1103 = vmatpush1.msra.mxu0 0.0
        %1104 = vmatprep.subr.mxu0 0.0
        %1105 = vmatpush1.msra.mxu0 0.0
        %1106 = vmatprep.subr.mxu0 0.0
        %1107 = vmatpush1.msra.mxu0 0.0
        %1108 = vmatprep.subr.mxu0 0.0
        %1109 = vmatpush1.msra.mxu0 0.0
        %1110 = vmatprep.subr.mxu0 0.0
        %1111 = vmatpush1.msra.mxu0 0.0
        %1112 = vmatprep.subr.mxu0 0.0
        %1113 = vmatpush1.msra.mxu0 0.0
        %1114 = vmatprep.subr.mxu0 0.0
        %1115 = vmatpush1.msra.mxu0 0.0
        %1116 = vmatprep.subr.mxu0 0.0
        %1117 = vmatpush1.msra.mxu0 0.0
        %1118 = vmatprep.subr.mxu0 0.0
        %1119 = vmatpush1.msra.mxu0 0.0
        %1120 = vmatprep.subr.mxu0 0.0
        %1121 = vmatpush1.msra.mxu0 0.0
        %1122 = vmatprep.mubr.f32.mxu0 0.0
        %v1123 = vand.u32 %v780, 4294901760
        %v1124 = vsub.f32 %v780, %v1123
        %1125 = vmatmul.mubr.f32.gmra.mrb[0].mxu0 %v1124
        %v1126 = vpop.f32.mrb[0].mxu0
        %v1127 = vadd.f32 %v1022, %v1126
        %v1128 = vpop.f32.mrb[0].mxu0
        %v1129 = vadd.f32 %v1024, %v1128
        %1130 = vdwg.mxu0
        %v1131 = vand.u32 %v716, 4294901760
        %1132 = vmatprep.subr.mxu0 %v1131
        %v1133 = vand.u32 %v715, 4294901760
        %1134 = vmatpush1.msra.mxu0 %v1133
        %v1135 = vand.u32 %v724, 4294901760
        %1136 = vmatprep.subr.mxu0 %v1135
        %v1137 = vand.u32 %v723, 4294901760
        %1138 = vmatpush1.msra.mxu0 %v1137
        %v1139 = vand.u32 %v732, 4294901760
        %1140 = vmatprep.subr.mxu0 %v1139
        %v1141 = vand.u32 %v731, 4294901760
        %1142 = vmatpush1.msra.mxu0 %v1141
        %v1143 = vand.u32 %v740, 4294901760
        %1144 = vmatprep.subr.mxu0 %v1143
        %v1145 = vand.u32 %v739, 4294901760
        %1146 = vmatpush1.msra.mxu0 %v1145
        %v1147 = vand.u32 %v748, 4294901760
        %1148 = vmatprep.subr.mxu0 %v1147
        %v1149 = vand.u32 %v747, 4294901760
        %1150 = vmatpush1.msra.mxu0 %v1149
        %v1151 = vand.u32 %v756, 4294901760
        %1152 = vmatprep.subr.mxu0 %v1151
        %v1153 = vand.u32 %v755, 4294901760
        %1154 = vmatpush1.msra.mxu0 %v1153
        %v1155 = vand.u32 %v764, 4294901760
        %1156 = vmatprep.subr.mxu0 %v1155
        %v1157 = vand.u32 %v763, 4294901760
        %1158 = vmatpush1.msra.mxu0 %v1157
        %v1159 = vand.u32 %v772, 4294901760
        %1160 = vmatprep.subr.mxu0 %v1159
        %v1161 = vand.u32 %v771, 4294901760
        %1162 = vmatpush1.msra.mxu0 %v1161
        %1163 = vmatprep.subr.mxu0 0.0
        %1164 = vmatpush1.msra.mxu0 0.0
        %1165 = vmatprep.subr.mxu0 0.0
        %1166 = vmatpush1.msra.mxu0 0.0
        %1167 = vmatprep.subr.mxu0 0.0
        %1168 = vmatpush1.msra.mxu0 0.0
        %1169 = vmatprep.subr.mxu0 0.0
        %1170 = vmatpush1.msra.mxu0 0.0
        %1171 = vmatprep.subr.mxu0 0.0
        %1172 = vmatpush1.msra.mxu0 0.0
        %1173 = vmatprep.subr.mxu0 0.0
        %1174 = vmatpush1.msra.mxu0 0.0
        %1175 = vmatprep.subr.mxu0 0.0
        %1176 = vmatpush1.msra.mxu0 0.0
        %1177 = vmatprep.subr.mxu0 0.0
        %1178 = vmatpush1.msra.mxu0 0.0
        %1179 = vmatprep.subr.mxu0 0.0
        %1180 = vmatpush1.msra.mxu0 0.0
        %1181 = vmatprep.subr.mxu0 0.0
        %1182 = vmatpush1.msra.mxu0 0.0
        %1183 = vmatprep.subr.mxu0 0.0
        %1184 = vmatpush1.msra.mxu0 0.0
        %1185 = vmatprep.subr.mxu0 0.0
        %1186 = vmatpush1.msra.mxu0 0.0
        %1187 = vmatprep.subr.mxu0 0.0
        %1188 = vmatpush1.msra.mxu0 0.0
        %1189 = vmatprep.subr.mxu0 0.0
        %1190 = vmatpush1.msra.mxu0 0.0
        %1191 = vmatprep.subr.mxu0 0.0
        %1192 = vmatpush1.msra.mxu0 0.0
        %1193 = vmatprep.subr.mxu0 0.0
        %1194 = vmatpush1.msra.mxu0 0.0
        %1195 = vmatprep.subr.mxu0 0.0
        %1196 = vmatpush1.msra.mxu0 0.0
        %1197 = vmatprep.subr.mxu0 0.0
        %1198 = vmatpush1.msra.mxu0 0.0
        %1199 = vmatprep.subr.mxu0 0.0
        %1200 = vmatpush1.msra.mxu0 0.0
        %1201 = vmatprep.subr.mxu0 0.0
        %1202 = vmatpush1.msra.mxu0 0.0
        %1203 = vmatprep.subr.mxu0 0.0
        %1204 = vmatpush1.msra.mxu0 0.0
        %1205 = vmatprep.subr.mxu0 0.0
        %1206 = vmatpush1.msra.mxu0 0.0
        %1207 = vmatprep.subr.mxu0 0.0
        %1208 = vmatpush1.msra.mxu0 0.0
        %1209 = vmatprep.subr.mxu0 0.0
        %1210 = vmatpush1.msra.mxu0 0.0
        %1211 = vmatprep.mubr.f32.mxu0 0.0
        %v1212 = vand.u32 %v780, 4294901760
        %v1213 = vsub.f32 %v780, %v1212
        %v1214 = vand.u32 %v1213, 4294901760
        %1215 = vmatmul.mubr.f32.gmra.mrb[0].mxu0 %v1214
        %v1216 = vpop.f32.mrb[0].mxu0
        %v1217 = vadd.f32 %v1127, %v1216
        %v1218 = vpop.f32.mrb[0].mxu0
        %v1219 = vadd.f32 %v1129, %v1218
        %1220 = vdwg.mxu0
        %v1221 = vand.u32 %v716, 4294901760
        %v1222 = vsub.f32 %v716, %v1221
        %v1223 = vand.u32 %v1222, 4294901760
        %1224 = vmatprep.subr.mxu0 %v1223
        %v1225 = vand.u32 %v715, 4294901760
        %v1226 = vsub.f32 %v715, %v1225
        %v1227 = vand.u32 %v1226, 4294901760
        %1228 = vmatpush1.msra.mxu0 %v1227
        %v1229 = vand.u32 %v724, 4294901760
        %v1230 = vsub.f32 %v724, %v1229
        %v1231 = vand.u32 %v1230, 4294901760
        %1232 = vmatprep.subr.mxu0 %v1231
        %v1233 = vand.u32 %v723, 4294901760
        %v1234 = vsub.f32 %v723, %v1233
        %v1235 = vand.u32 %v1234, 4294901760
        %1236 = vmatpush1.msra.mxu0 %v1235
        %v1237 = vand.u32 %v732, 4294901760
        %v1238 = vsub.f32 %v732, %v1237
        %v1239 = vand.u32 %v1238, 4294901760
        %1240 = vmatprep.subr.mxu0 %v1239
        %v1241 = vand.u32 %v731, 4294901760
        %v1242 = vsub.f32 %v731, %v1241
        %v1243 = vand.u32 %v1242, 4294901760
        %1244 = vmatpush1.msra.mxu0 %v1243
        %v1245 = vand.u32 %v740, 4294901760
        %v1246 = vsub.f32 %v740, %v1245
        %v1247 = vand.u32 %v1246, 4294901760
        %1248 = vmatprep.subr.mxu0 %v1247
        %v1249 = vand.u32 %v739, 4294901760
        %v1250 = vsub.f32 %v739, %v1249
        %v1251 = vand.u32 %v1250, 4294901760
        %1252 = vmatpush1.msra.mxu0 %v1251
        %v1253 = vand.u32 %v748, 4294901760
        %v1254 = vsub.f32 %v748, %v1253
        %v1255 = vand.u32 %v1254, 4294901760
        %1256 = vmatprep.subr.mxu0 %v1255
        %v1257 = vand.u32 %v747, 4294901760
        %v1258 = vsub.f32 %v747, %v1257
        %v1259 = vand.u32 %v1258, 4294901760
        %1260 = vmatpush1.msra.mxu0 %v1259
        %v1261 = vand.u32 %v756, 4294901760
        %v1262 = vsub.f32 %v756, %v1261
        %v1263 = vand.u32 %v1262, 4294901760
        %1264 = vmatprep.subr.mxu0 %v1263
        %v1265 = vand.u32 %v755, 4294901760
        %v1266 = vsub.f32 %v755, %v1265
        %v1267 = vand.u32 %v1266, 4294901760
        %1268 = vmatpush1.msra.mxu0 %v1267
        %v1269 = vand.u32 %v764, 4294901760
        %v1270 = vsub.f32 %v764, %v1269
        %v1271 = vand.u32 %v1270, 4294901760
        %1272 = vmatprep.subr.mxu0 %v1271
        %v1273 = vand.u32 %v763, 4294901760
        %v1274 = vsub.f32 %v763, %v1273
        %v1275 = vand.u32 %v1274, 4294901760
        %1276 = vmatpush1.msra.mxu0 %v1275
        %v1277 = vand.u32 %v772, 4294901760
        %v1278 = vsub.f32 %v772, %v1277
        %v1279 = vand.u32 %v1278, 4294901760
        %1280 = vmatprep.subr.mxu0 %v1279
        %v1281 = vand.u32 %v771, 4294901760
        %v1282 = vsub.f32 %v771, %v1281
        %v1283 = vand.u32 %v1282, 4294901760
        %1284 = vmatpush1.msra.mxu0 %v1283
        %1285 = vmatprep.subr.mxu0 0.0
        %1286 = vmatpush1.msra.mxu0 0.0
        %1287 = vmatprep.subr.mxu0 0.0
        %1288 = vmatpush1.msra.mxu0 0.0
        %1289 = vmatprep.subr.mxu0 0.0
        %1290 = vmatpush1.msra.mxu0 0.0
        %1291 = vmatprep.subr.mxu0 0.0
        %1292 = vmatpush1.msra.mxu0 0.0
        %1293 = vmatprep.subr.mxu0 0.0
        %1294 = vmatpush1.msra.mxu0 0.0
        %1295 = vmatprep.subr.mxu0 0.0
        %1296 = vmatpush1.msra.mxu0 0.0
        %1297 = vmatprep.subr.mxu0 0.0
        %1298 = vmatpush1.msra.mxu0 0.0
        %1299 = vmatprep.subr.mxu0 0.0
        %1300 = vmatpush1.msra.mxu0 0.0
        %1301 = vmatprep.subr.mxu0 0.0
        %1302 = vmatpush1.msra.mxu0 0.0
        %1303 = vmatprep.subr.mxu0 0.0
        %1304 = vmatpush1.msra.mxu0 0.0
        %1305 = vmatprep.subr.mxu0 0.0
        %1306 = vmatpush1.msra.mxu0 0.0
        %1307 = vmatprep.subr.mxu0 0.0
        %1308 = vmatpush1.msra.mxu0 0.0
        %1309 = vmatprep.subr.mxu0 0.0
        %1310 = vmatpush1.msra.mxu0 0.0
        %1311 = vmatprep.subr.mxu0 0.0
        %1312 = vmatpush1.msra.mxu0 0.0
        %1313 = vmatprep.subr.mxu0 0.0
        %1314 = vmatpush1.msra.mxu0 0.0
        %1315 = vmatprep.subr.mxu0 0.0
        %1316 = vmatpush1.msra.mxu0 0.0
        %1317 = vmatprep.subr.mxu0 0.0
        %1318 = vmatpush1.msra.mxu0 0.0
        %1319 = vmatprep.subr.mxu0 0.0
        %1320 = vmatpush1.msra.mxu0 0.0
        %1321 = vmatprep.subr.mxu0 0.0
        %1322 = vmatpush1.msra.mxu0 0.0
        %1323 = vmatprep.subr.mxu0 0.0
        %1324 = vmatpush1.msra.mxu0 0.0
        %1325 = vmatprep.subr.mxu0 0.0
        %1326 = vmatpush1.msra.mxu0 0.0
        %1327 = vmatprep.subr.mxu0 0.0
        %1328 = vmatpush1.msra.mxu0 0.0
        %1329 = vmatprep.subr.mxu0 0.0
        %1330 = vmatpush1.msra.mxu0 0.0
        %1331 = vmatprep.subr.mxu0 0.0
        %1332 = vmatpush1.msra.mxu0 0.0
        %1333 = vmatprep.mubr.f32.mxu0 0.0
        %v1334 = vand.u32 %v780, 4294901760
        %1335 = vmatmul.mubr.f32.gmra.mrb[0].mxu0 %v1334
        %v1336 = vpop.f32.mrb[0].mxu0
        %v1337 = vadd.f32 %v1217, %v1336
        %v1338 = vpop.f32.mrb[0].mxu0
        %v1339 = vadd.f32 %v1219, %v1338
        %1340 = vdwg.mxu0
        %v1341 = vand.u32 %v716, 4294901760
        %1342 = vmatprep.subr.mxu0 %v1341
        %v1343 = vand.u32 %v715, 4294901760
        %1344 = vmatpush1.msra.mxu0 %v1343
        %v1345 = vand.u32 %v724, 4294901760
        %1346 = vmatprep.subr.mxu0 %v1345
        %v1347 = vand.u32 %v723, 4294901760
        %1348 = vmatpush1.msra.mxu0 %v1347
        %v1349 = vand.u32 %v732, 4294901760
        %1350 = vmatprep.subr.mxu0 %v1349
        %v1351 = vand.u32 %v731, 4294901760
        %1352 = vmatpush1.msra.mxu0 %v1351
        %v1353 = vand.u32 %v740, 4294901760
        %1354 = vmatprep.subr.mxu0 %v1353
        %v1355 = vand.u32 %v739, 4294901760
        %1356 = vmatpush1.msra.mxu0 %v1355
        %v1357 = vand.u32 %v748, 4294901760
        %1358 = vmatprep.subr.mxu0 %v1357
        %v1359 = vand.u32 %v747, 4294901760
        %1360 = vmatpush1.msra.mxu0 %v1359
        %v1361 = vand.u32 %v756, 4294901760
        %1362 = vmatprep.subr.mxu0 %v1361
        %v1363 = vand.u32 %v755, 4294901760
        %1364 = vmatpush1.msra.mxu0 %v1363
        %v1365 = vand.u32 %v764, 4294901760
        %1366 = vmatprep.subr.mxu0 %v1365
        %v1367 = vand.u32 %v763, 4294901760
        %1368 = vmatpush1.msra.mxu0 %v1367
        %v1369 = vand.u32 %v772, 4294901760
        %1370 = vmatprep.subr.mxu0 %v1369
        %v1371 = vand.u32 %v771, 4294901760
        %1372 = vmatpush1.msra.mxu0 %v1371
        %1373 = vmatprep.subr.mxu0 0.0
        %1374 = vmatpush1.msra.mxu0 0.0
        %1375 = vmatprep.subr.mxu0 0.0
        %1376 = vmatpush1.msra.mxu0 0.0
        %1377 = vmatprep.subr.mxu0 0.0
        %1378 = vmatpush1.msra.mxu0 0.0
        %1379 = vmatprep.subr.mxu0 0.0
        %1380 = vmatpush1.msra.mxu0 0.0
        %1381 = vmatprep.subr.mxu0 0.0
        %1382 = vmatpush1.msra.mxu0 0.0
        %1383 = vmatprep.subr.mxu0 0.0
        %1384 = vmatpush1.msra.mxu0 0.0
        %1385 = vmatprep.subr.mxu0 0.0
        %1386 = vmatpush1.msra.mxu0 0.0
        %1387 = vmatprep.subr.mxu0 0.0
        %1388 = vmatpush1.msra.mxu0 0.0
        %1389 = vmatprep.subr.mxu0 0.0
        %1390 = vmatpush1.msra.mxu0 0.0
        %1391 = vmatprep.subr.mxu0 0.0
        %1392 = vmatpush1.msra.mxu0 0.0
        %1393 = vmatprep.subr.mxu0 0.0
        %1394 = vmatpush1.msra.mxu0 0.0
        %1395 = vmatprep.subr.mxu0 0.0
        %1396 = vmatpush1.msra.mxu0 0.0
        %1397 = vmatprep.subr.mxu0 0.0
        %1398 = vmatpush1.msra.mxu0 0.0
        %1399 = vmatprep.subr.mxu0 0.0
        %1400 = vmatpush1.msra.mxu0 0.0
        %1401 = vmatprep.subr.mxu0 0.0
        %1402 = vmatpush1.msra.mxu0 0.0
        %1403 = vmatprep.subr.mxu0 0.0
        %1404 = vmatpush1.msra.mxu0 0.0
        %1405 = vmatprep.subr.mxu0 0.0
        %1406 = vmatpush1.msra.mxu0 0.0
        %1407 = vmatprep.subr.mxu0 0.0
        %1408 = vmatpush1.msra.mxu0 0.0
        %1409 = vmatprep.subr.mxu0 0.0
        %1410 = vmatpush1.msra.mxu0 0.0
        %1411 = vmatprep.subr.mxu0 0.0
        %1412 = vmatpush1.msra.mxu0 0.0
        %1413 = vmatprep.subr.mxu0 0.0
        %1414 = vmatpush1.msra.mxu0 0.0
        %1415 = vmatprep.subr.mxu0 0.0
        %1416 = vmatpush1.msra.mxu0 0.0
        %1417 = vmatprep.subr.mxu0 0.0
        %1418 = vmatpush1.msra.mxu0 0.0
        %1419 = vmatprep.subr.mxu0 0.0
        %1420 = vmatpush1.msra.mxu0 0.0
        %1421 = vmatprep.mubr.f32.mxu0 0.0
        %v1422 = vand.u32 %v780, 4294901760
        %1423 = vmatmul.mubr.f32.gmra.mrb[0].mxu0 %v1422
        %v1424 = vpop.f32.mrb[0].mxu0
        %v1425 = vadd.f32 %v1337, %v1424
        %v1426 = vpop.f32.mrb[0].mxu0
        %v1427 = vadd.f32 %v1339, %v1426
        %1428 = vdwg.mxu0
        %v1429 = vand.u32 %v718, 4294901760
        %1430 = vmatprep.subr.mxu0 %v1429
        %v1431 = vand.u32 %v717, 4294901760
        %1432 = vmatpush1.msra.mxu0 %v1431
        %v1433 = vand.u32 %v726, 4294901760
        %1434 = vmatprep.subr.mxu0 %v1433
        %v1435 = vand.u32 %v725, 4294901760
        %1436 = vmatpush1.msra.mxu0 %v1435
        %v1437 = vand.u32 %v734, 4294901760
        %1438 = vmatprep.subr.mxu0 %v1437
        %v1439 = vand.u32 %v733, 4294901760
        %1440 = vmatpush1.msra.mxu0 %v1439
        %v1441 = vand.u32 %v742, 4294901760
        %1442 = vmatprep.subr.mxu0 %v1441
        %v1443 = vand.u32 %v741, 4294901760
        %1444 = vmatpush1.msra.mxu0 %v1443
        %v1445 = vand.u32 %v750, 4294901760
        %1446 = vmatprep.subr.mxu0 %v1445
        %v1447 = vand.u32 %v749, 4294901760
        %1448 = vmatpush1.msra.mxu0 %v1447
        %v1449 = vand.u32 %v758, 4294901760
        %1450 = vmatprep.subr.mxu0 %v1449
        %v1451 = vand.u32 %v757, 4294901760
        %1452 = vmatpush1.msra.mxu0 %v1451
        %v1453 = vand.u32 %v766, 4294901760
        %1454 = vmatprep.subr.mxu0 %v1453
        %v1455 = vand.u32 %v765, 4294901760
        %1456 = vmatpush1.msra.mxu0 %v1455
        %v1457 = vand.u32 %v774, 4294901760
        %1458 = vmatprep.subr.mxu0 %v1457
        %v1459 = vand.u32 %v773, 4294901760
        %1460 = vmatpush1.msra.mxu0 %v1459
        %1461 = vmatprep.subr.mxu0 0.0
        %1462 = vmatpush1.msra.mxu0 0.0
        %1463 = vmatprep.subr.mxu0 0.0
        %1464 = vmatpush1.msra.mxu0 0.0
        %1465 = vmatprep.subr.mxu0 0.0
        %1466 = vmatpush1.msra.mxu0 0.0
        %1467 = vmatprep.subr.mxu0 0.0
        %1468 = vmatpush1.msra.mxu0 0.0
        %1469 = vmatprep.subr.mxu0 0.0
        %1470 = vmatpush1.msra.mxu0 0.0
        %1471 = vmatprep.subr.mxu0 0.0
        %1472 = vmatpush1.msra.mxu0 0.0
        %1473 = vmatprep.subr.mxu0 0.0
        %1474 = vmatpush1.msra.mxu0 0.0
        %1475 = vmatprep.subr.mxu0 0.0
        %1476 = vmatpush1.msra.mxu0 0.0
        %1477 = vmatprep.subr.mxu0 0.0
        %1478 = vmatpush1.msra.mxu0 0.0
        %1479 = vmatprep.subr.mxu0 0.0
        %1480 = vmatpush1.msra.mxu0 0.0
        %1481 = vmatprep.subr.mxu0 0.0
        %1482 = vmatpush1.msra.mxu0 0.0
        %1483 = vmatprep.subr.mxu0 0.0
        %1484 = vmatpush1.msra.mxu0 0.0
        %1485 = vmatprep.subr.mxu0 0.0
        %1486 = vmatpush1.msra.mxu0 0.0
        %1487 = vmatprep.subr.mxu0 0.0
        %1488 = vmatpush1.msra.mxu0 0.0
        %1489 = vmatprep.subr.mxu0 0.0
        %1490 = vmatpush1.msra.mxu0 0.0
        %1491 = vmatprep.subr.mxu0 0.0
        %1492 = vmatpush1.msra.mxu0 0.0
        %1493 = vmatprep.subr.mxu0 0.0
        %1494 = vmatpush1.msra.mxu0 0.0
        %1495 = vmatprep.subr.mxu0 0.0
        %1496 = vmatpush1.msra.mxu0 0.0
        %1497 = vmatprep.subr.mxu0 0.0
        %1498 = vmatpush1.msra.mxu0 0.0
        %1499 = vmatprep.subr.mxu0 0.0
        %1500 = vmatpush1.msra.mxu0 0.0
        %1501 = vmatprep.subr.mxu0 0.0
        %1502 = vmatpush1.msra.mxu0 0.0
        %1503 = vmatprep.subr.mxu0 0.0
        %1504 = vmatpush1.msra.mxu0 0.0
        %1505 = vmatprep.subr.mxu0 0.0
        %1506 = vmatpush1.msra.mxu0 0.0
        %1507 = vmatprep.subr.mxu0 0.0
        %1508 = vmatpush1.msra.mxu0 0.0
        %1509 = vmatprep.mubr.f32.mxu0 0.0
        %v1510 = vand.u32 %v780, 4294901760
        %v1511 = vsub.f32 %v780, %v1510
        %v1512 = vand.u32 %v1511, 4294901760
        %v1513 = vsub.f32 %v1511, %v1512
        %v1514 = vand.u32 %v1513, 4294901760
        %1515 = vmatmul.mubr.f32.gmra.mrb[0].mxu0 %v1514
        %v1516 = vpop.f32.mrb[0].mxu0
        %v1517 = vadd.f32 0.0, %v1516
        %v1518 = vpop.f32.mrb[0].mxu0
        %v1519 = vadd.f32 0.0, %v1518
        %1520 = vdwg.mxu0
        %v1521 = vand.u32 %v718, 4294901760
        %v1522 = vsub.f32 %v718, %v1521
        %v1523 = vand.u32 %v1522, 4294901760
        %v1524 = vsub.f32 %v1522, %v1523
        %v1525 = vand.u32 %v1524, 4294901760
        %1526 = vmatprep.subr.mxu0 %v1525
        %v1527 = vand.u32 %v717, 4294901760
        %v1528 = vsub.f32 %v717, %v1527
        %v1529 = vand.u32 %v1528, 4294901760
        %v1530 = vsub.f32 %v1528, %v1529
        %v1531 = vand.u32 %v1530, 4294901760
        %1532 = vmatpush1.msra.mxu0 %v1531
        %v1533 = vand.u32 %v726, 4294901760
        %v1534 = vsub.f32 %v726, %v1533
        %v1535 = vand.u32 %v1534, 4294901760
        %v1536 = vsub.f32 %v1534, %v1535
        %v1537 = vand.u32 %v1536, 4294901760
        %1538 = vmatprep.subr.mxu0 %v1537
        %v1539 = vand.u32 %v725, 4294901760
        %v1540 = vsub.f32 %v725, %v1539
        %v1541 = vand.u32 %v1540, 4294901760
        %v1542 = vsub.f32 %v1540, %v1541
        %v1543 = vand.u32 %v1542, 4294901760
        %1544 = vmatpush1.msra.mxu0 %v1543
        %v1545 = vand.u32 %v734, 4294901760
        %v1546 = vsub.f32 %v734, %v1545
        %v1547 = vand.u32 %v1546, 4294901760
        %v1548 = vsub.f32 %v1546, %v1547
        %v1549 = vand.u32 %v1548, 4294901760
        %1550 = vmatprep.subr.mxu0 %v1549
        %v1551 = vand.u32 %v733, 4294901760
        %v1552 = vsub.f32 %v733, %v1551
        %v1553 = vand.u32 %v1552, 4294901760
        %v1554 = vsub.f32 %v1552, %v1553
        %v1555 = vand.u32 %v1554, 4294901760
        %1556 = vmatpush1.msra.mxu0 %v1555
        %v1557 = vand.u32 %v742, 4294901760
        %v1558 = vsub.f32 %v742, %v1557
        %v1559 = vand.u32 %v1558, 4294901760
        %v1560 = vsub.f32 %v1558, %v1559
        %v1561 = vand.u32 %v1560, 4294901760
        %1562 = vmatprep.subr.mxu0 %v1561
        %v1563 = vand.u32 %v741, 4294901760
        %v1564 = vsub.f32 %v741, %v1563
        %v1565 = vand.u32 %v1564, 4294901760
        %v1566 = vsub.f32 %v1564, %v1565
        %v1567 = vand.u32 %v1566, 4294901760
        %1568 = vmatpush1.msra.mxu0 %v1567
        %v1569 = vand.u32 %v750, 4294901760
        %v1570 = vsub.f32 %v750, %v1569
        %v1571 = vand.u32 %v1570, 4294901760
        %v1572 = vsub.f32 %v1570, %v1571
        %v1573 = vand.u32 %v1572, 4294901760
        %1574 = vmatprep.subr.mxu0 %v1573
        %v1575 = vand.u32 %v749, 4294901760
        %v1576 = vsub.f32 %v749, %v1575
        %v1577 = vand.u32 %v1576, 4294901760
        %v1578 = vsub.f32 %v1576, %v1577
        %v1579 = vand.u32 %v1578, 4294901760
        %1580 = vmatpush1.msra.mxu0 %v1579
        %v1581 = vand.u32 %v758, 4294901760
        %v1582 = vsub.f32 %v758, %v1581
        %v1583 = vand.u32 %v1582, 4294901760
        %v1584 = vsub.f32 %v1582, %v1583
        %v1585 = vand.u32 %v1584, 4294901760
        %1586 = vmatprep.subr.mxu0 %v1585
        %v1587 = vand.u32 %v757, 4294901760
        %v1588 = vsub.f32 %v757, %v1587
        %v1589 = vand.u32 %v1588, 4294901760
        %v1590 = vsub.f32 %v1588, %v1589
        %v1591 = vand.u32 %v1590, 4294901760
        %1592 = vmatpush1.msra.mxu0 %v1591
        %v1593 = vand.u32 %v766, 4294901760
        %v1594 = vsub.f32 %v766, %v1593
        %v1595 = vand.u32 %v1594, 4294901760
        %v1596 = vsub.f32 %v1594, %v1595
        %v1597 = vand.u32 %v1596, 4294901760
        %1598 = vmatprep.subr.mxu0 %v1597
        %v1599 = vand.u32 %v765, 4294901760
        %v1600 = vsub.f32 %v765, %v1599
        %v1601 = vand.u32 %v1600, 4294901760
        %v1602 = vsub.f32 %v1600, %v1601
        %v1603 = vand.u32 %v1602, 4294901760
        %1604 = vmatpush1.msra.mxu0 %v1603
        %v1605 = vand.u32 %v774, 4294901760
        %v1606 = vsub.f32 %v774, %v1605
        %v1607 = vand.u32 %v1606, 4294901760
        %v1608 = vsub.f32 %v1606, %v1607
        %v1609 = vand.u32 %v1608, 4294901760
        %1610 = vmatprep.subr.mxu0 %v1609
        %v1611 = vand.u32 %v773, 4294901760
        %v1612 = vsub.f32 %v773, %v1611
        %v1613 = vand.u32 %v1612, 4294901760
        %v1614 = vsub.f32 %v1612, %v1613
        %v1615 = vand.u32 %v1614, 4294901760
        %1616 = vmatpush1.msra.mxu0 %v1615
        %1617 = vmatprep.subr.mxu0 0.0
        %1618 = vmatpush1.msra.mxu0 0.0
        %1619 = vmatprep.subr.mxu0 0.0
        %1620 = vmatpush1.msra.mxu0 0.0
        %1621 = vmatprep.subr.mxu0 0.0
        %1622 = vmatpush1.msra.mxu0 0.0
        %1623 = vmatprep.subr.mxu0 0.0
        %1624 = vmatpush1.msra.mxu0 0.0
        %1625 = vmatprep.subr.mxu0 0.0
        %1626 = vmatpush1.msra.mxu0 0.0
        %1627 = vmatprep.subr.mxu0 0.0
        %1628 = vmatpush1.msra.mxu0 0.0
        %1629 = vmatprep.subr.mxu0 0.0
        %1630 = vmatpush1.msra.mxu0 0.0
        %1631 = vmatprep.subr.mxu0 0.0
        %1632 = vmatpush1.msra.mxu0 0.0
        %1633 = vmatprep.subr.mxu0 0.0
        %1634 = vmatpush1.msra.mxu0 0.0
        %1635 = vmatprep.subr.mxu0 0.0
        %1636 = vmatpush1.msra.mxu0 0.0
        %1637 = vmatprep.subr.mxu0 0.0
        %1638 = vmatpush1.msra.mxu0 0.0
        %1639 = vmatprep.subr.mxu0 0.0
        %1640 = vmatpush1.msra.mxu0 0.0
        %1641 = vmatprep.subr.mxu0 0.0
        %1642 = vmatpush1.msra.mxu0 0.0
        %1643 = vmatprep.subr.mxu0 0.0
        %1644 = vmatpush1.msra.mxu0 0.0
        %1645 = vmatprep.subr.mxu0 0.0
        %1646 = vmatpush1.msra.mxu0 0.0
        %1647 = vmatprep.subr.mxu0 0.0
        %1648 = vmatpush1.msra.mxu0 0.0
        %1649 = vmatprep.subr.mxu0 0.0
        %1650 = vmatpush1.msra.mxu0 0.0
        %1651 = vmatprep.subr.mxu0 0.0
        %1652 = vmatpush1.msra.mxu0 0.0
        %1653 = vmatprep.subr.mxu0 0.0
        %1654 = vmatpush1.msra.mxu0 0.0
        %1655 = vmatprep.subr.mxu0 0.0
        %1656 = vmatpush1.msra.mxu0 0.0
        %1657 = vmatprep.subr.mxu0 0.0
        %1658 = vmatpush1.msra.mxu0 0.0
        %1659 = vmatprep.subr.mxu0 0.0
        %1660 = vmatpush1.msra.mxu0 0.0
        %1661 = vmatprep.subr.mxu0 0.0
        %1662 = vmatpush1.msra.mxu0 0.0
        %1663 = vmatprep.subr.mxu0 0.0
        %1664 = vmatpush1.msra.mxu0 0.0
        %1665 = vmatprep.mubr.f32.mxu0 0.0
        %v1666 = vand.u32 %v780, 4294901760
        %1667 = vmatmul.mubr.f32.gmra.mrb[0].mxu0 %v1666
        %v1668 = vpop.f32.mrb[0].mxu0
        %v1669 = vadd.f32 %v1517, %v1668
        %v1670 = vpop.f32.mrb[0].mxu0
        %v1671 = vadd.f32 %v1519, %v1670
        %1672 = vdwg.mxu0
        %v1673 = vand.u32 %v718, 4294901760
        %v1674 = vsub.f32 %v718, %v1673
        %1675 = vmatprep.subr.mxu0 %v1674
        %v1676 = vand.u32 %v717, 4294901760
        %v1677 = vsub.f32 %v717, %v1676
        %1678 = vmatpush1.msra.mxu0 %v1677
        %v1679 = vand.u32 %v726, 4294901760
        %v1680 = vsub.f32 %v726, %v1679
        %1681 = vmatprep.subr.mxu0 %v1680
        %v1682 = vand.u32 %v725, 4294901760
        %v1683 = vsub.f32 %v725, %v1682
        %1684 = vmatpush1.msra.mxu0 %v1683
        %v1685 = vand.u32 %v734, 4294901760
        %v1686 = vsub.f32 %v734, %v1685
        %1687 = vmatprep.subr.mxu0 %v1686
        %v1688 = vand.u32 %v733, 4294901760
        %v1689 = vsub.f32 %v733, %v1688
        %1690 = vmatpush1.msra.mxu0 %v1689
        %v1691 = vand.u32 %v742, 4294901760
        %v1692 = vsub.f32 %v742, %v1691
        %1693 = vmatprep.subr.mxu0 %v1692
        %v1694 = vand.u32 %v741, 4294901760
        %v1695 = vsub.f32 %v741, %v1694
        %1696 = vmatpush1.msra.mxu0 %v1695
        %v1697 = vand.u32 %v750, 4294901760
        %v1698 = vsub.f32 %v750, %v1697
        %1699 = vmatprep.subr.mxu0 %v1698
        %v1700 = vand.u32 %v749, 4294901760
        %v1701 = vsub.f32 %v749, %v1700
        %1702 = vmatpush1.msra.mxu0 %v1701
        %v1703 = vand.u32 %v758, 4294901760
        %v1704 = vsub.f32 %v758, %v1703
        %1705 = vmatprep.subr.mxu0 %v1704
        %v1706 = vand.u32 %v757, 4294901760
        %v1707 = vsub.f32 %v757, %v1706
        %1708 = vmatpush1.msra.mxu0 %v1707
        %v1709 = vand.u32 %v766, 4294901760
        %v1710 = vsub.f32 %v766, %v1709
        %1711 = vmatprep.subr.mxu0 %v1710
        %v1712 = vand.u32 %v765, 4294901760
        %v1713 = vsub.f32 %v765, %v1712
        %1714 = vmatpush1.msra.mxu0 %v1713
        %v1715 = vand.u32 %v774, 4294901760
        %v1716 = vsub.f32 %v774, %v1715
        %1717 = vmatprep.subr.mxu0 %v1716
        %v1718 = vand.u32 %v773, 4294901760
        %v1719 = vsub.f32 %v773, %v1718
        %1720 = vmatpush1.msra.mxu0 %v1719
        %1721 = vmatprep.subr.mxu0 0.0
        %1722 = vmatpush1.msra.mxu0 0.0
        %1723 = vmatprep.subr.mxu0 0.0
        %1724 = vmatpush1.msra.mxu0 0.0
        %1725 = vmatprep.subr.mxu0 0.0
        %1726 = vmatpush1.msra.mxu0 0.0
        %1727 = vmatprep.subr.mxu0 0.0
        %1728 = vmatpush1.msra.mxu0 0.0
        %1729 = vmatprep.subr.mxu0 0.0
        %1730 = vmatpush1.msra.mxu0 0.0
        %1731 = vmatprep.subr.mxu0 0.0
        %1732 = vmatpush1.msra.mxu0 0.0
        %1733 = vmatprep.subr.mxu0 0.0
        %1734 = vmatpush1.msra.mxu0 0.0
        %1735 = vmatprep.subr.mxu0 0.0
        %1736 = vmatpush1.msra.mxu0 0.0
        %1737 = vmatprep.subr.mxu0 0.0
        %1738 = vmatpush1.msra.mxu0 0.0
        %1739 = vmatprep.subr.mxu0 0.0
        %1740 = vmatpush1.msra.mxu0 0.0
        %1741 = vmatprep.subr.mxu0 0.0
        %1742 = vmatpush1.msra.mxu0 0.0
        %1743 = vmatprep.subr.mxu0 0.0
        %1744 = vmatpush1.msra.mxu0 0.0
        %1745 = vmatprep.subr.mxu0 0.0
        %1746 = vmatpush1.msra.mxu0 0.0
        %1747 = vmatprep.subr.mxu0 0.0
        %1748 = vmatpush1.msra.mxu0 0.0
        %1749 = vmatprep.subr.mxu0 0.0
        %1750 = vmatpush1.msra.mxu0 0.0
        %1751 = vmatprep.subr.mxu0 0.0
        %1752 = vmatpush1.msra.mxu0 0.0
        %1753 = vmatprep.subr.mxu0 0.0
        %1754 = vmatpush1.msra.mxu0 0.0
        %1755 = vmatprep.subr.mxu0 0.0
        %1756 = vmatpush1.msra.mxu0 0.0
        %1757 = vmatprep.subr.mxu0 0.0
        %1758 = vmatpush1.msra.mxu0 0.0
        %1759 = vmatprep.subr.mxu0 0.0
        %1760 = vmatpush1.msra.mxu0 0.0
        %1761 = vmatprep.subr.mxu0 0.0
        %1762 = vmatpush1.msra.mxu0 0.0
        %1763 = vmatprep.subr.mxu0 0.0
        %1764 = vmatpush1.msra.mxu0 0.0
        %1765 = vmatprep.subr.mxu0 0.0
        %1766 = vmatpush1.msra.mxu0 0.0
        %1767 = vmatprep.subr.mxu0 0.0
        %1768 = vmatpush1.msra.mxu0 0.0
        %1769 = vmatprep.mubr.f32.mxu0 0.0
        %v1770 = vand.u32 %v780, 4294901760
        %v1771 = vsub.f32 %v780, %v1770
        %1772 = vmatmul.mubr.f32.gmra.mrb[0].mxu0 %v1771
        %v1773 = vpop.f32.mrb[0].mxu0
        %v1774 = vadd.f32 %v1669, %v1773
        %v1775 = vpop.f32.mrb[0].mxu0
        %v1776 = vadd.f32 %v1671, %v1775
        %1777 = vdwg.mxu0
        %v1778 = vand.u32 %v718, 4294901760
        %1779 = vmatprep.subr.mxu0 %v1778
        %v1780 = vand.u32 %v717, 4294901760
        %1781 = vmatpush1.msra.mxu0 %v1780
        %v1782 = vand.u32 %v726, 4294901760
        %1783 = vmatprep.subr.mxu0 %v1782
        %v1784 = vand.u32 %v725, 4294901760
        %1785 = vmatpush1.msra.mxu0 %v1784
        %v1786 = vand.u32 %v734, 4294901760
        %1787 = vmatprep.subr.mxu0 %v1786
        %v1788 = vand.u32 %v733, 4294901760
        %1789 = vmatpush1.msra.mxu0 %v1788
        %v1790 = vand.u32 %v742, 4294901760
        %1791 = vmatprep.subr.mxu0 %v1790
        %v1792 = vand.u32 %v741, 4294901760
        %1793 = vmatpush1.msra.mxu0 %v1792
        %v1794 = vand.u32 %v750, 4294901760
        %1795 = vmatprep.subr.mxu0 %v1794
        %v1796 = vand.u32 %v749, 4294901760
        %1797 = vmatpush1.msra.mxu0 %v1796
        %v1798 = vand.u32 %v758, 4294901760
        %1799 = vmatprep.subr.mxu0 %v1798
        %v1800 = vand.u32 %v757, 4294901760
        %1801 = vmatpush1.msra.mxu0 %v1800
        %v1802 = vand.u32 %v766, 4294901760
        %1803 = vmatprep.subr.mxu0 %v1802
        %v1804 = vand.u32 %v765, 4294901760
        %1805 = vmatpush1.msra.mxu0 %v1804
        %v1806 = vand.u32 %v774, 4294901760
        %1807 = vmatprep.subr.mxu0 %v1806
        %v1808 = vand.u32 %v773, 4294901760
        %1809 = vmatpush1.msra.mxu0 %v1808
        %1810 = vmatprep.subr.mxu0 0.0
        %1811 = vmatpush1.msra.mxu0 0.0
        %1812 = vmatprep.subr.mxu0 0.0
        %1813 = vmatpush1.msra.mxu0 0.0
        %1814 = vmatprep.subr.mxu0 0.0
        %1815 = vmatpush1.msra.mxu0 0.0
        %1816 = vmatprep.subr.mxu0 0.0
        %1817 = vmatpush1.msra.mxu0 0.0
        %1818 = vmatprep.subr.mxu0 0.0
        %1819 = vmatpush1.msra.mxu0 0.0
        %1820 = vmatprep.subr.mxu0 0.0
        %1821 = vmatpush1.msra.mxu0 0.0
        %1822 = vmatprep.subr.mxu0 0.0
        %1823 = vmatpush1.msra.mxu0 0.0
        %1824 = vmatprep.subr.mxu0 0.0
        %1825 = vmatpush1.msra.mxu0 0.0
        %1826 = vmatprep.subr.mxu0 0.0
        %1827 = vmatpush1.msra.mxu0 0.0
        %1828 = vmatprep.subr.mxu0 0.0
        %1829 = vmatpush1.msra.mxu0 0.0
        %1830 = vmatprep.subr.mxu0 0.0
        %1831 = vmatpush1.msra.mxu0 0.0
        %1832 = vmatprep.subr.mxu0 0.0
        %1833 = vmatpush1.msra.mxu0 0.0
        %1834 = vmatprep.subr.mxu0 0.0
        %1835 = vmatpush1.msra.mxu0 0.0
        %1836 = vmatprep.subr.mxu0 0.0
        %1837 = vmatpush1.msra.mxu0 0.0
        %1838 = vmatprep.subr.mxu0 0.0
        %1839 = vmatpush1.msra.mxu0 0.0
        %1840 = vmatprep.subr.mxu0 0.0
        %1841 = vmatpush1.msra.mxu0 0.0
        %1842 = vmatprep.subr.mxu0 0.0
        %1843 = vmatpush1.msra.mxu0 0.0
        %1844 = vmatprep.subr.mxu0 0.0
        %1845 = vmatpush1.msra.mxu0 0.0
        %1846 = vmatprep.subr.mxu0 0.0
        %1847 = vmatpush1.msra.mxu0 0.0
        %1848 = vmatprep.subr.mxu0 0.0
        %1849 = vmatpush1.msra.mxu0 0.0
        %1850 = vmatprep.subr.mxu0 0.0
        %1851 = vmatpush1.msra.mxu0 0.0
        %1852 = vmatprep.subr.mxu0 0.0
        %1853 = vmatpush1.msra.mxu0 0.0
        %1854 = vmatprep.subr.mxu0 0.0
        %1855 = vmatpush1.msra.mxu0 0.0
        %1856 = vmatprep.subr.mxu0 0.0
        %1857 = vmatpush1.msra.mxu0 0.0
        %1858 = vmatprep.mubr.f32.mxu0 0.0
        %v1859 = vand.u32 %v780, 4294901760
        %v1860 = vsub.f32 %v780, %v1859
        %v1861 = vand.u32 %v1860, 4294901760
        %1862 = vmatmul.mubr.f32.gmra.mrb[0].mxu0 %v1861
        %v1863 = vpop.f32.mrb[0].mxu0
        %v1864 = vadd.f32 %v1774, %v1863
        %v1865 = vpop.f32.mrb[0].mxu0
        %v1866 = vadd.f32 %v1776, %v1865
        %1867 = vdwg.mxu0
        %v1868 = vand.u32 %v718, 4294901760
        %v1869 = vsub.f32 %v718, %v1868
        %v1870 = vand.u32 %v1869, 4294901760
        %1871 = vmatprep.subr.mxu0 %v1870
        %v1872 = vand.u32 %v717, 4294901760
        %v1873 = vsub.f32 %v717, %v1872
        %v1874 = vand.u32 %v1873, 4294901760
        %1875 = vmatpush1.msra.mxu0 %v1874
        %v1876 = vand.u32 %v726, 4294901760
        %v1877 = vsub.f32 %v726, %v1876
        %v1878 = vand.u32 %v1877, 4294901760
        %1879 = vmatprep.subr.mxu0 %v1878
        %v1880 = vand.u32 %v725, 4294901760
        %v1881 = vsub.f32 %v725, %v1880
        %v1882 = vand.u32 %v1881, 4294901760
        %1883 = vmatpush1.msra.mxu0 %v1882
        %v1884 = vand.u32 %v734, 4294901760
        %v1885 = vsub.f32 %v734, %v1884
        %v1886 = vand.u32 %v1885, 4294901760
        %1887 = vmatprep.subr.mxu0 %v1886
        %v1888 = vand.u32 %v733, 4294901760
        %v1889 = vsub.f32 %v733, %v1888
        %v1890 = vand.u32 %v1889, 4294901760
        %1891 = vmatpush1.msra.mxu0 %v1890
        %v1892 = vand.u32 %v742, 4294901760
        %v1893 = vsub.f32 %v742, %v1892
        %v1894 = vand.u32 %v1893, 4294901760
        %1895 = vmatprep.subr.mxu0 %v1894
        %v1896 = vand.u32 %v741, 4294901760
        %v1897 = vsub.f32 %v741, %v1896
        %v1898 = vand.u32 %v1897, 4294901760
        %1899 = vmatpush1.msra.mxu0 %v1898
        %v1900 = vand.u32 %v750, 4294901760
        %v1901 = vsub.f32 %v750, %v1900
        %v1902 = vand.u32 %v1901, 4294901760
        %1903 = vmatprep.subr.mxu0 %v1902
        %v1904 = vand.u32 %v749, 4294901760
        %v1905 = vsub.f32 %v749, %v1904
        %v1906 = vand.u32 %v1905, 4294901760
        %1907 = vmatpush1.msra.mxu0 %v1906
        %v1908 = vand.u32 %v758, 4294901760
        %v1909 = vsub.f32 %v758, %v1908
        %v1910 = vand.u32 %v1909, 4294901760
        %1911 = vmatprep.subr.mxu0 %v1910
        %v1912 = vand.u32 %v757, 4294901760
        %v1913 = vsub.f32 %v757, %v1912
        %v1914 = vand.u32 %v1913, 4294901760
        %1915 = vmatpush1.msra.mxu0 %v1914
        %v1916 = vand.u32 %v766, 4294901760
        %v1917 = vsub.f32 %v766, %v1916
        %v1918 = vand.u32 %v1917, 4294901760
        %1919 = vmatprep.subr.mxu0 %v1918
        %v1920 = vand.u32 %v765, 4294901760
        %v1921 = vsub.f32 %v765, %v1920
        %v1922 = vand.u32 %v1921, 4294901760
        %1923 = vmatpush1.msra.mxu0 %v1922
        %v1924 = vand.u32 %v774, 4294901760
        %v1925 = vsub.f32 %v774, %v1924
        %v1926 = vand.u32 %v1925, 4294901760
        %1927 = vmatprep.subr.mxu0 %v1926
        %v1928 = vand.u32 %v773, 4294901760
        %v1929 = vsub.f32 %v773, %v1928
        %v1930 = vand.u32 %v1929, 4294901760
        %1931 = vmatpush1.msra.mxu0 %v1930
        %1932 = vmatprep.subr.mxu0 0.0
        %1933 = vmatpush1.msra.mxu0 0.0
        %1934 = vmatprep.subr.mxu0 0.0
        %1935 = vmatpush1.msra.mxu0 0.0
        %1936 = vmatprep.subr.mxu0 0.0
        %1937 = vmatpush1.msra.mxu0 0.0
        %1938 = vmatprep.subr.mxu0 0.0
        %1939 = vmatpush1.msra.mxu0 0.0
        %1940 = vmatprep.subr.mxu0 0.0
        %1941 = vmatpush1.msra.mxu0 0.0
        %1942 = vmatprep.subr.mxu0 0.0
        %1943 = vmatpush1.msra.mxu0 0.0
        %1944 = vmatprep.subr.mxu0 0.0
        %1945 = vmatpush1.msra.mxu0 0.0
        %1946 = vmatprep.subr.mxu0 0.0
        %1947 = vmatpush1.msra.mxu0 0.0
        %1948 = vmatprep.subr.mxu0 0.0
        %1949 = vmatpush1.msra.mxu0 0.0
        %1950 = vmatprep.subr.mxu0 0.0
        %1951 = vmatpush1.msra.mxu0 0.0
        %1952 = vmatprep.subr.mxu0 0.0
        %1953 = vmatpush1.msra.mxu0 0.0
        %1954 = vmatprep.subr.mxu0 0.0
        %1955 = vmatpush1.msra.mxu0 0.0
        %1956 = vmatprep.subr.mxu0 0.0
        %1957 = vmatpush1.msra.mxu0 0.0
        %1958 = vmatprep.subr.mxu0 0.0
        %1959 = vmatpush1.msra.mxu0 0.0
        %1960 = vmatprep.subr.mxu0 0.0
        %1961 = vmatpush1.msra.mxu0 0.0
        %1962 = vmatprep.subr.mxu0 0.0
        %1963 = vmatpush1.msra.mxu0 0.0
        %1964 = vmatprep.subr.mxu0 0.0
        %1965 = vmatpush1.msra.mxu0 0.0
        %1966 = vmatprep.subr.mxu0 0.0
        %1967 = vmatpush1.msra.mxu0 0.0
        %1968 = vmatprep.subr.mxu0 0.0
        %1969 = vmatpush1.msra.mxu0 0.0
        %1970 = vmatprep.subr.mxu0 0.0
        %1971 = vmatpush1.msra.mxu0 0.0
        %1972 = vmatprep.subr.mxu0 0.0
        %1973 = vmatpush1.msra.mxu0 0.0
        %1974 = vmatprep.subr.mxu0 0.0
        %1975 = vmatpush1.msra.mxu0 0.0
        %1976 = vmatprep.subr.mxu0 0.0
        %1977 = vmatpush1.msra.mxu0 0.0
        %1978 = vmatprep.subr.mxu0 0.0
        %1979 = vmatpush1.msra.mxu0 0.0
        %1980 = vmatprep.mubr.f32.mxu0 0.0
        %v1981 = vand.u32 %v780, 4294901760
        %1982 = vmatmul.mubr.f32.gmra.mrb[0].mxu0 %v1981
        %v1983 = vpop.f32.mrb[0].mxu0
        %v1984 = vadd.f32 %v1864, %v1983
        %v1985 = vpop.f32.mrb[0].mxu0
        %v1986 = vadd.f32 %v1866, %v1985
        %1987 = vdwg.mxu0
        %v1988 = vand.u32 %v718, 4294901760
        %1989 = vmatprep.subr.mxu0 %v1988
        %v1990 = vand.u32 %v717, 4294901760
        %1991 = vmatpush1.msra.mxu0 %v1990
        %v1992 = vand.u32 %v726, 4294901760
        %1993 = vmatprep.subr.mxu0 %v1992
        %v1994 = vand.u32 %v725, 4294901760
        %1995 = vmatpush1.msra.mxu0 %v1994
        %v1996 = vand.u32 %v734, 4294901760
        %1997 = vmatprep.subr.mxu0 %v1996
        %v1998 = vand.u32 %v733, 4294901760
        %1999 = vmatpush1.msra.mxu0 %v1998
        %v2000 = vand.u32 %v742, 4294901760
        %2001 = vmatprep.subr.mxu0 %v2000
        %v2002 = vand.u32 %v741, 4294901760
        %2003 = vmatpush1.msra.mxu0 %v2002
        %v2004 = vand.u32 %v750, 4294901760
        %2005 = vmatprep.subr.mxu0 %v2004
        %v2006 = vand.u32 %v749, 4294901760
        %2007 = vmatpush1.msra.mxu0 %v2006
        %v2008 = vand.u32 %v758, 4294901760
        %2009 = vmatprep.subr.mxu0 %v2008
        %v2010 = vand.u32 %v757, 4294901760
        %2011 = vmatpush1.msra.mxu0 %v2010
        %v2012 = vand.u32 %v766, 4294901760
        %2013 = vmatprep.subr.mxu0 %v2012
        %v2014 = vand.u32 %v765, 4294901760
        %2015 = vmatpush1.msra.mxu0 %v2014
        %v2016 = vand.u32 %v774, 4294901760
        %2017 = vmatprep.subr.mxu0 %v2016
        %v2018 = vand.u32 %v773, 4294901760
        %2019 = vmatpush1.msra.mxu0 %v2018
        %2020 = vmatprep.subr.mxu0 0.0
        %2021 = vmatpush1.msra.mxu0 0.0
        %2022 = vmatprep.subr.mxu0 0.0
        %2023 = vmatpush1.msra.mxu0 0.0
        %2024 = vmatprep.subr.mxu0 0.0
        %2025 = vmatpush1.msra.mxu0 0.0
        %2026 = vmatprep.subr.mxu0 0.0
        %2027 = vmatpush1.msra.mxu0 0.0
        %2028 = vmatprep.subr.mxu0 0.0
        %2029 = vmatpush1.msra.mxu0 0.0
        %2030 = vmatprep.subr.mxu0 0.0
        %2031 = vmatpush1.msra.mxu0 0.0
        %2032 = vmatprep.subr.mxu0 0.0
        %2033 = vmatpush1.msra.mxu0 0.0
        %2034 = vmatprep.subr.mxu0 0.0
        %2035 = vmatpush1.msra.mxu0 0.0
        %2036 = vmatprep.subr.mxu0 0.0
        %2037 = vmatpush1.msra.mxu0 0.0
        %2038 = vmatprep.subr.mxu0 0.0
        %2039 = vmatpush1.msra.mxu0 0.0
        %2040 = vmatprep.subr.mxu0 0.0
        %2041 = vmatpush1.msra.mxu0 0.0
        %2042 = vmatprep.subr.mxu0 0.0
        %2043 = vmatpush1.msra.mxu0 0.0
        %2044 = vmatprep.subr.mxu0 0.0
        %2045 = vmatpush1.msra.mxu0 0.0
        %2046 = vmatprep.subr.mxu0 0.0
        %2047 = vmatpush1.msra.mxu0 0.0
        %2048 = vmatprep.subr.mxu0 0.0
        %2049 = vmatpush1.msra.mxu0 0.0
        %2050 = vmatprep.subr.mxu0 0.0
        %2051 = vmatpush1.msra.mxu0 0.0
        %2052 = vmatprep.subr.mxu0 0.0
        %2053 = vmatpush1.msra.mxu0 0.0
        %2054 = vmatprep.subr.mxu0 0.0
        %2055 = vmatpush1.msra.mxu0 0.0
        %2056 = vmatprep.subr.mxu0 0.0
        %2057 = vmatpush1.msra.mxu0 0.0
        %2058 = vmatprep.subr.mxu0 0.0
        %2059 = vmatpush1.msra.mxu0 0.0
        %2060 = vmatprep.subr.mxu0 0.0
        %2061 = vmatpush1.msra.mxu0 0.0
        %2062 = vmatprep.subr.mxu0 0.0
        %2063 = vmatpush1.msra.mxu0 0.0
        %2064 = vmatprep.subr.mxu0 0.0
        %2065 = vmatpush1.msra.mxu0 0.0
        %2066 = vmatprep.subr.mxu0 0.0
        %2067 = vmatpush1.msra.mxu0 0.0
        %2068 = vmatprep.mubr.f32.mxu0 0.0
        %v2069 = vand.u32 %v780, 4294901760
        %2070 = vmatmul.mubr.f32.gmra.mrb[0].mxu0 %v2069
        %v2071 = vpop.f32.mrb[0].mxu0
        %v2072 = vadd.f32 %v1984, %v2071
        %v2073 = vpop.f32.mrb[0].mxu0
        %v2074 = vadd.f32 %v1986, %v2073
        %2075 = vdwg.mxu0
        %v2076 = vand.u32 %v720, 4294901760
        %2077 = vmatprep.subr.mxu0 %v2076
        %v2078 = vand.u32 %v719, 4294901760
        %2079 = vmatpush1.msra.mxu0 %v2078
        %v2080 = vand.u32 %v728, 4294901760
        %2081 = vmatprep.subr.mxu0 %v2080
        %v2082 = vand.u32 %v727, 4294901760
        %2083 = vmatpush1.msra.mxu0 %v2082
        %v2084 = vand.u32 %v736, 4294901760
        %2085 = vmatprep.subr.mxu0 %v2084
        %v2086 = vand.u32 %v735, 4294901760
        %2087 = vmatpush1.msra.mxu0 %v2086
        %v2088 = vand.u32 %v744, 4294901760
        %2089 = vmatprep.subr.mxu0 %v2088
        %v2090 = vand.u32 %v743, 4294901760
        %2091 = vmatpush1.msra.mxu0 %v2090
        %v2092 = vand.u32 %v752, 4294901760
        %2093 = vmatprep.subr.mxu0 %v2092
        %v2094 = vand.u32 %v751, 4294901760
        %2095 = vmatpush1.msra.mxu0 %v2094
        %v2096 = vand.u32 %v760, 4294901760
        %2097 = vmatprep.subr.mxu0 %v2096
        %v2098 = vand.u32 %v759, 4294901760
        %2099 = vmatpush1.msra.mxu0 %v2098
        %v2100 = vand.u32 %v768, 4294901760
        %2101 = vmatprep.subr.mxu0 %v2100
        %v2102 = vand.u32 %v767, 4294901760
        %2103 = vmatpush1.msra.mxu0 %v2102
        %v2104 = vand.u32 %v776, 4294901760
        %2105 = vmatprep.subr.mxu0 %v2104
        %v2106 = vand.u32 %v775, 4294901760
        %2107 = vmatpush1.msra.mxu0 %v2106
        %2108 = vmatprep.subr.mxu0 0.0
        %2109 = vmatpush1.msra.mxu0 0.0
        %2110 = vmatprep.subr.mxu0 0.0
        %2111 = vmatpush1.msra.mxu0 0.0
        %2112 = vmatprep.subr.mxu0 0.0
        %2113 = vmatpush1.msra.mxu0 0.0
        %2114 = vmatprep.subr.mxu0 0.0
        %2115 = vmatpush1.msra.mxu0 0.0
        %2116 = vmatprep.subr.mxu0 0.0
        %2117 = vmatpush1.msra.mxu0 0.0
        %2118 = vmatprep.subr.mxu0 0.0
        %2119 = vmatpush1.msra.mxu0 0.0
        %2120 = vmatprep.subr.mxu0 0.0
        %2121 = vmatpush1.msra.mxu0 0.0
        %2122 = vmatprep.subr.mxu0 0.0
        %2123 = vmatpush1.msra.mxu0 0.0
        %2124 = vmatprep.subr.mxu0 0.0
        %2125 = vmatpush1.msra.mxu0 0.0
        %2126 = vmatprep.subr.mxu0 0.0
        %2127 = vmatpush1.msra.mxu0 0.0
        %2128 = vmatprep.subr.mxu0 0.0
        %2129 = vmatpush1.msra.mxu0 0.0
        %2130 = vmatprep.subr.mxu0 0.0
        %2131 = vmatpush1.msra.mxu0 0.0
        %2132 = vmatprep.subr.mxu0 0.0
        %2133 = vmatpush1.msra.mxu0 0.0
        %2134 = vmatprep.subr.mxu0 0.0
        %2135 = vmatpush1.msra.mxu0 0.0
        %2136 = vmatprep.subr.mxu0 0.0
        %2137 = vmatpush1.msra.mxu0 0.0
        %2138 = vmatprep.subr.mxu0 0.0
        %2139 = vmatpush1.msra.mxu0 0.0
        %2140 = vmatprep.subr.mxu0 0.0
        %2141 = vmatpush1.msra.mxu0 0.0
        %2142 = vmatprep.subr.mxu0 0.0
        %2143 = vmatpush1.msra.mxu0 0.0
        %2144 = vmatprep.subr.mxu0 0.0
        %2145 = vmatpush1.msra.mxu0 0.0
        %2146 = vmatprep.subr.mxu0 0.0
        %2147 = vmatpush1.msra.mxu0 0.0
        %2148 = vmatprep.subr.mxu0 0.0
        %2149 = vmatpush1.msra.mxu0 0.0
        %2150 = vmatprep.subr.mxu0 0.0
        %2151 = vmatpush1.msra.mxu0 0.0
        %2152 = vmatprep.subr.mxu0 0.0
        %2153 = vmatpush1.msra.mxu0 0.0
        %2154 = vmatprep.subr.mxu0 0.0
        %2155 = vmatpush1.msra.mxu0 0.0
        %2156 = vmatprep.mubr.f32.mxu0 0.0
        %v2157 = vand.u32 %v780, 4294901760
        %v2158 = vsub.f32 %v780, %v2157
        %v2159 = vand.u32 %v2158, 4294901760
        %v2160 = vsub.f32 %v2158, %v2159
        %v2161 = vand.u32 %v2160, 4294901760
        %2162 = vmatmul.mubr.f32.gmra.mrb[0].mxu0 %v2161
        %v2163 = vpop.f32.mrb[0].mxu0
        %v2164 = vadd.f32 0.0, %v2163
        %v2165 = vpop.f32.mrb[0].mxu0
        %v2166 = vadd.f32 0.0, %v2165
        %2167 = vdwg.mxu0
        %v2168 = vand.u32 %v720, 4294901760
        %v2169 = vsub.f32 %v720, %v2168
        %v2170 = vand.u32 %v2169, 4294901760
        %v2171 = vsub.f32 %v2169, %v2170
        %v2172 = vand.u32 %v2171, 4294901760
        %2173 = vmatprep.subr.mxu0 %v2172
        %v2174 = vand.u32 %v719, 4294901760
        %v2175 = vsub.f32 %v719, %v2174
        %v2176 = vand.u32 %v2175, 4294901760
        %v2177 = vsub.f32 %v2175, %v2176
        %v2178 = vand.u32 %v2177, 4294901760
        %2179 = vmatpush1.msra.mxu0 %v2178
        %v2180 = vand.u32 %v728, 4294901760
        %v2181 = vsub.f32 %v728, %v2180
        %v2182 = vand.u32 %v2181, 4294901760
        %v2183 = vsub.f32 %v2181, %v2182
        %v2184 = vand.u32 %v2183, 4294901760
        %2185 = vmatprep.subr.mxu0 %v2184
        %v2186 = vand.u32 %v727, 4294901760
        %v2187 = vsub.f32 %v727, %v2186
        %v2188 = vand.u32 %v2187, 4294901760
        %v2189 = vsub.f32 %v2187, %v2188
        %v2190 = vand.u32 %v2189, 4294901760
        %2191 = vmatpush1.msra.mxu0 %v2190
        %v2192 = vand.u32 %v736, 4294901760
        %v2193 = vsub.f32 %v736, %v2192
        %v2194 = vand.u32 %v2193, 4294901760
        %v2195 = vsub.f32 %v2193, %v2194
        %v2196 = vand.u32 %v2195, 4294901760
        %2197 = vmatprep.subr.mxu0 %v2196
        %v2198 = vand.u32 %v735, 4294901760
        %v2199 = vsub.f32 %v735, %v2198
        %v2200 = vand.u32 %v2199, 4294901760
        %v2201 = vsub.f32 %v2199, %v2200
        %v2202 = vand.u32 %v2201, 4294901760
        %2203 = vmatpush1.msra.mxu0 %v2202
        %v2204 = vand.u32 %v744, 4294901760
        %v2205 = vsub.f32 %v744, %v2204
        %v2206 = vand.u32 %v2205, 4294901760
        %v2207 = vsub.f32 %v2205, %v2206
        %v2208 = vand.u32 %v2207, 4294901760
        %2209 = vmatprep.subr.mxu0 %v2208
        %v2210 = vand.u32 %v743, 4294901760
        %v2211 = vsub.f32 %v743, %v2210
        %v2212 = vand.u32 %v2211, 4294901760
        %v2213 = vsub.f32 %v2211, %v2212
        %v2214 = vand.u32 %v2213, 4294901760
        %2215 = vmatpush1.msra.mxu0 %v2214
        %v2216 = vand.u32 %v752, 4294901760
        %v2217 = vsub.f32 %v752, %v2216
        %v2218 = vand.u32 %v2217, 4294901760
        %v2219 = vsub.f32 %v2217, %v2218
        %v2220 = vand.u32 %v2219, 4294901760
        %2221 = vmatprep.subr.mxu0 %v2220
        %v2222 = vand.u32 %v751, 4294901760
        %v2223 = vsub.f32 %v751, %v2222
        %v2224 = vand.u32 %v2223, 4294901760
        %v2225 = vsub.f32 %v2223, %v2224
        %v2226 = vand.u32 %v2225, 4294901760
        %2227 = vmatpush1.msra.mxu0 %v2226
        %v2228 = vand.u32 %v760, 4294901760
        %v2229 = vsub.f32 %v760, %v2228
        %v2230 = vand.u32 %v2229, 4294901760
        %v2231 = vsub.f32 %v2229, %v2230
        %v2232 = vand.u32 %v2231, 4294901760
        %2233 = vmatprep.subr.mxu0 %v2232
        %v2234 = vand.u32 %v759, 4294901760
        %v2235 = vsub.f32 %v759, %v2234
        %v2236 = vand.u32 %v2235, 4294901760
        %v2237 = vsub.f32 %v2235, %v2236
        %v2238 = vand.u32 %v2237, 4294901760
        %2239 = vmatpush1.msra.mxu0 %v2238
        %v2240 = vand.u32 %v768, 4294901760
        %v2241 = vsub.f32 %v768, %v2240
        %v2242 = vand.u32 %v2241, 4294901760
        %v2243 = vsub.f32 %v2241, %v2242
        %v2244 = vand.u32 %v2243, 4294901760
        %2245 = vmatprep.subr.mxu0 %v2244
        %v2246 = vand.u32 %v767, 4294901760
        %v2247 = vsub.f32 %v767, %v2246
        %v2248 = vand.u32 %v2247, 4294901760
        %v2249 = vsub.f32 %v2247, %v2248
        %v2250 = vand.u32 %v2249, 4294901760
        %2251 = vmatpush1.msra.mxu0 %v2250
        %v2252 = vand.u32 %v776, 4294901760
        %v2253 = vsub.f32 %v776, %v2252
        %v2254 = vand.u32 %v2253, 4294901760
        %v2255 = vsub.f32 %v2253, %v2254
        %v2256 = vand.u32 %v2255, 4294901760
        %2257 = vmatprep.subr.mxu0 %v2256
        %v2258 = vand.u32 %v775, 4294901760
        %v2259 = vsub.f32 %v775, %v2258
        %v2260 = vand.u32 %v2259, 4294901760
        %v2261 = vsub.f32 %v2259, %v2260
        %v2262 = vand.u32 %v2261, 4294901760
        %2263 = vmatpush1.msra.mxu0 %v2262
        %2264 = vmatprep.subr.mxu0 0.0
        %2265 = vmatpush1.msra.mxu0 0.0
        %2266 = vmatprep.subr.mxu0 0.0
        %2267 = vmatpush1.msra.mxu0 0.0
        %2268 = vmatprep.subr.mxu0 0.0
        %2269 = vmatpush1.msra.mxu0 0.0
        %2270 = vmatprep.subr.mxu0 0.0
        %2271 = vmatpush1.msra.mxu0 0.0
        %2272 = vmatprep.subr.mxu0 0.0
        %2273 = vmatpush1.msra.mxu0 0.0
        %2274 = vmatprep.subr.mxu0 0.0
        %2275 = vmatpush1.msra.mxu0 0.0
        %2276 = vmatprep.subr.mxu0 0.0
        %2277 = vmatpush1.msra.mxu0 0.0
        %2278 = vmatprep.subr.mxu0 0.0
        %2279 = vmatpush1.msra.mxu0 0.0
        %2280 = vmatprep.subr.mxu0 0.0
        %2281 = vmatpush1.msra.mxu0 0.0
        %2282 = vmatprep.subr.mxu0 0.0
        %2283 = vmatpush1.msra.mxu0 0.0
        %2284 = vmatprep.subr.mxu0 0.0
        %2285 = vmatpush1.msra.mxu0 0.0
        %2286 = vmatprep.subr.mxu0 0.0
        %2287 = vmatpush1.msra.mxu0 0.0
        %2288 = vmatprep.subr.mxu0 0.0
        %2289 = vmatpush1.msra.mxu0 0.0
        %2290 = vmatprep.subr.mxu0 0.0
        %2291 = vmatpush1.msra.mxu0 0.0
        %2292 = vmatprep.subr.mxu0 0.0
        %2293 = vmatpush1.msra.mxu0 0.0
        %2294 = vmatprep.subr.mxu0 0.0
        %2295 = vmatpush1.msra.mxu0 0.0
        %2296 = vmatprep.subr.mxu0 0.0
        %2297 = vmatpush1.msra.mxu0 0.0
        %2298 = vmatprep.subr.mxu0 0.0
        %2299 = vmatpush1.msra.mxu0 0.0
        %2300 = vmatprep.subr.mxu0 0.0
        %2301 = vmatpush1.msra.mxu0 0.0
        %2302 = vmatprep.subr.mxu0 0.0
        %2303 = vmatpush1.msra.mxu0 0.0
        %2304 = vmatprep.subr.mxu0 0.0
        %2305 = vmatpush1.msra.mxu0 0.0
        %2306 = vmatprep.subr.mxu0 0.0
        %2307 = vmatpush1.msra.mxu0 0.0
        %2308 = vmatprep.subr.mxu0 0.0
        %2309 = vmatpush1.msra.mxu0 0.0
        %2310 = vmatprep.subr.mxu0 0.0
        %2311 = vmatpush1.msra.mxu0 0.0
        %2312 = vmatprep.mubr.f32.mxu0 0.0
        %v2313 = vand.u32 %v780, 4294901760
        %2314 = vmatmul.mubr.f32.gmra.mrb[0].mxu0 %v2313
        %v2315 = vpop.f32.mrb[0].mxu0
        %v2316 = vadd.f32 %v2164, %v2315
        %v2317 = vpop.f32.mrb[0].mxu0
        %v2318 = vadd.f32 %v2166, %v2317
        %2319 = vdwg.mxu0
        %v2320 = vand.u32 %v720, 4294901760
        %v2321 = vsub.f32 %v720, %v2320
        %2322 = vmatprep.subr.mxu0 %v2321
        %v2323 = vand.u32 %v719, 4294901760
        %v2324 = vsub.f32 %v719, %v2323
        %2325 = vmatpush1.msra.mxu0 %v2324
        %v2326 = vand.u32 %v728, 4294901760
        %v2327 = vsub.f32 %v728, %v2326
        %2328 = vmatprep.subr.mxu0 %v2327
        %v2329 = vand.u32 %v727, 4294901760
        %v2330 = vsub.f32 %v727, %v2329
        %2331 = vmatpush1.msra.mxu0 %v2330
        %v2332 = vand.u32 %v736, 4294901760
        %v2333 = vsub.f32 %v736, %v2332
        %2334 = vmatprep.subr.mxu0 %v2333
        %v2335 = vand.u32 %v735, 4294901760
        %v2336 = vsub.f32 %v735, %v2335
        %2337 = vmatpush1.msra.mxu0 %v2336
        %v2338 = vand.u32 %v744, 4294901760
        %v2339 = vsub.f32 %v744, %v2338
        %2340 = vmatprep.subr.mxu0 %v2339
        %v2341 = vand.u32 %v743, 4294901760
        %v2342 = vsub.f32 %v743, %v2341
        %2343 = vmatpush1.msra.mxu0 %v2342
        %v2344 = vand.u32 %v752, 4294901760
        %v2345 = vsub.f32 %v752, %v2344
        %2346 = vmatprep.subr.mxu0 %v2345
        %v2347 = vand.u32 %v751, 4294901760
        %v2348 = vsub.f32 %v751, %v2347
        %2349 = vmatpush1.msra.mxu0 %v2348
        %v2350 = vand.u32 %v760, 4294901760
        %v2351 = vsub.f32 %v760, %v2350
        %2352 = vmatprep.subr.mxu0 %v2351
        %v2353 = vand.u32 %v759, 4294901760
        %v2354 = vsub.f32 %v759, %v2353
        %2355 = vmatpush1.msra.mxu0 %v2354
        %v2356 = vand.u32 %v768, 4294901760
        %v2357 = vsub.f32 %v768, %v2356
        %2358 = vmatprep.subr.mxu0 %v2357
        %v2359 = vand.u32 %v767, 4294901760
        %v2360 = vsub.f32 %v767, %v2359
        %2361 = vmatpush1.msra.mxu0 %v2360
        %v2362 = vand.u32 %v776, 4294901760
        %v2363 = vsub.f32 %v776, %v2362
        %2364 = vmatprep.subr.mxu0 %v2363
        %v2365 = vand.u32 %v775, 4294901760
        %v2366 = vsub.f32 %v775, %v2365
        %2367 = vmatpush1.msra.mxu0 %v2366
        %2368 = vmatprep.subr.mxu0 0.0
        %2369 = vmatpush1.msra.mxu0 0.0
        %2370 = vmatprep.subr.mxu0 0.0
        %2371 = vmatpush1.msra.mxu0 0.0
        %2372 = vmatprep.subr.mxu0 0.0
        %2373 = vmatpush1.msra.mxu0 0.0
        %2374 = vmatprep.subr.mxu0 0.0
        %2375 = vmatpush1.msra.mxu0 0.0
        %2376 = vmatprep.subr.mxu0 0.0
        %2377 = vmatpush1.msra.mxu0 0.0
        %2378 = vmatprep.subr.mxu0 0.0
        %2379 = vmatpush1.msra.mxu0 0.0
        %2380 = vmatprep.subr.mxu0 0.0
        %2381 = vmatpush1.msra.mxu0 0.0
        %2382 = vmatprep.subr.mxu0 0.0
        %2383 = vmatpush1.msra.mxu0 0.0
        %2384 = vmatprep.subr.mxu0 0.0
        %2385 = vmatpush1.msra.mxu0 0.0
        %2386 = vmatprep.subr.mxu0 0.0
        %2387 = vmatpush1.msra.mxu0 0.0
        %2388 = vmatprep.subr.mxu0 0.0
        %2389 = vmatpush1.msra.mxu0 0.0
        %2390 = vmatprep.subr.mxu0 0.0
        %2391 = vmatpush1.msra.mxu0 0.0
        %2392 = vmatprep.subr.mxu0 0.0
        %2393 = vmatpush1.msra.mxu0 0.0
        %2394 = vmatprep.subr.mxu0 0.0
        %2395 = vmatpush1.msra.mxu0 0.0
        %2396 = vmatprep.subr.mxu0 0.0
        %2397 = vmatpush1.msra.mxu0 0.0
        %2398 = vmatprep.subr.mxu0 0.0
        %2399 = vmatpush1.msra.mxu0 0.0
        %2400 = vmatprep.subr.mxu0 0.0
        %2401 = vmatpush1.msra.mxu0 0.0
        %2402 = vmatprep.subr.mxu0 0.0
        %2403 = vmatpush1.msra.mxu0 0.0
        %2404 = vmatprep.subr.mxu0 0.0
        %2405 = vmatpush1.msra.mxu0 0.0
        %2406 = vmatprep.subr.mxu0 0.0
        %2407 = vmatpush1.msra.mxu0 0.0
        %2408 = vmatprep.subr.mxu0 0.0
        %2409 = vmatpush1.msra.mxu0 0.0
        %2410 = vmatprep.subr.mxu0 0.0
        %2411 = vmatpush1.msra.mxu0 0.0
        %2412 = vmatprep.subr.mxu0 0.0
        %2413 = vmatpush1.msra.mxu0 0.0
        %2414 = vmatprep.subr.mxu0 0.0
        %2415 = vmatpush1.msra.mxu0 0.0
        %2416 = vmatprep.mubr.f32.mxu0 0.0
        %v2417 = vand.u32 %v780, 4294901760
        %v2418 = vsub.f32 %v780, %v2417
        %2419 = vmatmul.mubr.f32.gmra.mrb[0].mxu0 %v2418
        %v2420 = vpop.f32.mrb[0].mxu0
        %v2421 = vadd.f32 %v2316, %v2420
        %v2422 = vpop.f32.mrb[0].mxu0
        %v2423 = vadd.f32 %v2318, %v2422
        %2424 = vdwg.mxu0
        %v2425 = vand.u32 %v720, 4294901760
        %2426 = vmatprep.subr.mxu0 %v2425
        %v2427 = vand.u32 %v719, 4294901760
        %2428 = vmatpush1.msra.mxu0 %v2427
        %v2429 = vand.u32 %v728, 4294901760
        %2430 = vmatprep.subr.mxu0 %v2429
        %v2431 = vand.u32 %v727, 4294901760
        %2432 = vmatpush1.msra.mxu0 %v2431
        %v2433 = vand.u32 %v736, 4294901760
        %2434 = vmatprep.subr.mxu0 %v2433
        %v2435 = vand.u32 %v735, 4294901760
        %2436 = vmatpush1.msra.mxu0 %v2435
        %v2437 = vand.u32 %v744, 4294901760
        %2438 = vmatprep.subr.mxu0 %v2437
        %v2439 = vand.u32 %v743, 4294901760
        %2440 = vmatpush1.msra.mxu0 %v2439
        %v2441 = vand.u32 %v752, 4294901760
        %2442 = vmatprep.subr.mxu0 %v2441
        %v2443 = vand.u32 %v751, 4294901760
        %2444 = vmatpush1.msra.mxu0 %v2443
        %v2445 = vand.u32 %v760, 4294901760
        %2446 = vmatprep.subr.mxu0 %v2445
        %v2447 = vand.u32 %v759, 4294901760
        %2448 = vmatpush1.msra.mxu0 %v2447
        %v2449 = vand.u32 %v768, 4294901760
        %2450 = vmatprep.subr.mxu0 %v2449
        %v2451 = vand.u32 %v767, 4294901760
        %2452 = vmatpush1.msra.mxu0 %v2451
        %v2453 = vand.u32 %v776, 4294901760
        %2454 = vmatprep.subr.mxu0 %v2453
        %v2455 = vand.u32 %v775, 4294901760
        %2456 = vmatpush1.msra.mxu0 %v2455
        %2457 = vmatprep.subr.mxu0 0.0
        %2458 = vmatpush1.msra.mxu0 0.0
        %2459 = vmatprep.subr.mxu0 0.0
        %2460 = vmatpush1.msra.mxu0 0.0
        %2461 = vmatprep.subr.mxu0 0.0
        %2462 = vmatpush1.msra.mxu0 0.0
        %2463 = vmatprep.subr.mxu0 0.0
        %2464 = vmatpush1.msra.mxu0 0.0
        %2465 = vmatprep.subr.mxu0 0.0
        %2466 = vmatpush1.msra.mxu0 0.0
        %2467 = vmatprep.subr.mxu0 0.0
        %2468 = vmatpush1.msra.mxu0 0.0
        %2469 = vmatprep.subr.mxu0 0.0
        %2470 = vmatpush1.msra.mxu0 0.0
        %2471 = vmatprep.subr.mxu0 0.0
        %2472 = vmatpush1.msra.mxu0 0.0
        %2473 = vmatprep.subr.mxu0 0.0
        %2474 = vmatpush1.msra.mxu0 0.0
        %2475 = vmatprep.subr.mxu0 0.0
        %2476 = vmatpush1.msra.mxu0 0.0
        %2477 = vmatprep.subr.mxu0 0.0
        %2478 = vmatpush1.msra.mxu0 0.0
        %2479 = vmatprep.subr.mxu0 0.0
        %2480 = vmatpush1.msra.mxu0 0.0
        %2481 = vmatprep.subr.mxu0 0.0
        %2482 = vmatpush1.msra.mxu0 0.0
        %2483 = vmatprep.subr.mxu0 0.0
        %2484 = vmatpush1.msra.mxu0 0.0
        %2485 = vmatprep.subr.mxu0 0.0
        %2486 = vmatpush1.msra.mxu0 0.0
        %2487 = vmatprep.subr.mxu0 0.0
        %2488 = vmatpush1.msra.mxu0 0.0
        %2489 = vmatprep.subr.mxu0 0.0
        %2490 = vmatpush1.msra.mxu0 0.0
        %2491 = vmatprep.subr.mxu0 0.0
        %2492 = vmatpush1.msra.mxu0 0.0
        %2493 = vmatprep.subr.mxu0 0.0
        %2494 = vmatpush1.msra.mxu0 0.0
        %2495 = vmatprep.subr.mxu0 0.0
        %2496 = vmatpush1.msra.mxu0 0.0
        %2497 = vmatprep.subr.mxu0 0.0
        %2498 = vmatpush1.msra.mxu0 0.0
        %2499 = vmatprep.subr.mxu0 0.0
        %2500 = vmatpush1.msra.mxu0 0.0
        %2501 = vmatprep.subr.mxu0 0.0
        %2502 = vmatpush1.msra.mxu0 0.0
        %2503 = vmatprep.subr.mxu0 0.0
        %2504 = vmatpush1.msra.mxu0 0.0
        %2505 = vmatprep.mubr.f32.mxu0 0.0
        %v2506 = vand.u32 %v780, 4294901760
        %v2507 = vsub.f32 %v780, %v2506
        %v2508 = vand.u32 %v2507, 4294901760
        %2509 = vmatmul.mubr.f32.gmra.mrb[0].mxu0 %v2508
        %v2510 = vpop.f32.mrb[0].mxu0
        %v2511 = vadd.f32 %v2421, %v2510
        %v2512 = vpop.f32.mrb[0].mxu0
        %v2513 = vadd.f32 %v2423, %v2512
        %2514 = vdwg.mxu0
        %v2515 = vand.u32 %v720, 4294901760
        %v2516 = vsub.f32 %v720, %v2515
        %v2517 = vand.u32 %v2516, 4294901760
        %2518 = vmatprep.subr.mxu0 %v2517
        %v2519 = vand.u32 %v719, 4294901760
        %v2520 = vsub.f32 %v719, %v2519
        %v2521 = vand.u32 %v2520, 4294901760
        %2522 = vmatpush1.msra.mxu0 %v2521
        %v2523 = vand.u32 %v728, 4294901760
        %v2524 = vsub.f32 %v728, %v2523
        %v2525 = vand.u32 %v2524, 4294901760
        %2526 = vmatprep.subr.mxu0 %v2525
        %v2527 = vand.u32 %v727, 4294901760
        %v2528 = vsub.f32 %v727, %v2527
        %v2529 = vand.u32 %v2528, 4294901760
        %2530 = vmatpush1.msra.mxu0 %v2529
        %v2531 = vand.u32 %v736, 4294901760
        %v2532 = vsub.f32 %v736, %v2531
        %v2533 = vand.u32 %v2532, 4294901760
        %2534 = vmatprep.subr.mxu0 %v2533
        %v2535 = vand.u32 %v735, 4294901760
        %v2536 = vsub.f32 %v735, %v2535
        %v2537 = vand.u32 %v2536, 4294901760
        %2538 = vmatpush1.msra.mxu0 %v2537
        %v2539 = vand.u32 %v744, 4294901760
        %v2540 = vsub.f32 %v744, %v2539
        %v2541 = vand.u32 %v2540, 4294901760
        %2542 = vmatprep.subr.mxu0 %v2541
        %v2543 = vand.u32 %v743, 4294901760
        %v2544 = vsub.f32 %v743, %v2543
        %v2545 = vand.u32 %v2544, 4294901760
        %2546 = vmatpush1.msra.mxu0 %v2545
        %v2547 = vand.u32 %v752, 4294901760
        %v2548 = vsub.f32 %v752, %v2547
        %v2549 = vand.u32 %v2548, 4294901760
        %2550 = vmatprep.subr.mxu0 %v2549
        %v2551 = vand.u32 %v751, 4294901760
        %v2552 = vsub.f32 %v751, %v2551
        %v2553 = vand.u32 %v2552, 4294901760
        %2554 = vmatpush1.msra.mxu0 %v2553
        %v2555 = vand.u32 %v760, 4294901760
        %v2556 = vsub.f32 %v760, %v2555
        %v2557 = vand.u32 %v2556, 4294901760
        %2558 = vmatprep.subr.mxu0 %v2557
        %v2559 = vand.u32 %v759, 4294901760
        %v2560 = vsub.f32 %v759, %v2559
        %v2561 = vand.u32 %v2560, 4294901760
        %2562 = vmatpush1.msra.mxu0 %v2561
        %v2563 = vand.u32 %v768, 4294901760
        %v2564 = vsub.f32 %v768, %v2563
        %v2565 = vand.u32 %v2564, 4294901760
        %2566 = vmatprep.subr.mxu0 %v2565
        %v2567 = vand.u32 %v767, 4294901760
        %v2568 = vsub.f32 %v767, %v2567
        %v2569 = vand.u32 %v2568, 4294901760
        %2570 = vmatpush1.msra.mxu0 %v2569
        %v2571 = vand.u32 %v776, 4294901760
        %v2572 = vsub.f32 %v776, %v2571
        %v2573 = vand.u32 %v2572, 4294901760
        %2574 = vmatprep.subr.mxu0 %v2573
        %v2575 = vand.u32 %v775, 4294901760
        %v2576 = vsub.f32 %v775, %v2575
        %v2577 = vand.u32 %v2576, 4294901760
        %2578 = vmatpush1.msra.mxu0 %v2577
        %2579 = vmatprep.subr.mxu0 0.0
        %2580 = vmatpush1.msra.mxu0 0.0
        %2581 = vmatprep.subr.mxu0 0.0
        %2582 = vmatpush1.msra.mxu0 0.0
        %2583 = vmatprep.subr.mxu0 0.0
        %2584 = vmatpush1.msra.mxu0 0.0
        %2585 = vmatprep.subr.mxu0 0.0
        %2586 = vmatpush1.msra.mxu0 0.0
        %2587 = vmatprep.subr.mxu0 0.0
        %2588 = vmatpush1.msra.mxu0 0.0
        %2589 = vmatprep.subr.mxu0 0.0
        %2590 = vmatpush1.msra.mxu0 0.0
        %2591 = vmatprep.subr.mxu0 0.0
        %2592 = vmatpush1.msra.mxu0 0.0
        %2593 = vmatprep.subr.mxu0 0.0
        %2594 = vmatpush1.msra.mxu0 0.0
        %2595 = vmatprep.subr.mxu0 0.0
        %2596 = vmatpush1.msra.mxu0 0.0
        %2597 = vmatprep.subr.mxu0 0.0
        %2598 = vmatpush1.msra.mxu0 0.0
        %2599 = vmatprep.subr.mxu0 0.0
        %2600 = vmatpush1.msra.mxu0 0.0
        %2601 = vmatprep.subr.mxu0 0.0
        %2602 = vmatpush1.msra.mxu0 0.0
        %2603 = vmatprep.subr.mxu0 0.0
        %2604 = vmatpush1.msra.mxu0 0.0
        %2605 = vmatprep.subr.mxu0 0.0
        %2606 = vmatpush1.msra.mxu0 0.0
        %2607 = vmatprep.subr.mxu0 0.0
        %2608 = vmatpush1.msra.mxu0 0.0
        %2609 = vmatprep.subr.mxu0 0.0
        %2610 = vmatpush1.msra.mxu0 0.0
        %2611 = vmatprep.subr.mxu0 0.0
        %2612 = vmatpush1.msra.mxu0 0.0
        %2613 = vmatprep.subr.mxu0 0.0
        %2614 = vmatpush1.msra.mxu0 0.0
        %2615 = vmatprep.subr.mxu0 0.0
        %2616 = vmatpush1.msra.mxu0 0.0
        %2617 = vmatprep.subr.mxu0 0.0
        %2618 = vmatpush1.msra.mxu0 0.0
        %2619 = vmatprep.subr.mxu0 0.0
        %2620 = vmatpush1.msra.mxu0 0.0
        %2621 = vmatprep.subr.mxu0 0.0
        %2622 = vmatpush1.msra.mxu0 0.0
        %2623 = vmatprep.subr.mxu0 0.0
        %2624 = vmatpush1.msra.mxu0 0.0
        %2625 = vmatprep.subr.mxu0 0.0
        %2626 = vmatpush1.msra.mxu0 0.0
        %2627 = vmatprep.mubr.f32.mxu0 0.0
        %v2628 = vand.u32 %v780, 4294901760
        %2629 = vmatmul.mubr.f32.gmra.mrb[0].mxu0 %v2628
        %v2630 = vpop.f32.mrb[0].mxu0
        %v2631 = vadd.f32 %v2511, %v2630
        %v2632 = vpop.f32.mrb[0].mxu0
        %v2633 = vadd.f32 %v2513, %v2632
        %2634 = vdwg.mxu0
        %v2635 = vand.u32 %v720, 4294901760
        %2636 = vmatprep.subr.mxu0 %v2635
        %v2637 = vand.u32 %v719, 4294901760
        %2638 = vmatpush1.msra.mxu0 %v2637
        %v2639 = vand.u32 %v728, 4294901760
        %2640 = vmatprep.subr.mxu0 %v2639
        %v2641 = vand.u32 %v727, 4294901760
        %2642 = vmatpush1.msra.mxu0 %v2641
        %v2643 = vand.u32 %v736, 4294901760
        %2644 = vmatprep.subr.mxu0 %v2643
        %v2645 = vand.u32 %v735, 4294901760
        %2646 = vmatpush1.msra.mxu0 %v2645
        %v2647 = vand.u32 %v744, 4294901760
        %2648 = vmatprep.subr.mxu0 %v2647
        %v2649 = vand.u32 %v743, 4294901760
        %2650 = vmatpush1.msra.mxu0 %v2649
        %v2651 = vand.u32 %v752, 4294901760
        %2652 = vmatprep.subr.mxu0 %v2651
        %v2653 = vand.u32 %v751, 4294901760
        %2654 = vmatpush1.msra.mxu0 %v2653
        %v2655 = vand.u32 %v760, 4294901760
        %2656 = vmatprep.subr.mxu0 %v2655
        %v2657 = vand.u32 %v759, 4294901760
        %2658 = vmatpush1.msra.mxu0 %v2657
        %v2659 = vand.u32 %v768, 4294901760
        %2660 = vmatprep.subr.mxu0 %v2659
        %v2661 = vand.u32 %v767, 4294901760
        %2662 = vmatpush1.msra.mxu0 %v2661
        %v2663 = vand.u32 %v776, 4294901760
        %2664 = vmatprep.subr.mxu0 %v2663
        %v2665 = vand.u32 %v775, 4294901760
        %2666 = vmatpush1.msra.mxu0 %v2665
        %2667 = vmatprep.subr.mxu0 0.0
        %2668 = vmatpush1.msra.mxu0 0.0
        %2669 = vmatprep.subr.mxu0 0.0
        %2670 = vmatpush1.msra.mxu0 0.0
        %2671 = vmatprep.subr.mxu0 0.0
        %2672 = vmatpush1.msra.mxu0 0.0
        %2673 = vmatprep.subr.mxu0 0.0
        %2674 = vmatpush1.msra.mxu0 0.0
        %2675 = vmatprep.subr.mxu0 0.0
        %2676 = vmatpush1.msra.mxu0 0.0
        %2677 = vmatprep.subr.mxu0 0.0
        %2678 = vmatpush1.msra.mxu0 0.0
        %2679 = vmatprep.subr.mxu0 0.0
        %2680 = vmatpush1.msra.mxu0 0.0
        %2681 = vmatprep.subr.mxu0 0.0
        %2682 = vmatpush1.msra.mxu0 0.0
        %2683 = vmatprep.subr.mxu0 0.0
        %2684 = vmatpush1.msra.mxu0 0.0
        %2685 = vmatprep.subr.mxu0 0.0
        %2686 = vmatpush1.msra.mxu0 0.0
        %2687 = vmatprep.subr.mxu0 0.0
        %2688 = vmatpush1.msra.mxu0 0.0
        %2689 = vmatprep.subr.mxu0 0.0
        %2690 = vmatpush1.msra.mxu0 0.0
        %2691 = vmatprep.subr.mxu0 0.0
        %2692 = vmatpush1.msra.mxu0 0.0
        %2693 = vmatprep.subr.mxu0 0.0
        %2694 = vmatpush1.msra.mxu0 0.0
        %2695 = vmatprep.subr.mxu0 0.0
        %2696 = vmatpush1.msra.mxu0 0.0
        %2697 = vmatprep.subr.mxu0 0.0
        %2698 = vmatpush1.msra.mxu0 0.0
        %2699 = vmatprep.subr.mxu0 0.0
        %2700 = vmatpush1.msra.mxu0 0.0
        %2701 = vmatprep.subr.mxu0 0.0
        %2702 = vmatpush1.msra.mxu0 0.0
        %2703 = vmatprep.subr.mxu0 0.0
        %2704 = vmatpush1.msra.mxu0 0.0
        %2705 = vmatprep.subr.mxu0 0.0
        %2706 = vmatpush1.msra.mxu0 0.0
        %2707 = vmatprep.subr.mxu0 0.0
        %2708 = vmatpush1.msra.mxu0 0.0
        %2709 = vmatprep.subr.mxu0 0.0
        %2710 = vmatpush1.msra.mxu0 0.0
        %2711 = vmatprep.subr.mxu0 0.0
        %2712 = vmatpush1.msra.mxu0 0.0
        %2713 = vmatprep.subr.mxu0 0.0
        %2714 = vmatpush1.msra.mxu0 0.0
        %2715 = vmatprep.mubr.f32.mxu0 0.0
        %v2716 = vand.u32 %v780, 4294901760
        %2717 = vmatmul.mubr.f32.gmra.mrb[0].mxu0 %v2716
        %v2718 = vpop.f32.mrb[0].mxu0
        %v2719 = vadd.f32 %v2631, %v2718
        %v2720 = vpop.f32.mrb[0].mxu0
        %v2721 = vadd.f32 %v2633, %v2720
        %2722 = vdwg.mxu0
        %v2723 = vand.u32 %v722, 4294901760
        %2724 = vmatprep.subr.mxu0 %v2723
        %v2725 = vand.u32 %v721, 4294901760
        %2726 = vmatpush1.msra.mxu0 %v2725
        %v2727 = vand.u32 %v730, 4294901760
        %2728 = vmatprep.subr.mxu0 %v2727
        %v2729 = vand.u32 %v729, 4294901760
        %2730 = vmatpush1.msra.mxu0 %v2729
        %v2731 = vand.u32 %v738, 4294901760
        %2732 = vmatprep.subr.mxu0 %v2731
        %v2733 = vand.u32 %v737, 4294901760
        %2734 = vmatpush1.msra.mxu0 %v2733
        %v2735 = vand.u32 %v746, 4294901760
        %2736 = vmatprep.subr.mxu0 %v2735
        %v2737 = vand.u32 %v745, 4294901760
        %2738 = vmatpush1.msra.mxu0 %v2737
        %v2739 = vand.u32 %v754, 4294901760
        %2740 = vmatprep.subr.mxu0 %v2739
        %v2741 = vand.u32 %v753, 4294901760
        %2742 = vmatpush1.msra.mxu0 %v2741
        %v2743 = vand.u32 %v762, 4294901760
        %2744 = vmatprep.subr.mxu0 %v2743
        %v2745 = vand.u32 %v761, 4294901760
        %2746 = vmatpush1.msra.mxu0 %v2745
        %v2747 = vand.u32 %v770, 4294901760
        %2748 = vmatprep.subr.mxu0 %v2747
        %v2749 = vand.u32 %v769, 4294901760
        %2750 = vmatpush1.msra.mxu0 %v2749
        %v2751 = vand.u32 %v778, 4294901760
        %2752 = vmatprep.subr.mxu0 %v2751
        %v2753 = vand.u32 %v777, 4294901760
        %2754 = vmatpush1.msra.mxu0 %v2753
        %2755 = vmatprep.subr.mxu0 0.0
        %2756 = vmatpush1.msra.mxu0 0.0
        %2757 = vmatprep.subr.mxu0 0.0
        %2758 = vmatpush1.msra.mxu0 0.0
        %2759 = vmatprep.subr.mxu0 0.0
        %2760 = vmatpush1.msra.mxu0 0.0
        %2761 = vmatprep.subr.mxu0 0.0
        %2762 = vmatpush1.msra.mxu0 0.0
        %2763 = vmatprep.subr.mxu0 0.0
        %2764 = vmatpush1.msra.mxu0 0.0
        %2765 = vmatprep.subr.mxu0 0.0
        %2766 = vmatpush1.msra.mxu0 0.0
        %2767 = vmatprep.subr.mxu0 0.0
        %2768 = vmatpush1.msra.mxu0 0.0
        %2769 = vmatprep.subr.mxu0 0.0
        %2770 = vmatpush1.msra.mxu0 0.0
        %2771 = vmatprep.subr.mxu0 0.0
        %2772 = vmatpush1.msra.mxu0 0.0
        %2773 = vmatprep.subr.mxu0 0.0
        %2774 = vmatpush1.msra.mxu0 0.0
        %2775 = vmatprep.subr.mxu0 0.0
        %2776 = vmatpush1.msra.mxu0 0.0
        %2777 = vmatprep.subr.mxu0 0.0
        %2778 = vmatpush1.msra.mxu0 0.0
        %2779 = vmatprep.subr.mxu0 0.0
        %2780 = vmatpush1.msra.mxu0 0.0
        %2781 = vmatprep.subr.mxu0 0.0
        %2782 = vmatpush1.msra.mxu0 0.0
        %2783 = vmatprep.subr.mxu0 0.0
        %2784 = vmatpush1.msra.mxu0 0.0
        %2785 = vmatprep.subr.mxu0 0.0
        %2786 = vmatpush1.msra.mxu0 0.0
        %2787 = vmatprep.subr.mxu0 0.0
        %2788 = vmatpush1.msra.mxu0 0.0
        %2789 = vmatprep.subr.mxu0 0.0
        %2790 = vmatpush1.msra.mxu0 0.0
        %2791 = vmatprep.subr.mxu0 0.0
        %2792 = vmatpush1.msra.mxu0 0.0
        %2793 = vmatprep.subr.mxu0 0.0
        %2794 = vmatpush1.msra.mxu0 0.0
        %2795 = vmatprep.subr.mxu0 0.0
        %2796 = vmatpush1.msra.mxu0 0.0
        %2797 = vmatprep.subr.mxu0 0.0
        %2798 = vmatpush1.msra.mxu0 0.0
        %2799 = vmatprep.subr.mxu0 0.0
        %2800 = vmatpush1.msra.mxu0 0.0
        %2801 = vmatprep.subr.mxu0 0.0
        %2802 = vmatpush1.msra.mxu0 0.0
        %2803 = vmatprep.mubr.f32.mxu0 0.0
        %v2804 = vand.u32 %v780, 4294901760
        %v2805 = vsub.f32 %v780, %v2804
        %v2806 = vand.u32 %v2805, 4294901760
        %v2807 = vsub.f32 %v2805, %v2806
        %v2808 = vand.u32 %v2807, 4294901760
        %2809 = vmatmul.mubr.f32.gmra.mrb[0].mxu0 %v2808
        %v2810 = vpop.f32.mrb[0].mxu0
        %v2811 = vadd.f32 0.0, %v2810
        %v2812 = vpop.f32.mrb[0].mxu0
        %v2813 = vadd.f32 0.0, %v2812
        %2814 = vdwg.mxu0
        %v2815 = vand.u32 %v722, 4294901760
        %v2816 = vsub.f32 %v722, %v2815
        %v2817 = vand.u32 %v2816, 4294901760
        %v2818 = vsub.f32 %v2816, %v2817
        %v2819 = vand.u32 %v2818, 4294901760
        %2820 = vmatprep.subr.mxu0 %v2819
        %v2821 = vand.u32 %v721, 4294901760
        %v2822 = vsub.f32 %v721, %v2821
        %v2823 = vand.u32 %v2822, 4294901760
        %v2824 = vsub.f32 %v2822, %v2823
        %v2825 = vand.u32 %v2824, 4294901760
        %2826 = vmatpush1.msra.mxu0 %v2825
        %v2827 = vand.u32 %v730, 4294901760
        %v2828 = vsub.f32 %v730, %v2827
        %v2829 = vand.u32 %v2828, 4294901760
        %v2830 = vsub.f32 %v2828, %v2829
        %v2831 = vand.u32 %v2830, 4294901760
        %2832 = vmatprep.subr.mxu0 %v2831
        %v2833 = vand.u32 %v729, 4294901760
        %v2834 = vsub.f32 %v729, %v2833
        %v2835 = vand.u32 %v2834, 4294901760
        %v2836 = vsub.f32 %v2834, %v2835
        %v2837 = vand.u32 %v2836, 4294901760
        %2838 = vmatpush1.msra.mxu0 %v2837
        %v2839 = vand.u32 %v738, 4294901760
        %v2840 = vsub.f32 %v738, %v2839
        %v2841 = vand.u32 %v2840, 4294901760
        %v2842 = vsub.f32 %v2840, %v2841
        %v2843 = vand.u32 %v2842, 4294901760
        %2844 = vmatprep.subr.mxu0 %v2843
        %v2845 = vand.u32 %v737, 4294901760
        %v2846 = vsub.f32 %v737, %v2845
        %v2847 = vand.u32 %v2846, 4294901760
        %v2848 = vsub.f32 %v2846, %v2847
        %v2849 = vand.u32 %v2848, 4294901760
        %2850 = vmatpush1.msra.mxu0 %v2849
        %v2851 = vand.u32 %v746, 4294901760
        %v2852 = vsub.f32 %v746, %v2851
        %v2853 = vand.u32 %v2852, 4294901760
        %v2854 = vsub.f32 %v2852, %v2853
        %v2855 = vand.u32 %v2854, 4294901760
        %2856 = vmatprep.subr.mxu0 %v2855
        %v2857 = vand.u32 %v745, 4294901760
        %v2858 = vsub.f32 %v745, %v2857
        %v2859 = vand.u32 %v2858, 4294901760
        %v2860 = vsub.f32 %v2858, %v2859
        %v2861 = vand.u32 %v2860, 4294901760
        %2862 = vmatpush1.msra.mxu0 %v2861
        %v2863 = vand.u32 %v754, 4294901760
        %v2864 = vsub.f32 %v754, %v2863
        %v2865 = vand.u32 %v2864, 4294901760
        %v2866 = vsub.f32 %v2864, %v2865
        %v2867 = vand.u32 %v2866, 4294901760
        %2868 = vmatprep.subr.mxu0 %v2867
        %v2869 = vand.u32 %v753, 4294901760
        %v2870 = vsub.f32 %v753, %v2869
        %v2871 = vand.u32 %v2870, 4294901760
        %v2872 = vsub.f32 %v2870, %v2871
        %v2873 = vand.u32 %v2872, 4294901760
        %2874 = vmatpush1.msra.mxu0 %v2873
        %v2875 = vand.u32 %v762, 4294901760
        %v2876 = vsub.f32 %v762, %v2875
        %v2877 = vand.u32 %v2876, 4294901760
        %v2878 = vsub.f32 %v2876, %v2877
        %v2879 = vand.u32 %v2878, 4294901760
        %2880 = vmatprep.subr.mxu0 %v2879
        %v2881 = vand.u32 %v761, 4294901760
        %v2882 = vsub.f32 %v761, %v2881
        %v2883 = vand.u32 %v2882, 4294901760
        %v2884 = vsub.f32 %v2882, %v2883
        %v2885 = vand.u32 %v2884, 4294901760
        %2886 = vmatpush1.msra.mxu0 %v2885
        %v2887 = vand.u32 %v770, 4294901760
        %v2888 = vsub.f32 %v770, %v2887
        %v2889 = vand.u32 %v2888, 4294901760
        %v2890 = vsub.f32 %v2888, %v2889
        %v2891 = vand.u32 %v2890, 4294901760
        %2892 = vmatprep.subr.mxu0 %v2891
        %v2893 = vand.u32 %v769, 4294901760
        %v2894 = vsub.f32 %v769, %v2893
        %v2895 = vand.u32 %v2894, 4294901760
        %v2896 = vsub.f32 %v2894, %v2895
        %v2897 = vand.u32 %v2896, 4294901760
        %2898 = vmatpush1.msra.mxu0 %v2897
        %v2899 = vand.u32 %v778, 4294901760
        %v2900 = vsub.f32 %v778, %v2899
        %v2901 = vand.u32 %v2900, 4294901760
        %v2902 = vsub.f32 %v2900, %v2901
        %v2903 = vand.u32 %v2902, 4294901760
        %2904 = vmatprep.subr.mxu0 %v2903
        %v2905 = vand.u32 %v777, 4294901760
        %v2906 = vsub.f32 %v777, %v2905
        %v2907 = vand.u32 %v2906, 4294901760
        %v2908 = vsub.f32 %v2906, %v2907
        %v2909 = vand.u32 %v2908, 4294901760
        %2910 = vmatpush1.msra.mxu0 %v2909
        %2911 = vmatprep.subr.mxu0 0.0
        %2912 = vmatpush1.msra.mxu0 0.0
        %2913 = vmatprep.subr.mxu0 0.0
        %2914 = vmatpush1.msra.mxu0 0.0
        %2915 = vmatprep.subr.mxu0 0.0
        %2916 = vmatpush1.msra.mxu0 0.0
        %2917 = vmatprep.subr.mxu0 0.0
        %2918 = vmatpush1.msra.mxu0 0.0
        %2919 = vmatprep.subr.mxu0 0.0
        %2920 = vmatpush1.msra.mxu0 0.0
        %2921 = vmatprep.subr.mxu0 0.0
        %2922 = vmatpush1.msra.mxu0 0.0
        %2923 = vmatprep.subr.mxu0 0.0
        %2924 = vmatpush1.msra.mxu0 0.0
        %2925 = vmatprep.subr.mxu0 0.0
        %2926 = vmatpush1.msra.mxu0 0.0
        %2927 = vmatprep.subr.mxu0 0.0
        %2928 = vmatpush1.msra.mxu0 0.0
        %2929 = vmatprep.subr.mxu0 0.0
        %2930 = vmatpush1.msra.mxu0 0.0
        %2931 = vmatprep.subr.mxu0 0.0
        %2932 = vmatpush1.msra.mxu0 0.0
        %2933 = vmatprep.subr.mxu0 0.0
        %2934 = vmatpush1.msra.mxu0 0.0
        %2935 = vmatprep.subr.mxu0 0.0
        %2936 = vmatpush1.msra.mxu0 0.0
        %2937 = vmatprep.subr.mxu0 0.0
        %2938 = vmatpush1.msra.mxu0 0.0
        %2939 = vmatprep.subr.mxu0 0.0
        %2940 = vmatpush1.msra.mxu0 0.0
        %2941 = vmatprep.subr.mxu0 0.0
        %2942 = vmatpush1.msra.mxu0 0.0
        %2943 = vmatprep.subr.mxu0 0.0
        %2944 = vmatpush1.msra.mxu0 0.0
        %2945 = vmatprep.subr.mxu0 0.0
        %2946 = vmatpush1.msra.mxu0 0.0
        %2947 = vmatprep.subr.mxu0 0.0
        %2948 = vmatpush1.msra.mxu0 0.0
        %2949 = vmatprep.subr.mxu0 0.0
        %2950 = vmatpush1.msra.mxu0 0.0
        %2951 = vmatprep.subr.mxu0 0.0
        %2952 = vmatpush1.msra.mxu0 0.0
        %2953 = vmatprep.subr.mxu0 0.0
        %2954 = vmatpush1.msra.mxu0 0.0
        %2955 = vmatprep.subr.mxu0 0.0
        %2956 = vmatpush1.msra.mxu0 0.0
        %2957 = vmatprep.subr.mxu0 0.0
        %2958 = vmatpush1.msra.mxu0 0.0
        %2959 = vmatprep.mubr.f32.mxu0 0.0
        %v2960 = vand.u32 %v780, 4294901760
        %2961 = vmatmul.mubr.f32.gmra.mrb[0].mxu0 %v2960
        %v2962 = vpop.f32.mrb[0].mxu0
        %v2963 = vadd.f32 %v2811, %v2962
        %v2964 = vpop.f32.mrb[0].mxu0
        %v2965 = vadd.f32 %v2813, %v2964
        %2966 = vdwg.mxu0
        %v2967 = vand.u32 %v722, 4294901760
        %v2968 = vsub.f32 %v722, %v2967
        %2969 = vmatprep.subr.mxu0 %v2968
        %v2970 = vand.u32 %v721, 4294901760
        %v2971 = vsub.f32 %v721, %v2970
        %2972 = vmatpush1.msra.mxu0 %v2971
        %v2973 = vand.u32 %v730, 4294901760
        %v2974 = vsub.f32 %v730, %v2973
        %2975 = vmatprep.subr.mxu0 %v2974
        %v2976 = vand.u32 %v729, 4294901760
        %v2977 = vsub.f32 %v729, %v2976
        %2978 = vmatpush1.msra.mxu0 %v2977
        %v2979 = vand.u32 %v738, 4294901760
        %v2980 = vsub.f32 %v738, %v2979
        %2981 = vmatprep.subr.mxu0 %v2980
        %v2982 = vand.u32 %v737, 4294901760
        %v2983 = vsub.f32 %v737, %v2982
        %2984 = vmatpush1.msra.mxu0 %v2983
        %v2985 = vand.u32 %v746, 4294901760
        %v2986 = vsub.f32 %v746, %v2985
        %2987 = vmatprep.subr.mxu0 %v2986
        %v2988 = vand.u32 %v745, 4294901760
        %v2989 = vsub.f32 %v745, %v2988
        %2990 = vmatpush1.msra.mxu0 %v2989
        %v2991 = vand.u32 %v754, 4294901760
        %v2992 = vsub.f32 %v754, %v2991
        %2993 = vmatprep.subr.mxu0 %v2992
        %v2994 = vand.u32 %v753, 4294901760
        %v2995 = vsub.f32 %v753, %v2994
        %2996 = vmatpush1.msra.mxu0 %v2995
        %v2997 = vand.u32 %v762, 4294901760
        %v2998 = vsub.f32 %v762, %v2997
        %2999 = vmatprep.subr.mxu0 %v2998
        %v3000 = vand.u32 %v761, 4294901760
        %v3001 = vsub.f32 %v761, %v3000
        %3002 = vmatpush1.msra.mxu0 %v3001
        %v3003 = vand.u32 %v770, 4294901760
        %v3004 = vsub.f32 %v770, %v3003
        %3005 = vmatprep.subr.mxu0 %v3004
        %v3006 = vand.u32 %v769, 4294901760
        %v3007 = vsub.f32 %v769, %v3006
        %3008 = vmatpush1.msra.mxu0 %v3007
        %v3009 = vand.u32 %v778, 4294901760
        %v3010 = vsub.f32 %v778, %v3009
        %3011 = vmatprep.subr.mxu0 %v3010
        %v3012 = vand.u32 %v777, 4294901760
        %v3013 = vsub.f32 %v777, %v3012
        %3014 = vmatpush1.msra.mxu0 %v3013
        %3015 = vmatprep.subr.mxu0 0.0
        %3016 = vmatpush1.msra.mxu0 0.0
        %3017 = vmatprep.subr.mxu0 0.0
        %3018 = vmatpush1.msra.mxu0 0.0
        %3019 = vmatprep.subr.mxu0 0.0
        %3020 = vmatpush1.msra.mxu0 0.0
        %3021 = vmatprep.subr.mxu0 0.0
        %3022 = vmatpush1.msra.mxu0 0.0
        %3023 = vmatprep.subr.mxu0 0.0
        %3024 = vmatpush1.msra.mxu0 0.0
        %3025 = vmatprep.subr.mxu0 0.0
        %3026 = vmatpush1.msra.mxu0 0.0
        %3027 = vmatprep.subr.mxu0 0.0
        %3028 = vmatpush1.msra.mxu0 0.0
        %3029 = vmatprep.subr.mxu0 0.0
        %3030 = vmatpush1.msra.mxu0 0.0
        %3031 = vmatprep.subr.mxu0 0.0
        %3032 = vmatpush1.msra.mxu0 0.0
        %3033 = vmatprep.subr.mxu0 0.0
        %3034 = vmatpush1.msra.mxu0 0.0
        %3035 = vmatprep.subr.mxu0 0.0
        %3036 = vmatpush1.msra.mxu0 0.0
        %3037 = vmatprep.subr.mxu0 0.0
        %3038 = vmatpush1.msra.mxu0 0.0
        %3039 = vmatprep.subr.mxu0 0.0
        %3040 = vmatpush1.msra.mxu0 0.0
        %3041 = vmatprep.subr.mxu0 0.0
        %3042 = vmatpush1.msra.mxu0 0.0
        %3043 = vmatprep.subr.mxu0 0.0
        %3044 = vmatpush1.msra.mxu0 0.0
        %3045 = vmatprep.subr.mxu0 0.0
        %3046 = vmatpush1.msra.mxu0 0.0
        %3047 = vmatprep.subr.mxu0 0.0
        %3048 = vmatpush1.msra.mxu0 0.0
        %3049 = vmatprep.subr.mxu0 0.0
        %3050 = vmatpush1.msra.mxu0 0.0
        %3051 = vmatprep.subr.mxu0 0.0
        %3052 = vmatpush1.msra.mxu0 0.0
        %3053 = vmatprep.subr.mxu0 0.0
        %3054 = vmatpush1.msra.mxu0 0.0
        %3055 = vmatprep.subr.mxu0 0.0
        %3056 = vmatpush1.msra.mxu0 0.0
        %3057 = vmatprep.subr.mxu0 0.0
        %3058 = vmatpush1.msra.mxu0 0.0
        %3059 = vmatprep.subr.mxu0 0.0
        %3060 = vmatpush1.msra.mxu0 0.0
        %3061 = vmatprep.subr.mxu0 0.0
        %3062 = vmatpush1.msra.mxu0 0.0
        %3063 = vmatprep.mubr.f32.mxu0 0.0
        %v3064 = vand.u32 %v780, 4294901760
        %v3065 = vsub.f32 %v780, %v3064
        %3066 = vmatmul.mubr.f32.gmra.mrb[0].mxu0 %v3065
        %v3067 = vpop.f32.mrb[0].mxu0
        %v3068 = vadd.f32 %v2963, %v3067
        %v3069 = vpop.f32.mrb[0].mxu0
        %v3070 = vadd.f32 %v2965, %v3069
        %3071 = vdwg.mxu0
        %v3072 = vand.u32 %v722, 4294901760
        %3073 = vmatprep.subr.mxu0 %v3072
        %v3074 = vand.u32 %v721, 4294901760
        %3075 = vmatpush1.msra.mxu0 %v3074
        %v3076 = vand.u32 %v730, 4294901760
        %3077 = vmatprep.subr.mxu0 %v3076
        %v3078 = vand.u32 %v729, 4294901760
        %3079 = vmatpush1.msra.mxu0 %v3078
        %v3080 = vand.u32 %v738, 4294901760
        %3081 = vmatprep.subr.mxu0 %v3080
        %v3082 = vand.u32 %v737, 4294901760
        %3083 = vmatpush1.msra.mxu0 %v3082
        %v3084 = vand.u32 %v746, 4294901760
        %3085 = vmatprep.subr.mxu0 %v3084
        %v3086 = vand.u32 %v745, 4294901760
        %3087 = vmatpush1.msra.mxu0 %v3086
        %v3088 = vand.u32 %v754, 4294901760
        %3089 = vmatprep.subr.mxu0 %v3088
        %v3090 = vand.u32 %v753, 4294901760
        %3091 = vmatpush1.msra.mxu0 %v3090
        %v3092 = vand.u32 %v762, 4294901760
        %3093 = vmatprep.subr.mxu0 %v3092
        %v3094 = vand.u32 %v761, 4294901760
        %3095 = vmatpush1.msra.mxu0 %v3094
        %v3096 = vand.u32 %v770, 4294901760
        %3097 = vmatprep.subr.mxu0 %v3096
        %v3098 = vand.u32 %v769, 4294901760
        %3099 = vmatpush1.msra.mxu0 %v3098
        %v3100 = vand.u32 %v778, 4294901760
        %3101 = vmatprep.subr.mxu0 %v3100
        %v3102 = vand.u32 %v777, 4294901760
        %3103 = vmatpush1.msra.mxu0 %v3102
        %3104 = vmatprep.subr.mxu0 0.0
        %3105 = vmatpush1.msra.mxu0 0.0
        %3106 = vmatprep.subr.mxu0 0.0
        %3107 = vmatpush1.msra.mxu0 0.0
        %3108 = vmatprep.subr.mxu0 0.0
        %3109 = vmatpush1.msra.mxu0 0.0
        %3110 = vmatprep.subr.mxu0 0.0
        %3111 = vmatpush1.msra.mxu0 0.0
        %3112 = vmatprep.subr.mxu0 0.0
        %3113 = vmatpush1.msra.mxu0 0.0
        %3114 = vmatprep.subr.mxu0 0.0
        %3115 = vmatpush1.msra.mxu0 0.0
        %3116 = vmatprep.subr.mxu0 0.0
        %3117 = vmatpush1.msra.mxu0 0.0
        %3118 = vmatprep.subr.mxu0 0.0
        %3119 = vmatpush1.msra.mxu0 0.0
        %3120 = vmatprep.subr.mxu0 0.0
        %3121 = vmatpush1.msra.mxu0 0.0
        %3122 = vmatprep.subr.mxu0 0.0
        %3123 = vmatpush1.msra.mxu0 0.0
        %3124 = vmatprep.subr.mxu0 0.0
        %3125 = vmatpush1.msra.mxu0 0.0
        %3126 = vmatprep.subr.mxu0 0.0
        %3127 = vmatpush1.msra.mxu0 0.0
        %3128 = vmatprep.subr.mxu0 0.0
        %3129 = vmatpush1.msra.mxu0 0.0
        %3130 = vmatprep.subr.mxu0 0.0
        %3131 = vmatpush1.msra.mxu0 0.0
        %3132 = vmatprep.subr.mxu0 0.0
        %3133 = vmatpush1.msra.mxu0 0.0
        %3134 = vmatprep.subr.mxu0 0.0
        %3135 = vmatpush1.msra.mxu0 0.0
        %3136 = vmatprep.subr.mxu0 0.0
        %3137 = vmatpush1.msra.mxu0 0.0
        %3138 = vmatprep.subr.mxu0 0.0
        %3139 = vmatpush1.msra.mxu0 0.0
        %3140 = vmatprep.subr.mxu0 0.0
        %3141 = vmatpush1.msra.mxu0 0.0
        %3142 = vmatprep.subr.mxu0 0.0
        %3143 = vmatpush1.msra.mxu0 0.0
        %3144 = vmatprep.subr.mxu0 0.0
        %3145 = vmatpush1.msra.mxu0 0.0
        %3146 = vmatprep.subr.mxu0 0.0
        %3147 = vmatpush1.msra.mxu0 0.0
        %3148 = vmatprep.subr.mxu0 0.0
        %3149 = vmatpush1.msra.mxu0 0.0
        %3150 = vmatprep.subr.mxu0 0.0
        %3151 = vmatpush1.msra.mxu0 0.0
        %3152 = vmatprep.mubr.f32.mxu0 0.0
        %v3153 = vand.u32 %v780, 4294901760
        %v3154 = vsub.f32 %v780, %v3153
        %v3155 = vand.u32 %v3154, 4294901760
        %3156 = vmatmul.mubr.f32.gmra.mrb[0].mxu0 %v3155
        %v3157 = vpop.f32.mrb[0].mxu0
        %v3158 = vadd.f32 %v3068, %v3157
        %v3159 = vpop.f32.mrb[0].mxu0
        %v3160 = vadd.f32 %v3070, %v3159
        %3161 = vdwg.mxu0
        %v3162 = vand.u32 %v722, 4294901760
        %v3163 = vsub.f32 %v722, %v3162
        %v3164 = vand.u32 %v3163, 4294901760
        %3165 = vmatprep.subr.mxu0 %v3164
        %v3166 = vand.u32 %v721, 4294901760
        %v3167 = vsub.f32 %v721, %v3166
        %v3168 = vand.u32 %v3167, 4294901760
        %3169 = vmatpush1.msra.mxu0 %v3168
        %v3170 = vand.u32 %v730, 4294901760
        %v3171 = vsub.f32 %v730, %v3170
        %v3172 = vand.u32 %v3171, 4294901760
        %3173 = vmatprep.subr.mxu0 %v3172
        %v3174 = vand.u32 %v729, 4294901760
        %v3175 = vsub.f32 %v729, %v3174
        %v3176 = vand.u32 %v3175, 4294901760
        %3177 = vmatpush1.msra.mxu0 %v3176
        %v3178 = vand.u32 %v738, 4294901760
        %v3179 = vsub.f32 %v738, %v3178
        %v3180 = vand.u32 %v3179, 4294901760
        %3181 = vmatprep.subr.mxu0 %v3180
        %v3182 = vand.u32 %v737, 4294901760
        %v3183 = vsub.f32 %v737, %v3182
        %v3184 = vand.u32 %v3183, 4294901760
        %3185 = vmatpush1.msra.mxu0 %v3184
        %v3186 = vand.u32 %v746, 4294901760
        %v3187 = vsub.f32 %v746, %v3186
        %v3188 = vand.u32 %v3187, 4294901760
        %3189 = vmatprep.subr.mxu0 %v3188
        %v3190 = vand.u32 %v745, 4294901760
        %v3191 = vsub.f32 %v745, %v3190
        %v3192 = vand.u32 %v3191, 4294901760
        %3193 = vmatpush1.msra.mxu0 %v3192
        %v3194 = vand.u32 %v754, 4294901760
        %v3195 = vsub.f32 %v754, %v3194
        %v3196 = vand.u32 %v3195, 4294901760
        %3197 = vmatprep.subr.mxu0 %v3196
        %v3198 = vand.u32 %v753, 4294901760
        %v3199 = vsub.f32 %v753, %v3198
        %v3200 = vand.u32 %v3199, 4294901760
        %3201 = vmatpush1.msra.mxu0 %v3200
        %v3202 = vand.u32 %v762, 4294901760
        %v3203 = vsub.f32 %v762, %v3202
        %v3204 = vand.u32 %v3203, 4294901760
        %3205 = vmatprep.subr.mxu0 %v3204
        %v3206 = vand.u32 %v761, 4294901760
        %v3207 = vsub.f32 %v761, %v3206
        %v3208 = vand.u32 %v3207, 4294901760
        %3209 = vmatpush1.msra.mxu0 %v3208
        %v3210 = vand.u32 %v770, 4294901760
        %v3211 = vsub.f32 %v770, %v3210
        %v3212 = vand.u32 %v3211, 4294901760
        %3213 = vmatprep.subr.mxu0 %v3212
        %v3214 = vand.u32 %v769, 4294901760
        %v3215 = vsub.f32 %v769, %v3214
        %v3216 = vand.u32 %v3215, 4294901760
        %3217 = vmatpush1.msra.mxu0 %v3216
        %v3218 = vand.u32 %v778, 4294901760
        %v3219 = vsub.f32 %v778, %v3218
        %v3220 = vand.u32 %v3219, 4294901760
        %3221 = vmatprep.subr.mxu0 %v3220
        %v3222 = vand.u32 %v777, 4294901760
        %v3223 = vsub.f32 %v777, %v3222
        %v3224 = vand.u32 %v3223, 4294901760
        %3225 = vmatpush1.msra.mxu0 %v3224
        %3226 = vmatprep.subr.mxu0 0.0
        %3227 = vmatpush1.msra.mxu0 0.0
        %3228 = vmatprep.subr.mxu0 0.0
        %3229 = vmatpush1.msra.mxu0 0.0
        %3230 = vmatprep.subr.mxu0 0.0
        %3231 = vmatpush1.msra.mxu0 0.0
        %3232 = vmatprep.subr.mxu0 0.0
        %3233 = vmatpush1.msra.mxu0 0.0
        %3234 = vmatprep.subr.mxu0 0.0
        %3235 = vmatpush1.msra.mxu0 0.0
        %3236 = vmatprep.subr.mxu0 0.0
        %3237 = vmatpush1.msra.mxu0 0.0
        %3238 = vmatprep.subr.mxu0 0.0
        %3239 = vmatpush1.msra.mxu0 0.0
        %3240 = vmatprep.subr.mxu0 0.0
        %3241 = vmatpush1.msra.mxu0 0.0
        %3242 = vmatprep.subr.mxu0 0.0
        %3243 = vmatpush1.msra.mxu0 0.0
        %3244 = vmatprep.subr.mxu0 0.0
        %3245 = vmatpush1.msra.mxu0 0.0
        %3246 = vmatprep.subr.mxu0 0.0
        %3247 = vmatpush1.msra.mxu0 0.0
        %3248 = vmatprep.subr.mxu0 0.0
        %3249 = vmatpush1.msra.mxu0 0.0
        %3250 = vmatprep.subr.mxu0 0.0
        %3251 = vmatpush1.msra.mxu0 0.0
        %3252 = vmatprep.subr.mxu0 0.0
        %3253 = vmatpush1.msra.mxu0 0.0
        %3254 = vmatprep.subr.mxu0 0.0
        %3255 = vmatpush1.msra.mxu0 0.0
        %3256 = vmatprep.subr.mxu0 0.0
        %3257 = vmatpush1.msra.mxu0 0.0
        %3258 = vmatprep.subr.mxu0 0.0
        %3259 = vmatpush1.msra.mxu0 0.0
        %3260 = vmatprep.subr.mxu0 0.0
        %3261 = vmatpush1.msra.mxu0 0.0
        %3262 = vmatprep.subr.mxu0 0.0
        %3263 = vmatpush1.msra.mxu0 0.0
        %3264 = vmatprep.subr.mxu0 0.0
        %3265 = vmatpush1.msra.mxu0 0.0
        %3266 = vmatprep.subr.mxu0 0.0
        %3267 = vmatpush1.msra.mxu0 0.0
        %3268 = vmatprep.subr.mxu0 0.0
        %3269 = vmatpush1.msra.mxu0 0.0
        %3270 = vmatprep.subr.mxu0 0.0
        %3271 = vmatpush1.msra.mxu0 0.0
        %3272 = vmatprep.subr.mxu0 0.0
        %3273 = vmatpush1.msra.mxu0 0.0
        %3274 = vmatprep.mubr.f32.mxu0 0.0
        %v3275 = vand.u32 %v780, 4294901760
        %3276 = vmatmul.mubr.f32.gmra.mrb[0].mxu0 %v3275
        %v3277 = vpop.f32.mrb[0].mxu0
        %v3278 = vadd.f32 %v3158, %v3277
        %v3279 = vpop.f32.mrb[0].mxu0
        %v3280 = vadd.f32 %v3160, %v3279
        %3281 = vdwg.mxu0
        %v3282 = vand.u32 %v722, 4294901760
        %3283 = vmatprep.subr.mxu0 %v3282
        %v3284 = vand.u32 %v721, 4294901760
        %3285 = vmatpush1.msra.mxu0 %v3284
        %v3286 = vand.u32 %v730, 4294901760
        %3287 = vmatprep.subr.mxu0 %v3286
        %v3288 = vand.u32 %v729, 4294901760
        %3289 = vmatpush1.msra.mxu0 %v3288
        %v3290 = vand.u32 %v738, 4294901760
        %3291 = vmatprep.subr.mxu0 %v3290
        %v3292 = vand.u32 %v737, 4294901760
        %3293 = vmatpush1.msra.mxu0 %v3292
        %v3294 = vand.u32 %v746, 4294901760
        %3295 = vmatprep.subr.mxu0 %v3294
        %v3296 = vand.u32 %v745, 4294901760
        %3297 = vmatpush1.msra.mxu0 %v3296
        %v3298 = vand.u32 %v754, 4294901760
        %3299 = vmatprep.subr.mxu0 %v3298
        %v3300 = vand.u32 %v753, 4294901760
        %3301 = vmatpush1.msra.mxu0 %v3300
        %v3302 = vand.u32 %v762, 4294901760
        %3303 = vmatprep.subr.mxu0 %v3302
        %v3304 = vand.u32 %v761, 4294901760
        %3305 = vmatpush1.msra.mxu0 %v3304
        %v3306 = vand.u32 %v770, 4294901760
        %3307 = vmatprep.subr.mxu0 %v3306
        %v3308 = vand.u32 %v769, 4294901760
        %3309 = vmatpush1.msra.mxu0 %v3308
        %v3310 = vand.u32 %v778, 4294901760
        %3311 = vmatprep.subr.mxu0 %v3310
        %v3312 = vand.u32 %v777, 4294901760
        %3313 = vmatpush1.msra.mxu0 %v3312
        %3314 = vmatprep.subr.mxu0 0.0
        %3315 = vmatpush1.msra.mxu0 0.0
        %3316 = vmatprep.subr.mxu0 0.0
        %3317 = vmatpush1.msra.mxu0 0.0
        %3318 = vmatprep.subr.mxu0 0.0
        %3319 = vmatpush1.msra.mxu0 0.0
        %3320 = vmatprep.subr.mxu0 0.0
        %3321 = vmatpush1.msra.mxu0 0.0
        %3322 = vmatprep.subr.mxu0 0.0
        %3323 = vmatpush1.msra.mxu0 0.0
        %3324 = vmatprep.subr.mxu0 0.0
        %3325 = vmatpush1.msra.mxu0 0.0
        %3326 = vmatprep.subr.mxu0 0.0
        %3327 = vmatpush1.msra.mxu0 0.0
        %3328 = vmatprep.subr.mxu0 0.0
        %3329 = vmatpush1.msra.mxu0 0.0
        %3330 = vmatprep.subr.mxu0 0.0
        %3331 = vmatpush1.msra.mxu0 0.0
        %3332 = vmatprep.subr.mxu0 0.0
        %3333 = vmatpush1.msra.mxu0 0.0
        %3334 = vmatprep.subr.mxu0 0.0
        %3335 = vmatpush1.msra.mxu0 0.0
        %3336 = vmatprep.subr.mxu0 0.0
        %3337 = vmatpush1.msra.mxu0 0.0
        %3338 = vmatprep.subr.mxu0 0.0
        %3339 = vmatpush1.msra.mxu0 0.0
        %3340 = vmatprep.subr.mxu0 0.0
        %3341 = vmatpush1.msra.mxu0 0.0
        %3342 = vmatprep.subr.mxu0 0.0
        %3343 = vmatpush1.msra.mxu0 0.0
        %3344 = vmatprep.subr.mxu0 0.0
        %3345 = vmatpush1.msra.mxu0 0.0
        %3346 = vmatprep.subr.mxu0 0.0
        %3347 = vmatpush1.msra.mxu0 0.0
        %3348 = vmatprep.subr.mxu0 0.0
        %3349 = vmatpush1.msra.mxu0 0.0
        %3350 = vmatprep.subr.mxu0 0.0
        %3351 = vmatpush1.msra.mxu0 0.0
        %3352 = vmatprep.subr.mxu0 0.0
        %3353 = vmatpush1.msra.mxu0 0.0
        %3354 = vmatprep.subr.mxu0 0.0
        %3355 = vmatpush1.msra.mxu0 0.0
        %3356 = vmatprep.subr.mxu0 0.0
        %3357 = vmatpush1.msra.mxu0 0.0
        %3358 = vmatprep.subr.mxu0 0.0
        %3359 = vmatpush1.msra.mxu0 0.0
        %3360 = vmatprep.subr.mxu0 0.0
        %3361 = vmatpush1.msra.mxu0 0.0
        %3362 = vmatprep.mubr.f32.mxu0 0.0
        %v3363 = vand.u32 %v780, 4294901760
        %3364 = vmatmul.mubr.f32.gmra.mrb[0].mxu0 %v3363
        %v3365 = vpop.f32.mrb[0].mxu0
        %v3366 = vadd.f32 %v3278, %v3365
        %v3367 = vpop.f32.mrb[0].mxu0
        %v3368 = vadd.f32 %v3280, %v3367
        %3369 = vdwg.mxu0
        %3370 = vst [vmem:[%s340] sm:$0x3f] %v1425
        %3371 = vst [vmem:[%s340 + $0x8] sm:$0x3f] %v1427
        %3372 = vst [vmem:[%s340 + $0x10] sm:$0x3f] %v2072
        %3373 = vst [vmem:[%s340 + $0x18] sm:$0x3f] %v2074
        %3374 = vst [vmem:[%s340 + $0x20] sm:$0x3f] %v2719
        %3375 = vst [vmem:[%s340 + $0x28] sm:$0x3f] %v2721
        %3376 = vst [vmem:[%s340 + $0x30] sm:$0x3f] %v3366
        %3377 = vst [vmem:[%s340 + $0x38] sm:$0x3f] %v3368
        %p3378 = scmp.lt.s32.totalorder %s24, 1
        %s3379 = scalar_select %p3378, %s24, 1
        %s3380 = smul.addr %s3379, 8
        %s3381 = smul.addr %s3380, 8
        %s3382 = scalar_lea.vmem %s6, %s3381
        // Predicated region
        $region61: #{tpu_custom_call.1} parent=43 // pred_check
          %p3383 = pneg %p178
        $region62: #{tpu_custom_call.1} parent=43 // pred_check_branch
          %3385 = sbr.rel (%p3383) target = $region64
        $region63: #{tpu_custom_call.1} parent=43 // pred_region
          _
        $region64: #{tpu_custom_call.1} parent=43 // pred_fallthru
          _
      $region44: #{tpu_custom_call.1} parent=5 // pred_fallthru
        _
      %p3386 = scmp.le.s32.totalorder 2, %s19
      // Predicated region
      $region65: #{tpu_custom_call.1} parent=5 // pred_check
        %p3387 = pneg %p3386
      $region66: #{tpu_custom_call.1} parent=5 // pred_check_branch
        %3389 = sbr.rel (%p3387) target = $region68
      $region67: #{tpu_custom_call.1} parent=5 // pred_region
        %s3390 = ssub.s32 %s19, 2
        // Predicated region
        $region69: #{tpu_custom_call.1} parent=67 // pred_check
          %p3391 = pneg %p184
        $region70: #{tpu_custom_call.1} parent=67 // pred_check_branch
          %3393 = sbr.rel (%p3391) target = $region72
        $region71: #{tpu_custom_call.1} parent=67 // pred_region
          %p3394 = scmp.lt.s32.totalorder %s25, 1
          %s3395 = scalar_select %p3394, %s25, 1
          %s3396 = smul.addr %s3395, 8
          %s3397 = smul.addr %s3396, 8
          %s3398 = scalar_lea.vmem %s6, %s3397
        $region72: #{tpu_custom_call.1} parent=67 // pred_fallthru
          _
      $region68: #{tpu_custom_call.1} parent=5 // pred_fallthru
        _
    $region6: #{tpu_custom_call.1} parent=1 // loop_footer
      %s23 = sadd.s32 1, %s19
    $region7: #{tpu_custom_call.1} parent=1 // loop_footer_branch
      %18 = sbr.rel target = $region3
    $region8: #{tpu_custom_call.1} parent=1 // loop_exit
      _
    %3399 = vsyncpa [#allocation3], 1
    %s3400 = scalar_lea.sflag [#allocation3], 1
    %3401 = vsyncpa %s3400, 1
    %3402 = vsyncpa [#allocation5], 1
    %s3403 = scalar_lea.sflag [#allocation5], 1
    %3404 = vsyncpa %s3403, 1
    %3405 = vsyncpa [#allocation8], 1

</llo_original>
